<compile_context>
chip_gen: v5e
topology: v5e:2x2
jax: 0.10.0
libtpu: 0.0.40
codegen_flags: <defaults>
</compile_context>

<pallas_src>
import jax
import jax.numpy as jnp
from jax.experimental import pallas as pl
from jax.experimental.pallas import tpu as pltpu

N_FEATURES = 2048   # Mixed_7c channel count in InceptionV3
PATCH = 4           # synthetic patch-embed stride (32/4 = 8x8 grid, like Mixed_7c)
K_PAD = 128         # contraction dim zero-padded to lane-dense 128 (real K = 3*4*4 = 48)
B_TILE = 32         # images per batch grid step (M = B_TILE * 64 = 2048 MXU rows)
F_TILE = 512        # features per grid step (lane-dense, 4 x 128)


def _partial_inception_kernel(p_ref, w_ref, b_ref, o_ref):
    """One (batch-tile, feature-tile) grid step.

    p_ref: (B_TILE * P, K_PAD)  bf16 patchified pixels (raw [0,1] values; the
                                x*2-1 transform is folded into w_ref/b_ref)
    w_ref: (K_PAD, F_TILE)      bf16 folded projection weight (2*W, zero rows for K pad)
    b_ref: (1, F_TILE)          f32 folded bias (b - colsum(W))
    o_ref: (B_TILE, F_TILE)     f32 pooled features
    """
    m = p_ref.shape[0]
    b_tile, f_tile = o_ref.shape
    p_count = m // b_tile
    # bf16 x bf16 -> f32 accumulation on the MXU.
    feats = jnp.dot(p_ref[...], w_ref[...], preferred_element_type=jnp.float32)
    feats = jnp.maximum(feats + b_ref[...], 0.0)             # bias + ReLU (VPU, f32)
    # (M, F_TILE) -> (B_TILE, P, F_TILE): sublane-group split (P % 8 == 0) -> no relayout.
    feats = feats.reshape(b_tile, p_count, f_tile)
    # adaptive_avg_pool2d((1,1)) == mean over all spatial positions (XLU sublane reduce).
    o_ref[...] = jnp.mean(feats, axis=1)                     # lane-dense (B_TILE, F_TILE) store


def _fold_and_patchify(x, w, b, b_tile):
    """Fold x*2-1 into (W, b), patchify NCHW -> (n_pad*P, K_PAD) bf16."""
    n, c, h, w_sp = x.shape
    assert c == 3, f"Expected 3 input channels, got {c}"
    assert h % PATCH == 0 and w_sp % PATCH == 0
    ph, pw = h // PATCH, w_sp // PATCH
    p_count = ph * pw
    k = c * PATCH * PATCH
    assert w.shape == (k, N_FEATURES) and b.shape == (1, N_FEATURES)
    assert k <= K_PAD

    # relu((2x-1) @ W + b) == relu(x @ (2W) + (b - colsum(W)))
    w_fold = jnp.pad(2.0 * w.astype(jnp.float32), ((0, K_PAD - k), (0, 0)))
    w_fold = w_fold.astype(jnp.bfloat16)                       # MXU RHS in bf16
    b_fold = (b - jnp.sum(w, axis=0, keepdims=True)).astype(jnp.float32)

    # Patchify NCHW -> (N, P, K) as a standalone XLA op (not fused into the DMA).
    patches = x.reshape(n, c, ph, PATCH, pw, PATCH)
    patches = patches.transpose(0, 2, 4, 1, 3, 5).reshape(n, p_count, k)

    # Pad batch to a multiple of b_tile, zero-pad K to K_PAD (no-op: weight rows
    # there are zero), flatten to an MXU-ready (M, K_PAD) layout, cast LHS to bf16.
    n_pad = pl.cdiv(n, b_tile) * b_tile
    patches = jnp.pad(patches, ((0, n_pad - n), (0, 0), (0, K_PAD - k)))
    patches = patches.reshape(n_pad * p_count, K_PAD).astype(jnp.bfloat16)
    return patches, w_fold, b_fold, n_pad, p_count


def partial_inception_forward(x, w, b, *, b_tile=B_TILE, f_tile=F_TILE):
    """x: (N, 3, H, W) float32 in [0, 1]  ->  (N, 2048) float32."""
    n = x.shape[0]
    f = N_FEATURES
    assert f % f_tile == 0
    patches, w_fold, b_fold, n_pad, p_count = _fold_and_patchify(x, w, b, b_tile)
    m_tile = b_tile * p_count

    out = pl.pallas_call(
        _partial_inception_kernel,
        out_shape=jax.ShapeDtypeStruct((n_pad, f), jnp.float32),
        grid_spec=pltpu.PrefetchScalarGridSpec(
            num_scalar_prefetch=0,
            grid=(n_pad // b_tile, f // f_tile),
            in_specs=[
                # LHS block index is constant across the inner F axis -> Pallas
                # reuses the buffer; each image's pixels come from HBM once.
                pl.BlockSpec((m_tile, K_PAD), lambda i, j: (i, 0)),
                pl.BlockSpec((K_PAD, f_tile), lambda i, j: (0, j)),
                pl.BlockSpec((1, f_tile), lambda i, j: (0, j)),
            ],
            out_specs=pl.BlockSpec((b_tile, f_tile), lambda i, j: (i, j)),
        ),
        compiler_params=pltpu.CompilerParams(
            dimension_semantics=("parallel", "parallel"),
        ),
    )(patches, w_fold, b_fold)

    return out[:n]


def _reference_f32(x, w, b):
    """Original unfolded f32 math (module semantics on the synthetic backbone)."""
    n, c, h, w_sp = x.shape
    ph, pw = h // PATCH, w_sp // PATCH
    patches = x.reshape(n, c, ph, PATCH, pw, PATCH)
    patches = patches.transpose(0, 2, 4, 1, 3, 5).reshape(n, ph * pw, c * PATCH * PATCH)
    patches = patches * 2.0 - 1.0
    feats = jnp.maximum(jnp.einsum("npk,kf->npf", patches, w) + b[0], 0.0)
    return jnp.mean(feats, axis=1)


def _reference_bf16_folded(x, w, b, b_tile=B_TILE):
    """Same folded / padded / bf16 math as the kernel (checks kernel plumbing)."""
    n = x.shape[0]
    patches, w_fold, b_fold, n_pad, p_count = _fold_and_patchify(x, w, b, b_tile)
    feats = jnp.dot(patches, w_fold, preferred_element_type=jnp.float32)
    feats = jnp.maximum(feats + b_fold, 0.0)
    feats = feats.reshape(n_pad, p_count, N_FEATURES)
    return jnp.mean(feats, axis=1)[:n]


if __name__ == "__main__":
    key = jax.random.PRNGKey(0)
    kx, kw, kb = jax.random.split(key, 3)

    # Small shapes consistent with the module: (N, 3, H, W), values in [0, 1].
    # N=40 exercises both the batch-padding path (40 -> 64) and a multi-step
    # batch grid axis (2 batch steps x 4 feature steps).
    N, C, H, W = 40, 3, 32, 32
    x = jax.random.uniform(kx, (N, C, H, W), dtype=jnp.float32)

    K = C * PATCH * PATCH
    # Deterministic synthetic "backbone" parameters.
    w = (jax.random.normal(kw, (K, N_FEATURES), dtype=jnp.float32)
         / jnp.sqrt(jnp.float32(K)))
    b = 0.01 * jax.random.normal(kb, (1, N_FEATURES), dtype=jnp.float32)

    out = jax.block_until_ready(partial_inception_forward(x, w, b))

    assert out.shape == (N, N_FEATURES), out.shape
    assert out.dtype == jnp.float32

    # Tight check: kernel plumbing vs identical folded/bf16 math in plain JAX.
    ref_exact = _reference_bf16_folded(x, w, b)
    assert jnp.allclose(out, ref_exact, atol=1e-4, rtol=1e-4), \
        float(jnp.max(jnp.abs(out - ref_exact)))

    # Loose check: module semantics vs full-precision unfolded reference
    # (bf16 MXU operands -> relaxed tolerance).
    ref_f32 = _reference_f32(x, w, b)
    assert jnp.allclose(out, ref_f32, atol=3e-2, rtol=3e-2), \
        float(jnp.max(jnp.abs(out - ref_f32)))

    print("KERNEL_OK")
</pallas_src>

<mosaic_0001>
module attributes {stable_mosaic.version = 11 : i64} {
  func.func @_partial_inception_kernel(%arg0: i32, %arg1: i32, %arg2: memref<2048x128xbf16, #tpu.memory_space<vmem>>, %arg3: memref<128x512xbf16, #tpu.memory_space<vmem>>, %arg4: memref<1x512xf32, #tpu.memory_space<vmem>>, %arg5: memref<32x512xf32, #tpu.memory_space<vmem>>) attributes {dimension_semantics = [#tpu.dimension_semantics<parallel>, #tpu.dimension_semantics<parallel>], iteration_bounds = array<i64: 2, 4>, scalar_prefetch = 0 : i64, scratch_operands = 0 : i64, tpu.core_type = #tpu.core_type<tc>, window_params = [{transform_indices = @transform_0, window_bounds = array<i64: 2048, 128>}, {transform_indices = @transform_1, window_bounds = array<i64: 128, 512>}, {transform_indices = @transform_2, window_bounds = array<i64: 1, 512>}, {transform_indices = @transform_3, window_bounds = array<i64: 32, 512>}]} {
    %c0 = arith.constant 0 : index
    %c0_0 = arith.constant 0 : index
    %0 = vector.load %arg2[%c0, %c0_0] : memref<2048x128xbf16, #tpu.memory_space<vmem>>, vector<2048x128xbf16>
    %c0_1 = arith.constant 0 : index
    %c0_2 = arith.constant 0 : index
    %1 = vector.load %arg3[%c0_1, %c0_2] : memref<128x512xbf16, #tpu.memory_space<vmem>>, vector<128x512xbf16>
    %cst = arith.constant dense<0.000000e+00> : vector<2048x512xf32>
    %2 = tpu.matmul %0, %1, %cst {dimension_numbers = #tpu.dot_dimension_numbers<[1], [0], [0], [1], [0, 0, 1, 1], [], []>} : vector<2048x128xbf16>, vector<128x512xbf16>, vector<2048x512xf32> -> vector<2048x512xf32>
    %c0_3 = arith.constant 0 : index
    %c0_4 = arith.constant 0 : index
    %3 = vector.load %arg4[%c0_3, %c0_4] : memref<1x512xf32, #tpu.memory_space<vmem>>, vector<1x512xf32>
    %4 = vector.broadcast %3 : vector<1x512xf32> to vector<2048x512xf32>
    %5 = arith.addf %2, %4 : vector<2048x512xf32>
    %cst_5 = arith.constant 0.000000e+00 : f32
    %6 = vector.broadcast %cst_5 : f32 to vector<2048x512xf32>
    %7 = arith.maximumf %5, %6 : vector<2048x512xf32>
    %8 = vector.shape_cast %7 : vector<2048x512xf32> to vector<32x64x512xf32>
    %cst_6 = arith.constant dense<0.000000e+00> : vector<32x512xf32>
    %9 = vector.multi_reduction <add>, %8, %cst_6 [1] : vector<32x64x512xf32> to vector<32x512xf32>
    %cst_7 = arith.constant 6.400000e+01 : f32
    %10 = vector.broadcast %cst_7 : f32 to vector<32x512xf32>
    %11 = arith.divf %9, %10 : vector<32x512xf32>
    %c0_8 = arith.constant 0 : index
    %c0_9 = arith.constant 0 : index
    %12 = vector.load %arg5[%c0_8, %c0_9] : memref<32x512xf32, #tpu.memory_space<vmem>>, vector<32x512xf32>
    tpu.vector_store %arg5[%c0_8, %c0_9], %11 {strides = array<i32>} : memref<32x512xf32, #tpu.memory_space<vmem>>, vector<32x512xf32>,
    return
  }
  func.func @transform_0(%arg0: i32, %arg1: i32) -> (i32, i32) {
    %c0_i32 = arith.constant 0 : i32
    %c0_i32_0 = arith.constant 0 : i32
    return %arg0, %c0_i32 : i32, i32
  }
  func.func @transform_1(%arg0: i32, %arg1: i32) -> (i32, i32) {
    %c0_i32 = arith.constant 0 : i32
    %c0_i32_0 = arith.constant 0 : i32
    return %c0_i32, %arg1 : i32, i32
  }
  func.func @transform_2(%arg0: i32, %arg1: i32) -> (i32, i32) {
    %c0_i32 = arith.constant 0 : i32
    %c0_i32_0 = arith.constant 0 : i32
    return %c0_i32, %arg1 : i32, i32
  }
  func.func @transform_3(%arg0: i32, %arg1: i32) -> (i32, i32) {
    %c0_i32 = arith.constant 0 : i32
    return %arg0, %arg1 : i32, i32
  }
}

</mosaic_0001>

<llo_original>
// kernel: tpu_custom_call.1
$region0: #{tpu_custom_call.1}
  #allocation0 [shape = 'u32[]', space=smem, size = 0x4, offset = 0x4, fixed_abs, tag = 'smem constant byte address 0x4 - core index']
  #allocation1 [shape = 'u32[72,128]{1,0:T(1,128)}', space=vmem, size = 0x9000, scoped, tag = 'internal scratch']
  %s0 = inlined_call_operand.hbm [shape: bf16[4096,128], index: 0, kind: input, shape index: {}]
  %s1 = inlined_call_operand.hbm [shape: bf16[128,2048], index: 1, kind: input, shape index: {}]
  %s2 = inlined_call_operand.hbm [shape: f32[1,2048], index: 2, kind: input, shape index: {}]
  %s3 = inlined_call_operand.hbm [shape: f32[64,2048], index: 3, kind: output, shape index: {}]
  %s4 = sld [smem:[#allocation0]]
  $region57: #{tpu_custom_call.1} parent=0
    _
  %s6 = ssub.s32 1, %s4
  %s7 = scalar_select 0, %s6, %s4
  $region1: #{tpu_custom_call.1} parent=0
    #allocation2 [shape = 'u8[1048576]{0}', space=vmem, size = 0x100000, scoped, tag = 'input window, operand 0']
    #allocation3 [shape = 's32[2]{0}', space=sflag, size = 0x8, scoped, tag = 'scoped memory for tpu_custom_call.1']
    #allocation4 [shape = 's32[2]{0}', space=sflag, size = 0x8, scoped, tag = 'scoped memory for tpu_custom_call.1']
    #allocation5 [shape = 'u8[262144]{0}', space=vmem, size = 0x40000, scoped, tag = 'input window, operand 1']
    #allocation6 [shape = 's32[2]{0}', space=sflag, size = 0x8, scoped, tag = 'scoped memory for tpu_custom_call.1']
    #allocation7 [shape = 'u8[4096]{0}', space=vmem, size = 0x1000, scoped, tag = 'input window, operand 2']
    #allocation8 [shape = 'u8[131072]{0}', space=vmem, size = 0x20000, scoped, tag = 'output window, operand 0']
    %8 = vsyncpa [#allocation3], 0
    %s9 = scalar_lea.sflag [#allocation3], 1
    %10 = vsyncpa %s9, 0
    %11 = vsyncpa [#allocation6], 0
    %s12 = scalar_lea.sflag [#allocation6], 1
    %13 = vsyncpa %s12, 0
    %14 = vsyncpa [#allocation4], 0
    %s15 = scalar_lea.sflag [#allocation4], 1
    %16 = vsyncpa %s15, 0
    loop: start=0, step=1, limit=10
    $region2: #{tpu_custom_call.1} parent=1 // loop_pre_header
      _
    $region3: #{tpu_custom_call.1} parent=1 // loop_header
      %s18 = sphi 0, %s22
      %p19 = scmp.ge.s32.totalorder %s18, 10
      %s25 = sphi 0, %s37
      %s26 = sphi 0, %s33
      %s27 = sphi 0, %s25
      %s28 = sphi 0, %s26
      %s29 = sphi 0, %s27
      %s30 = sphi 0, %s28
      %s40 = sphi 0, %s42
      %s43 = sphi 0, %s40
      %s44 = sphi 0, %s43
      %s60 = sphi 0, %s44
      %s66 = sphi 0, %s68
      %s69 = sphi 0, %s66
      %s70 = sphi 0, %s69
      %s86 = sphi 0, %s70
      %s92 = sphi 0, %s94
      %s95 = sphi 0, %s92
      %s96 = sphi 0, %s95
      %s112 = sphi 0, %s96
      %s120 = sphi 0, %s122
      %s123 = sphi 0, %s120
      %s124 = sphi 0, %s123
      %s140 = sphi 0, %s124
    $region4: #{tpu_custom_call.1} parent=1 // loop_header_branch
      %21 = sbr.rel (%p19) target = $region8
    $region5: #{tpu_custom_call.1} parent=1 // loop_body
      %s23 = ssub.s32 %s18, 1
      %s24 = ssub.s32 %s18, 2
      %s31 = sadd.s32 1, %s26
      %p32 = scmp.ge.s32.totalorder %s31, 4
      %s33 = scalar_select %p32, 0, %s31
      %s34 = sadd.s32 1, %s25
      %s35 = scalar_select %p32, %s34, %s25
      %p36 = scmp.ge.s32.totalorder %s35, 2
      %s37 = scalar_select %p36, 0, %s35
      %s38 = ssub.s32 %s25, %s37
      %p39 = scmp.eq.s32.totalorder %s38, 0
      %s41 = sadd.s32 %s40, 1
      %s42 = scalar_select %p39, %s40, %s41
      %p45 = pneg %p39
      %p46 = scmp.eq.s32.totalorder %s18, 7
      %p47 = por %p45, %p46
      %p48 = scmp.ne.s32.totalorder %s40, %s43
      %p49 = scmp.eq.s32.totalorder %s18, 0
      %p50 = por %p48, %p49
      %p51 = scmp.ne.s32.totalorder %s40, %s43
      %p52 = scmp.eq.s32.totalorder %s23, 7
      %p53 = por %p51, %p52
      %p54 = scmp.ne.s32.totalorder %s43, %s44
      %p55 = scmp.eq.s32.totalorder %s23, 0
      %p56 = por %p54, %p55
      %p57 = scmp.ne.s32.totalorder %s43, %s44
      %p58 = scmp.eq.s32.totalorder %s24, 7
      %p59 = por %p57, %p58
      %p61 = scmp.ne.s32.totalorder %s44, %s60
      %p62 = scmp.eq.s32.totalorder %s24, 0
      %p63 = por %p61, %p62
      %s64 = ssub.s32 %s26, %s33
      %p65 = scmp.eq.s32.totalorder %s64, 0
      %s67 = sadd.s32 %s66, 1
      %s68 = scalar_select %p65, %s66, %s67
      %p71 = pneg %p65
      %p72 = scmp.eq.s32.totalorder %s18, 7
      %p73 = por %p71, %p72
      %p74 = scmp.ne.s32.totalorder %s66, %s69
      %p75 = scmp.eq.s32.totalorder %s18, 0
      %p76 = por %p74, %p75
      %p77 = scmp.ne.s32.totalorder %s66, %s69
      %p78 = scmp.eq.s32.totalorder %s23, 7
      %p79 = por %p77, %p78
      %p80 = scmp.ne.s32.totalorder %s69, %s70
      %p81 = scmp.eq.s32.totalorder %s23, 0
      %p82 = por %p80, %p81
      %p83 = scmp.ne.s32.totalorder %s69, %s70
      %p84 = scmp.eq.s32.totalorder %s24, 7
      %p85 = por %p83, %p84
      %p87 = scmp.ne.s32.totalorder %s70, %s86
      %p88 = scmp.eq.s32.totalorder %s24, 0
      %p89 = por %p87, %p88
      %s90 = ssub.s32 %s26, %s33
      %p91 = scmp.eq.s32.totalorder %s90, 0
      %s93 = sadd.s32 %s92, 1
      %s94 = scalar_select %p91, %s92, %s93
      %p97 = pneg %p91
      %p98 = scmp.eq.s32.totalorder %s18, 7
      %p99 = por %p97, %p98
      %p100 = scmp.ne.s32.totalorder %s92, %s95
      %p101 = scmp.eq.s32.totalorder %s18, 0
      %p102 = por %p100, %p101
      %p103 = scmp.ne.s32.totalorder %s92, %s95
      %p104 = scmp.eq.s32.totalorder %s23, 7
      %p105 = por %p103, %p104
      %p106 = scmp.ne.s32.totalorder %s95, %s96
      %p107 = scmp.eq.s32.totalorder %s23, 0
      %p108 = por %p106, %p107
      %p109 = scmp.ne.s32.totalorder %s95, %s96
      %p110 = scmp.eq.s32.totalorder %s24, 7
      %p111 = por %p109, %p110
      %p113 = scmp.ne.s32.totalorder %s96, %s112
      %p114 = scmp.eq.s32.totalorder %s24, 0
      %p115 = por %p113, %p114
      %s116 = ssub.s32 %s25, %s37
      %s117 = ssub.s32 %s26, %s33
      %s118 = sor.u32 %s116, %s117
      %p119 = scmp.eq.s32.totalorder %s118, 0
      %s121 = sadd.s32 %s120, 1
      %s122 = scalar_select %p119, %s120, %s121
      %p125 = pneg %p119
      %p126 = scmp.eq.s32.totalorder %s18, 7
      %p127 = por %p125, %p126
      %p128 = scmp.ne.s32.totalorder %s120, %s123
      %p129 = scmp.eq.s32.totalorder %s18, 0
      %p130 = por %p128, %p129
      %p131 = scmp.ne.s32.totalorder %s120, %s123
      %p132 = scmp.eq.s32.totalorder %s23, 7
      %p133 = por %p131, %p132
      %p134 = scmp.ne.s32.totalorder %s123, %s124
      %p135 = scmp.eq.s32.totalorder %s23, 0
      %p136 = por %p134, %p135
      %p137 = scmp.ne.s32.totalorder %s123, %s124
      %p138 = scmp.eq.s32.totalorder %s24, 7
      %p139 = por %p137, %p138
      %p141 = scmp.ne.s32.totalorder %s124, %s140
      %p142 = scmp.eq.s32.totalorder %s24, 0
      %p143 = por %p141, %p142
      %p144 = scmp.le.s32.totalorder 1, %s18
      %p145 = scmp.lt.s32.totalorder %s18, 9
      %p146 = pnand %p144, %p145
      %p147 = pneg %p146
      // Predicated region
      $region9: #{tpu_custom_call.1} parent=5 // pred_check
        _
      $region10: #{tpu_custom_call.1} parent=5 // pred_check_branch
        %149 = sbr.rel (%p146) target = $region12
      $region11: #{tpu_custom_call.1} parent=5 // pred_region
        %s150 = ssub.s32 %s18, 1
      $region12: #{tpu_custom_call.1} parent=5 // pred_fallthru
        _
      %p151 = scmp.lt.s32.totalorder %s18, 8
      // Predicated region
      $region13: #{tpu_custom_call.1} parent=5 // pred_check
        %p152 = pneg %p151
      $region14: #{tpu_custom_call.1} parent=5 // pred_check_branch
        %154 = sbr.rel (%p152) target = $region16
      $region15: #{tpu_custom_call.1} parent=5 // pred_region
        // Predicated region
        $region17: #{tpu_custom_call.1} parent=15 // pred_check
          %p155 = pneg %p50
        $region18: #{tpu_custom_call.1} parent=15 // pred_check_branch
          %157 = sbr.rel (%p155) target = $region20
        $region19: #{tpu_custom_call.1} parent=15 // pred_region
          %s158 = sand.u32 %s40, 1
          %s159 = scalar_lea.sflag [#allocation3], %s158
          %s160 = sand.u32 %s40, 1
          %s161 = smul.addr %s160, 1024
          %s162 = scalar_lea.vmem [#allocation2], %s161
          %s163 = smul.u32 256, %s25
          %165 = vsyncadd %s159, 0
          %s166 = smul.addr %s163, 4
          %s167 = scalar_lea.hbm %s0, %s166
          %s168 = sshll.u32 %s167, 4
          %s169 = int_to_ptr.hbm [resolvable:$true] %s168
          %s170 = sshll.u32 %s162, 4
          %s171 = int_to_ptr.vmem [resolvable:$true] %s170
          %176 = dma.hbm_to_vmem [thread:$0]  %s169, 16384, %s171, %s159, 64, 64, 4
        $region20: #{tpu_custom_call.1} parent=15 // pred_fallthru
          _
        // Predicated region
        $region21: #{tpu_custom_call.1} parent=15 // pred_check
          %p177 = pneg %p76
        $region22: #{tpu_custom_call.1} parent=15 // pred_check_branch
          %179 = sbr.rel (%p177) target = $region24
        $region23: #{tpu_custom_call.1} parent=15 // pred_region
          %s180 = sand.u32 %s18, 1
          %s181 = scalar_lea.sflag [#allocation6], %s180
          %s182 = sand.u32 %s66, 1
          %s183 = smul.addr %s182, 256
          %s184 = scalar_lea.vmem [#allocation5], %s183
          %s185 = smul.u32 4, %s26
          %187 = vsyncadd %s181, 0
          %s188 = smul.addr %s185, 4
          %s189 = scalar_lea.hbm %s1, %s188
          %s190 = sshll.u32 %s189, 4
          %s191 = int_to_ptr.hbm [resolvable:$true] %s190
          %s192 = sshll.u32 %s184, 4
          %s193 = int_to_ptr.vmem [resolvable:$true] %s192
          %198 = dma.hbm_to_vmem [thread:$0]  %s191, 4096, %s193, %s181, 1024, 256, 16
        $region24: #{tpu_custom_call.1} parent=15 // pred_fallthru
          _
        // Predicated region
        $region25: #{tpu_custom_call.1} parent=15 // pred_check
          %p199 = pneg %p102
        $region26: #{tpu_custom_call.1} parent=15 // pred_check_branch
          %201 = sbr.rel (%p199) target = $region28
        $region27: #{tpu_custom_call.1} parent=15 // pred_region
          %s202 = sand.u32 %s18, 1
          %s203 = scalar_lea.sflag [#allocation6], %s202
          %s204 = sand.u32 %s92, 1
          %s205 = smul.addr %s204, 4
          %s206 = scalar_lea.vmem [#allocation7], %s205
          %s207 = smul.u32 4, %s26
          %209 = vsyncadd %s203, 0
          %s210 = scalar_lea.hbm %s2, %s207
          %s212 = sshll.u32 %s210, 4
          %s213 = int_to_ptr.hbm [resolvable:$true] %s212
          %s214 = sshll.u32 %s206, 4
          %s215 = int_to_ptr.vmem [resolvable:$true] %s214
          %217 = dma.hbm_to_vmem [thread:$0]  %s213, 64, %s215, %s203
        $region28: #{tpu_custom_call.1} parent=15 // pred_fallthru
          _
      $region16: #{tpu_custom_call.1} parent=5 // pred_fallthru
        _
      %p218 = scmp.le.s32.totalorder 1, %s18
      %p219 = scmp.lt.s32.totalorder %s18, 9
      %p220 = pnand %p218, %p219
      %p221 = pneg %p220
      // Predicated region
      $region29: #{tpu_custom_call.1} parent=5 // pred_check
        _
      $region30: #{tpu_custom_call.1} parent=5 // pred_check_branch
        %223 = sbr.rel (%p220) target = $region32
      $region31: #{tpu_custom_call.1} parent=5 // pred_region
        %s224 = ssub.s32 %s18, 1
        %s225 = sand.u32 %s43, 1
        %s226 = scalar_lea.sflag [#allocation3], %s225
        %s227 = sand.u32 %s43, 1
        %s228 = smul.addr %s227, 1024
        %s229 = scalar_lea.vmem [#allocation2], %s228
        // Predicated region
        $region33: #{tpu_custom_call.1} parent=31 // pred_check
          %p230 = pneg %p56
        $region34: #{tpu_custom_call.1} parent=31 // pred_check_branch
          %232 = sbr.rel (%p230) target = $region36
        $region35: #{tpu_custom_call.1} parent=31 // pred_region
          %234 = dma.done %s226, 16384
        $region36: #{tpu_custom_call.1} parent=31 // pred_fallthru
          _
        %s235 = sand.u32 %s23, 1
        %s236 = scalar_lea.sflag [#allocation6], %s235
        %s237 = sand.u32 %s69, 1
        %s238 = smul.addr %s237, 256
        %s239 = scalar_lea.vmem [#allocation5], %s238
        // Predicated region
        $region37: #{tpu_custom_call.1} parent=31 // pred_check
          %p240 = pneg %p82
        $region38: #{tpu_custom_call.1} parent=31 // pred_check_branch
          %242 = sbr.rel (%p240) target = $region40
        $region39: #{tpu_custom_call.1} parent=31 // pred_region
          %244 = dma.done %s236, 4096
        $region40: #{tpu_custom_call.1} parent=31 // pred_fallthru
          _
        %s245 = sand.u32 %s23, 1
        %s246 = scalar_lea.sflag [#allocation6], %s245
        %s247 = sand.u32 %s95, 1
        %s248 = smul.addr %s247, 4
        %s249 = scalar_lea.vmem [#allocation7], %s248
        // Predicated region
        $region41: #{tpu_custom_call.1} parent=31 // pred_check
          %p250 = pneg %p108
        $region42: #{tpu_custom_call.1} parent=31 // pred_check_branch
          %252 = sbr.rel (%p250) target = $region44
        $region43: #{tpu_custom_call.1} parent=31 // pred_region
          %254 = dma.done %s246, 64
        $region44: #{tpu_custom_call.1} parent=31 // pred_fallthru
          _
        %s255 = sand.u32 %s43, 1
        %s256 = scalar_lea.sflag [#allocation3], %s255
        %s257 = sand.u32 %s43, 1
        %s258 = smul.addr %s257, 1024
        %s259 = scalar_lea.vmem [#allocation2], %s258
        %p260 = pneg %p56
        %p261 = pneg %p53
        %s262 = sand.u32 %s23, 1
        %s263 = scalar_lea.sflag [#allocation6], %s262
        %s264 = sand.u32 %s69, 1
        %s265 = smul.addr %s264, 256
        %s266 = scalar_lea.vmem [#allocation5], %s265
        %p267 = pneg %p82
        %p268 = pneg %p79
        %s269 = sand.u32 %s23, 1
        %s270 = scalar_lea.sflag [#allocation6], %s269
        %s271 = sand.u32 %s95, 1
        %s272 = smul.addr %s271, 4
        %s273 = scalar_lea.vmem [#allocation7], %s272
        %p274 = pneg %p108
        %p275 = pneg %p105
        %p276 = pneg %p136
        %p277 = pneg %p133
        %s278 = sand.u32 %s123, 1
        %s279 = scalar_lea.sflag [#allocation4], %s278
        %s280 = sand.u32 %s123, 1
        %s281 = smul.addr %s280, 128
        %s282 = scalar_lea.vmem [#allocation8], %s281
        %s283 = smul.u32 256, %s27
        %s284 = smul.u32 4, %s28
        %s285 = smul.u32 4, %s28
        %s286 = smul.u32 4, %s27
        %s287 = smul.u32 4, %s28
        %v288 = vld [vmem:[%s229] sm:$0xf]
        %v289 = vld [vmem:[%s229 + $0x4] sm:$0xf]
        %v290 = vld [vmem:[%s229 + $0x8] sm:$0xf]
        %v291 = vld [vmem:[%s229 + $0xc] sm:$0xf]
        %v292 = vld [vmem:[%s229 + $0x10] sm:$0xf]
        %v293 = vld [vmem:[%s229 + $0x14] sm:$0xf]
        %v294 = vld [vmem:[%s229 + $0x18] sm:$0xf]
        %v295 = vld [vmem:[%s229 + $0x1c] sm:$0xf]
        %v296 = vld [vmem:[%s229 + $0x20] sm:$0xf]
        %v297 = vld [vmem:[%s229 + $0x24] sm:$0xf]
        %v298 = vld [vmem:[%s229 + $0x28] sm:$0xf]
        %v299 = vld [vmem:[%s229 + $0x2c] sm:$0xf]
        %v300 = vld [vmem:[%s229 + $0x30] sm:$0xf]
        %v301 = vld [vmem:[%s229 + $0x34] sm:$0xf]
        %v302 = vld [vmem:[%s229 + $0x38] sm:$0xf]
        %v303 = vld [vmem:[%s229 + $0x3c] sm:$0xf]
        %v304 = vld [vmem:[%s229 + $0x40] sm:$0xf]
        %v305 = vld [vmem:[%s229 + $0x44] sm:$0xf]
        %v306 = vld [vmem:[%s229 + $0x48] sm:$0xf]
        %v307 = vld [vmem:[%s229 + $0x4c] sm:$0xf]
        %v308 = vld [vmem:[%s229 + $0x50] sm:$0xf]
        %v309 = vld [vmem:[%s229 + $0x54] sm:$0xf]
        %v310 = vld [vmem:[%s229 + $0x58] sm:$0xf]
        %v311 = vld [vmem:[%s229 + $0x5c] sm:$0xf]
        %v312 = vld [vmem:[%s229 + $0x60] sm:$0xf]
        %v313 = vld [vmem:[%s229 + $0x64] sm:$0xf]
        %v314 = vld [vmem:[%s229 + $0x68] sm:$0xf]
        %v315 = vld [vmem:[%s229 + $0x6c] sm:$0xf]
        %v316 = vld [vmem:[%s229 + $0x70] sm:$0xf]
        %v317 = vld [vmem:[%s229 + $0x74] sm:$0xf]
        %v318 = vld [vmem:[%s229 + $0x78] sm:$0xf]
        %v319 = vld [vmem:[%s229 + $0x7c] sm:$0xf]
        %v320 = vld [vmem:[%s229 + $0x80] sm:$0xf]
        %v321 = vld [vmem:[%s229 + $0x84] sm:$0xf]
        %v322 = vld [vmem:[%s229 + $0x88] sm:$0xf]
        %v323 = vld [vmem:[%s229 + $0x8c] sm:$0xf]
        %v324 = vld [vmem:[%s229 + $0x90] sm:$0xf]
        %v325 = vld [vmem:[%s229 + $0x94] sm:$0xf]
        %v326 = vld [vmem:[%s229 + $0x98] sm:$0xf]
        %v327 = vld [vmem:[%s229 + $0x9c] sm:$0xf]
        %v328 = vld [vmem:[%s229 + $0xa0] sm:$0xf]
        %v329 = vld [vmem:[%s229 + $0xa4] sm:$0xf]
        %v330 = vld [vmem:[%s229 + $0xa8] sm:$0xf]
        %v331 = vld [vmem:[%s229 + $0xac] sm:$0xf]
        %v332 = vld [vmem:[%s229 + $0xb0] sm:$0xf]
        %v333 = vld [vmem:[%s229 + $0xb4] sm:$0xf]
        %v334 = vld [vmem:[%s229 + $0xb8] sm:$0xf]
        %v335 = vld [vmem:[%s229 + $0xbc] sm:$0xf]
        %v336 = vld [vmem:[%s229 + $0xc0] sm:$0xf]
        %v337 = vld [vmem:[%s229 + $0xc4] sm:$0xf]
        %v338 = vld [vmem:[%s229 + $0xc8] sm:$0xf]
        %v339 = vld [vmem:[%s229 + $0xcc] sm:$0xf]
        %v340 = vld [vmem:[%s229 + $0xd0] sm:$0xf]
        %v341 = vld [vmem:[%s229 + $0xd4] sm:$0xf]
        %v342 = vld [vmem:[%s229 + $0xd8] sm:$0xf]
        %v343 = vld [vmem:[%s229 + $0xdc] sm:$0xf]
        %v344 = vld [vmem:[%s229 + $0xe0] sm:$0xf]
        %v345 = vld [vmem:[%s229 + $0xe4] sm:$0xf]
        %v346 = vld [vmem:[%s229 + $0xe8] sm:$0xf]
        %v347 = vld [vmem:[%s229 + $0xec] sm:$0xf]
        %v348 = vld [vmem:[%s229 + $0xf0] sm:$0xf]
        %v349 = vld [vmem:[%s229 + $0xf4] sm:$0xf]
        %v350 = vld [vmem:[%s229 + $0xf8] sm:$0xf]
        %v351 = vld [vmem:[%s229 + $0xfc] sm:$0xf]
        %v352 = vld [vmem:[%s229 + $0x100] sm:$0xf]
        %v353 = vld [vmem:[%s229 + $0x104] sm:$0xf]
        %v354 = vld [vmem:[%s229 + $0x108] sm:$0xf]
        %v355 = vld [vmem:[%s229 + $0x10c] sm:$0xf]
        %v356 = vld [vmem:[%s229 + $0x110] sm:$0xf]
        %v357 = vld [vmem:[%s229 + $0x114] sm:$0xf]
        %v358 = vld [vmem:[%s229 + $0x118] sm:$0xf]
        %v359 = vld [vmem:[%s229 + $0x11c] sm:$0xf]
        %v360 = vld [vmem:[%s229 + $0x120] sm:$0xf]
        %v361 = vld [vmem:[%s229 + $0x124] sm:$0xf]
        %v362 = vld [vmem:[%s229 + $0x128] sm:$0xf]
        %v363 = vld [vmem:[%s229 + $0x12c] sm:$0xf]
        %v364 = vld [vmem:[%s229 + $0x130] sm:$0xf]
        %v365 = vld [vmem:[%s229 + $0x134] sm:$0xf]
        %v366 = vld [vmem:[%s229 + $0x138] sm:$0xf]
        %v367 = vld [vmem:[%s229 + $0x13c] sm:$0xf]
        %v368 = vld [vmem:[%s229 + $0x140] sm:$0xf]
        %v369 = vld [vmem:[%s229 + $0x144] sm:$0xf]
        %v370 = vld [vmem:[%s229 + $0x148] sm:$0xf]
        %v371 = vld [vmem:[%s229 + $0x14c] sm:$0xf]
        %v372 = vld [vmem:[%s229 + $0x150] sm:$0xf]
        %v373 = vld [vmem:[%s229 + $0x154] sm:$0xf]
        %v374 = vld [vmem:[%s229 + $0x158] sm:$0xf]
        %v375 = vld [vmem:[%s229 + $0x15c] sm:$0xf]
        %v376 = vld [vmem:[%s229 + $0x160] sm:$0xf]
        %v377 = vld [vmem:[%s229 + $0x164] sm:$0xf]
        %v378 = vld [vmem:[%s229 + $0x168] sm:$0xf]
        %v379 = vld [vmem:[%s229 + $0x16c] sm:$0xf]
        %v380 = vld [vmem:[%s229 + $0x170] sm:$0xf]
        %v381 = vld [vmem:[%s229 + $0x174] sm:$0xf]
        %v382 = vld [vmem:[%s229 + $0x178] sm:$0xf]
        %v383 = vld [vmem:[%s229 + $0x17c] sm:$0xf]
        %v384 = vld [vmem:[%s229 + $0x180] sm:$0xf]
        %v385 = vld [vmem:[%s229 + $0x184] sm:$0xf]
        %v386 = vld [vmem:[%s229 + $0x188] sm:$0xf]
        %v387 = vld [vmem:[%s229 + $0x18c] sm:$0xf]
        %v388 = vld [vmem:[%s229 + $0x190] sm:$0xf]
        %v389 = vld [vmem:[%s229 + $0x194] sm:$0xf]
        %v390 = vld [vmem:[%s229 + $0x198] sm:$0xf]
        %v391 = vld [vmem:[%s229 + $0x19c] sm:$0xf]
        %v392 = vld [vmem:[%s229 + $0x1a0] sm:$0xf]
        %v393 = vld [vmem:[%s229 + $0x1a4] sm:$0xf]
        %v394 = vld [vmem:[%s229 + $0x1a8] sm:$0xf]
        %v395 = vld [vmem:[%s229 + $0x1ac] sm:$0xf]
        %v396 = vld [vmem:[%s229 + $0x1b0] sm:$0xf]
        %v397 = vld [vmem:[%s229 + $0x1b4] sm:$0xf]
        %v398 = vld [vmem:[%s229 + $0x1b8] sm:$0xf]
        %v399 = vld [vmem:[%s229 + $0x1bc] sm:$0xf]
        %v400 = vld [vmem:[%s229 + $0x1c0] sm:$0xf]
        %v401 = vld [vmem:[%s229 + $0x1c4] sm:$0xf]
        %v402 = vld [vmem:[%s229 + $0x1c8] sm:$0xf]
        %v403 = vld [vmem:[%s229 + $0x1cc] sm:$0xf]
        %v404 = vld [vmem:[%s229 + $0x1d0] sm:$0xf]
        %v405 = vld [vmem:[%s229 + $0x1d4] sm:$0xf]
        %v406 = vld [vmem:[%s229 + $0x1d8] sm:$0xf]
        %v407 = vld [vmem:[%s229 + $0x1dc] sm:$0xf]
        %v408 = vld [vmem:[%s229 + $0x1e0] sm:$0xf]
        %v409 = vld [vmem:[%s229 + $0x1e4] sm:$0xf]
        %v410 = vld [vmem:[%s229 + $0x1e8] sm:$0xf]
        %v411 = vld [vmem:[%s229 + $0x1ec] sm:$0xf]
        %v412 = vld [vmem:[%s229 + $0x1f0] sm:$0xf]
        %v413 = vld [vmem:[%s229 + $0x1f4] sm:$0xf]
        %v414 = vld [vmem:[%s229 + $0x1f8] sm:$0xf]
        %v415 = vld [vmem:[%s229 + $0x1fc] sm:$0xf]
        %v416 = vld [vmem:[%s229 + $0x200] sm:$0xf]
        %v417 = vld [vmem:[%s229 + $0x204] sm:$0xf]
        %v418 = vld [vmem:[%s229 + $0x208] sm:$0xf]
        %v419 = vld [vmem:[%s229 + $0x20c] sm:$0xf]
        %v420 = vld [vmem:[%s229 + $0x210] sm:$0xf]
        %v421 = vld [vmem:[%s229 + $0x214] sm:$0xf]
        %v422 = vld [vmem:[%s229 + $0x218] sm:$0xf]
        %v423 = vld [vmem:[%s229 + $0x21c] sm:$0xf]
        %v424 = vld [vmem:[%s229 + $0x220] sm:$0xf]
        %v425 = vld [vmem:[%s229 + $0x224] sm:$0xf]
        %v426 = vld [vmem:[%s229 + $0x228] sm:$0xf]
        %v427 = vld [vmem:[%s229 + $0x22c] sm:$0xf]
        %v428 = vld [vmem:[%s229 + $0x230] sm:$0xf]
        %v429 = vld [vmem:[%s229 + $0x234] sm:$0xf]
        %v430 = vld [vmem:[%s229 + $0x238] sm:$0xf]
        %v431 = vld [vmem:[%s229 + $0x23c] sm:$0xf]
        %v432 = vld [vmem:[%s229 + $0x240] sm:$0xf]
        %v433 = vld [vmem:[%s229 + $0x244] sm:$0xf]
        %v434 = vld [vmem:[%s229 + $0x248] sm:$0xf]
        %v435 = vld [vmem:[%s229 + $0x24c] sm:$0xf]
        %v436 = vld [vmem:[%s229 + $0x250] sm:$0xf]
        %v437 = vld [vmem:[%s229 + $0x254] sm:$0xf]
        %v438 = vld [vmem:[%s229 + $0x258] sm:$0xf]
        %v439 = vld [vmem:[%s229 + $0x25c] sm:$0xf]
        %v440 = vld [vmem:[%s229 + $0x260] sm:$0xf]
        %v441 = vld [vmem:[%s229 + $0x264] sm:$0xf]
        %v442 = vld [vmem:[%s229 + $0x268] sm:$0xf]
        %v443 = vld [vmem:[%s229 + $0x26c] sm:$0xf]
        %v444 = vld [vmem:[%s229 + $0x270] sm:$0xf]
        %v445 = vld [vmem:[%s229 + $0x274] sm:$0xf]
        %v446 = vld [vmem:[%s229 + $0x278] sm:$0xf]
        %v447 = vld [vmem:[%s229 + $0x27c] sm:$0xf]
        %v448 = vld [vmem:[%s229 + $0x280] sm:$0xf]
        %v449 = vld [vmem:[%s229 + $0x284] sm:$0xf]
        %v450 = vld [vmem:[%s229 + $0x288] sm:$0xf]
        %v451 = vld [vmem:[%s229 + $0x28c] sm:$0xf]
        %v452 = vld [vmem:[%s229 + $0x290] sm:$0xf]
        %v453 = vld [vmem:[%s229 + $0x294] sm:$0xf]
        %v454 = vld [vmem:[%s229 + $0x298] sm:$0xf]
        %v455 = vld [vmem:[%s229 + $0x29c] sm:$0xf]
        %v456 = vld [vmem:[%s229 + $0x2a0] sm:$0xf]
        %v457 = vld [vmem:[%s229 + $0x2a4] sm:$0xf]
        %v458 = vld [vmem:[%s229 + $0x2a8] sm:$0xf]
        %v459 = vld [vmem:[%s229 + $0x2ac] sm:$0xf]
        %v460 = vld [vmem:[%s229 + $0x2b0] sm:$0xf]
        %v461 = vld [vmem:[%s229 + $0x2b4] sm:$0xf]
        %v462 = vld [vmem:[%s229 + $0x2b8] sm:$0xf]
        %v463 = vld [vmem:[%s229 + $0x2bc] sm:$0xf]
        %v464 = vld [vmem:[%s229 + $0x2c0] sm:$0xf]
        %v465 = vld [vmem:[%s229 + $0x2c4] sm:$0xf]
        %v466 = vld [vmem:[%s229 + $0x2c8] sm:$0xf]
        %v467 = vld [vmem:[%s229 + $0x2cc] sm:$0xf]
        %v468 = vld [vmem:[%s229 + $0x2d0] sm:$0xf]
        %v469 = vld [vmem:[%s229 + $0x2d4] sm:$0xf]
        %v470 = vld [vmem:[%s229 + $0x2d8] sm:$0xf]
        %v471 = vld [vmem:[%s229 + $0x2dc] sm:$0xf]
        %v472 = vld [vmem:[%s229 + $0x2e0] sm:$0xf]
        %v473 = vld [vmem:[%s229 + $0x2e4] sm:$0xf]
        %v474 = vld [vmem:[%s229 + $0x2e8] sm:$0xf]
        %v475 = vld [vmem:[%s229 + $0x2ec] sm:$0xf]
        %v476 = vld [vmem:[%s229 + $0x2f0] sm:$0xf]
        %v477 = vld [vmem:[%s229 + $0x2f4] sm:$0xf]
        %v478 = vld [vmem:[%s229 + $0x2f8] sm:$0xf]
        %v479 = vld [vmem:[%s229 + $0x2fc] sm:$0xf]
        %v480 = vld [vmem:[%s229 + $0x300] sm:$0xf]
        %v481 = vld [vmem:[%s229 + $0x304] sm:$0xf]
        %v482 = vld [vmem:[%s229 + $0x308] sm:$0xf]
        %v483 = vld [vmem:[%s229 + $0x30c] sm:$0xf]
        %v484 = vld [vmem:[%s229 + $0x310] sm:$0xf]
        %v485 = vld [vmem:[%s229 + $0x314] sm:$0xf]
        %v486 = vld [vmem:[%s229 + $0x318] sm:$0xf]
        %v487 = vld [vmem:[%s229 + $0x31c] sm:$0xf]
        %v488 = vld [vmem:[%s229 + $0x320] sm:$0xf]
        %v489 = vld [vmem:[%s229 + $0x324] sm:$0xf]
        %v490 = vld [vmem:[%s229 + $0x328] sm:$0xf]
        %v491 = vld [vmem:[%s229 + $0x32c] sm:$0xf]
        %v492 = vld [vmem:[%s229 + $0x330] sm:$0xf]
        %v493 = vld [vmem:[%s229 + $0x334] sm:$0xf]
        %v494 = vld [vmem:[%s229 + $0x338] sm:$0xf]
        %v495 = vld [vmem:[%s229 + $0x33c] sm:$0xf]
        %v496 = vld [vmem:[%s229 + $0x340] sm:$0xf]
        %v497 = vld [vmem:[%s229 + $0x344] sm:$0xf]
        %v498 = vld [vmem:[%s229 + $0x348] sm:$0xf]
        %v499 = vld [vmem:[%s229 + $0x34c] sm:$0xf]
        %v500 = vld [vmem:[%s229 + $0x350] sm:$0xf]
        %v501 = vld [vmem:[%s229 + $0x354] sm:$0xf]
        %v502 = vld [vmem:[%s229 + $0x358] sm:$0xf]
        %v503 = vld [vmem:[%s229 + $0x35c] sm:$0xf]
        %v504 = vld [vmem:[%s229 + $0x360] sm:$0xf]
        %v505 = vld [vmem:[%s229 + $0x364] sm:$0xf]
        %v506 = vld [vmem:[%s229 + $0x368] sm:$0xf]
        %v507 = vld [vmem:[%s229 + $0x36c] sm:$0xf]
        %v508 = vld [vmem:[%s229 + $0x370] sm:$0xf]
        %v509 = vld [vmem:[%s229 + $0x374] sm:$0xf]
        %v510 = vld [vmem:[%s229 + $0x378] sm:$0xf]
        %v511 = vld [vmem:[%s229 + $0x37c] sm:$0xf]
        %v512 = vld [vmem:[%s229 + $0x380] sm:$0xf]
        %v513 = vld [vmem:[%s229 + $0x384] sm:$0xf]
        %v514 = vld [vmem:[%s229 + $0x388] sm:$0xf]
        %v515 = vld [vmem:[%s229 + $0x38c] sm:$0xf]
        %v516 = vld [vmem:[%s229 + $0x390] sm:$0xf]
        %v517 = vld [vmem:[%s229 + $0x394] sm:$0xf]
        %v518 = vld [vmem:[%s229 + $0x398] sm:$0xf]
        %v519 = vld [vmem:[%s229 + $0x39c] sm:$0xf]
        %v520 = vld [vmem:[%s229 + $0x3a0] sm:$0xf]
        %v521 = vld [vmem:[%s229 + $0x3a4] sm:$0xf]
        %v522 = vld [vmem:[%s229 + $0x3a8] sm:$0xf]
        %v523 = vld [vmem:[%s229 + $0x3ac] sm:$0xf]
        %v524 = vld [vmem:[%s229 + $0x3b0] sm:$0xf]
        %v525 = vld [vmem:[%s229 + $0x3b4] sm:$0xf]
        %v526 = vld [vmem:[%s229 + $0x3b8] sm:$0xf]
        %v527 = vld [vmem:[%s229 + $0x3bc] sm:$0xf]
        %v528 = vld [vmem:[%s229 + $0x3c0] sm:$0xf]
        %v529 = vld [vmem:[%s229 + $0x3c4] sm:$0xf]
        %v530 = vld [vmem:[%s229 + $0x3c8] sm:$0xf]
        %v531 = vld [vmem:[%s229 + $0x3cc] sm:$0xf]
        %v532 = vld [vmem:[%s229 + $0x3d0] sm:$0xf]
        %v533 = vld [vmem:[%s229 + $0x3d4] sm:$0xf]
        %v534 = vld [vmem:[%s229 + $0x3d8] sm:$0xf]
        %v535 = vld [vmem:[%s229 + $0x3dc] sm:$0xf]
        %v536 = vld [vmem:[%s229 + $0x3e0] sm:$0xf]
        %v537 = vld [vmem:[%s229 + $0x3e4] sm:$0xf]
        %v538 = vld [vmem:[%s229 + $0x3e8] sm:$0xf]
        %v539 = vld [vmem:[%s229 + $0x3ec] sm:$0xf]
        %v540 = vld [vmem:[%s229 + $0x3f0] sm:$0xf]
        %v541 = vld [vmem:[%s229 + $0x3f4] sm:$0xf]
        %v542 = vld [vmem:[%s229 + $0x3f8] sm:$0xf]
        %v543 = vld [vmem:[%s229 + $0x3fc] sm:$0xf]
        %v544 = vld [vmem:[%s239] sm:$0xff]
        %v545 = vld [vmem:[%s239 + $0x8] sm:$0xff]
        %v546 = vld [vmem:[%s239 + $0x10] sm:$0xff]
        %v547 = vld [vmem:[%s239 + $0x18] sm:$0xff]
        %v548 = vld [vmem:[%s239 + $0x20] sm:$0xff]
        %v549 = vld [vmem:[%s239 + $0x28] sm:$0xff]
        %v550 = vld [vmem:[%s239 + $0x30] sm:$0xff]
        %v551 = vld [vmem:[%s239 + $0x38] sm:$0xff]
        %v552 = vld [vmem:[%s239 + $0x40] sm:$0xff]
        %v553 = vld [vmem:[%s239 + $0x48] sm:$0xff]
        %v554 = vld [vmem:[%s239 + $0x50] sm:$0xff]
        %v555 = vld [vmem:[%s239 + $0x58] sm:$0xff]
        %v556 = vld [vmem:[%s239 + $0x60] sm:$0xff]
        %v557 = vld [vmem:[%s239 + $0x68] sm:$0xff]
        %v558 = vld [vmem:[%s239 + $0x70] sm:$0xff]
        %v559 = vld [vmem:[%s239 + $0x78] sm:$0xff]
        %v560 = vld [vmem:[%s239 + $0x80] sm:$0xff]
        %v561 = vld [vmem:[%s239 + $0x88] sm:$0xff]
        %v562 = vld [vmem:[%s239 + $0x90] sm:$0xff]
        %v563 = vld [vmem:[%s239 + $0x98] sm:$0xff]
        %v564 = vld [vmem:[%s239 + $0xa0] sm:$0xff]
        %v565 = vld [vmem:[%s239 + $0xa8] sm:$0xff]
        %v566 = vld [vmem:[%s239 + $0xb0] sm:$0xff]
        %v567 = vld [vmem:[%s239 + $0xb8] sm:$0xff]
        %v568 = vld [vmem:[%s239 + $0xc0] sm:$0xff]
        %v569 = vld [vmem:[%s239 + $0xc8] sm:$0xff]
        %v570 = vld [vmem:[%s239 + $0xd0] sm:$0xff]
        %v571 = vld [vmem:[%s239 + $0xd8] sm:$0xff]
        %v572 = vld [vmem:[%s239 + $0xe0] sm:$0xff]
        %v573 = vld [vmem:[%s239 + $0xe8] sm:$0xff]
        %v574 = vld [vmem:[%s239 + $0xf0] sm:$0xff]
        %v575 = vld [vmem:[%s239 + $0xf8] sm:$0xff]
        %v576 = vld [vmem:[%s249] sm:$0xf]
        %v578 = vperm.slane %v576, 0
        %v579 = vperm.slane %v576, 1
        %v580 = vperm.slane %v576, 2
        %v581 = vperm.slane %v576, 3
        %v842 = vunpack.c.l.b16 %v288
        %v843 = vunpack.c.l.b16 %v289
        %v844 = vunpack.c.l.b16 %v290
        %v845 = vunpack.c.l.b16 %v291
        %v846 = vunpack.c.l.b16 %v292
        %v847 = vunpack.c.l.b16 %v293
        %v848 = vunpack.c.l.b16 %v294
        %v849 = vunpack.c.l.b16 %v295
        %v850 = vunpack.c.l.b16 %v296
        %v851 = vunpack.c.l.b16 %v297
        %v852 = vunpack.c.l.b16 %v298
        %v853 = vunpack.c.l.b16 %v299
        %v854 = vunpack.c.l.b16 %v300
        %v855 = vunpack.c.l.b16 %v301
        %v856 = vunpack.c.l.b16 %v302
        %v857 = vunpack.c.l.b16 %v303
        %v858 = vunpack.c.l.b16 %v304
        %v859 = vunpack.c.l.b16 %v305
        %v860 = vunpack.c.l.b16 %v306
        %v861 = vunpack.c.l.b16 %v307
        %v862 = vunpack.c.l.b16 %v308
        %v863 = vunpack.c.l.b16 %v309
        %v864 = vunpack.c.l.b16 %v310
        %v865 = vunpack.c.l.b16 %v311
        %v866 = vunpack.c.l.b16 %v312
        %v867 = vunpack.c.l.b16 %v313
        %v868 = vunpack.c.l.b16 %v314
        %v869 = vunpack.c.l.b16 %v315
        %v870 = vunpack.c.l.b16 %v316
        %v871 = vunpack.c.l.b16 %v317
        %v872 = vunpack.c.l.b16 %v318
        %v873 = vunpack.c.l.b16 %v319
        %v874 = vunpack.c.l.b16 %v320
        %v875 = vunpack.c.l.b16 %v321
        %v876 = vunpack.c.l.b16 %v322
        %v877 = vunpack.c.l.b16 %v323
        %v878 = vunpack.c.l.b16 %v324
        %v879 = vunpack.c.l.b16 %v325
        %v880 = vunpack.c.l.b16 %v326
        %v881 = vunpack.c.l.b16 %v327
        %v882 = vunpack.c.l.b16 %v328
        %v883 = vunpack.c.l.b16 %v329
        %v884 = vunpack.c.l.b16 %v330
        %v885 = vunpack.c.l.b16 %v331
        %v886 = vunpack.c.l.b16 %v332
        %v887 = vunpack.c.l.b16 %v333
        %v888 = vunpack.c.l.b16 %v334
        %v889 = vunpack.c.l.b16 %v335
        %v890 = vunpack.c.l.b16 %v336
        %v891 = vunpack.c.l.b16 %v337
        %v892 = vunpack.c.l.b16 %v338
        %v893 = vunpack.c.l.b16 %v339
        %v894 = vunpack.c.l.b16 %v340
        %v895 = vunpack.c.l.b16 %v341
        %v896 = vunpack.c.l.b16 %v342
        %v897 = vunpack.c.l.b16 %v343
        %v898 = vunpack.c.l.b16 %v344
        %v899 = vunpack.c.l.b16 %v345
        %v900 = vunpack.c.l.b16 %v346
        %v901 = vunpack.c.l.b16 %v347
        %v902 = vunpack.c.l.b16 %v348
        %v903 = vunpack.c.l.b16 %v349
        %v904 = vunpack.c.l.b16 %v350
        %v905 = vunpack.c.l.b16 %v351
        %v906 = vunpack.c.l.b16 %v352
        %v907 = vunpack.c.l.b16 %v353
        %v908 = vunpack.c.l.b16 %v354
        %v909 = vunpack.c.l.b16 %v355
        %v910 = vunpack.c.l.b16 %v356
        %v911 = vunpack.c.l.b16 %v357
        %v912 = vunpack.c.l.b16 %v358
        %v913 = vunpack.c.l.b16 %v359
        %v914 = vunpack.c.l.b16 %v360
        %v915 = vunpack.c.l.b16 %v361
        %v916 = vunpack.c.l.b16 %v362
        %v917 = vunpack.c.l.b16 %v363
        %v918 = vunpack.c.l.b16 %v364
        %v919 = vunpack.c.l.b16 %v365
        %v920 = vunpack.c.l.b16 %v366
        %v921 = vunpack.c.l.b16 %v367
        %v922 = vunpack.c.l.b16 %v368
        %v923 = vunpack.c.l.b16 %v369
        %v924 = vunpack.c.l.b16 %v370
        %v925 = vunpack.c.l.b16 %v371
        %v926 = vunpack.c.l.b16 %v372
        %v927 = vunpack.c.l.b16 %v373
        %v928 = vunpack.c.l.b16 %v374
        %v929 = vunpack.c.l.b16 %v375
        %v930 = vunpack.c.l.b16 %v376
        %v931 = vunpack.c.l.b16 %v377
        %v932 = vunpack.c.l.b16 %v378
        %v933 = vunpack.c.l.b16 %v379
        %v934 = vunpack.c.l.b16 %v380
        %v935 = vunpack.c.l.b16 %v381
        %v936 = vunpack.c.l.b16 %v382
        %v937 = vunpack.c.l.b16 %v383
        %v938 = vunpack.c.l.b16 %v384
        %v939 = vunpack.c.l.b16 %v385
        %v940 = vunpack.c.l.b16 %v386
        %v941 = vunpack.c.l.b16 %v387
        %v942 = vunpack.c.l.b16 %v388
        %v943 = vunpack.c.l.b16 %v389
        %v944 = vunpack.c.l.b16 %v390
        %v945 = vunpack.c.l.b16 %v391
        %v946 = vunpack.c.l.b16 %v392
        %v947 = vunpack.c.l.b16 %v393
        %v948 = vunpack.c.l.b16 %v394
        %v949 = vunpack.c.l.b16 %v395
        %v950 = vunpack.c.l.b16 %v396
        %v951 = vunpack.c.l.b16 %v397
        %v952 = vunpack.c.l.b16 %v398
        %v953 = vunpack.c.l.b16 %v399
        %v954 = vunpack.c.l.b16 %v400
        %v955 = vunpack.c.l.b16 %v401
        %v956 = vunpack.c.l.b16 %v402
        %v957 = vunpack.c.l.b16 %v403
        %v958 = vunpack.c.l.b16 %v404
        %v959 = vunpack.c.l.b16 %v405
        %v960 = vunpack.c.l.b16 %v406
        %v961 = vunpack.c.l.b16 %v407
        %v962 = vunpack.c.l.b16 %v408
        %v963 = vunpack.c.l.b16 %v409
        %v964 = vunpack.c.l.b16 %v410
        %v965 = vunpack.c.l.b16 %v411
        %v966 = vunpack.c.l.b16 %v412
        %v967 = vunpack.c.l.b16 %v413
        %v968 = vunpack.c.l.b16 %v414
        %v969 = vunpack.c.l.b16 %v415
        %v970 = vunpack.c.l.b16 %v416
        %v971 = vunpack.c.l.b16 %v417
        %v972 = vunpack.c.l.b16 %v418
        %v973 = vunpack.c.l.b16 %v419
        %v974 = vunpack.c.l.b16 %v420
        %v975 = vunpack.c.l.b16 %v421
        %v976 = vunpack.c.l.b16 %v422
        %v977 = vunpack.c.l.b16 %v423
        %v978 = vunpack.c.l.b16 %v424
        %v979 = vunpack.c.l.b16 %v425
        %v980 = vunpack.c.l.b16 %v426
        %v981 = vunpack.c.l.b16 %v427
        %v982 = vunpack.c.l.b16 %v428
        %v983 = vunpack.c.l.b16 %v429
        %v984 = vunpack.c.l.b16 %v430
        %v985 = vunpack.c.l.b16 %v431
        %v986 = vunpack.c.l.b16 %v432
        %v987 = vunpack.c.l.b16 %v433
        %v988 = vunpack.c.l.b16 %v434
        %v989 = vunpack.c.l.b16 %v435
        %v990 = vunpack.c.l.b16 %v436
        %v991 = vunpack.c.l.b16 %v437
        %v992 = vunpack.c.l.b16 %v438
        %v993 = vunpack.c.l.b16 %v439
        %v994 = vunpack.c.l.b16 %v440
        %v995 = vunpack.c.l.b16 %v441
        %v996 = vunpack.c.l.b16 %v442
        %v997 = vunpack.c.l.b16 %v443
        %v998 = vunpack.c.l.b16 %v444
        %v999 = vunpack.c.l.b16 %v445
        %v1000 = vunpack.c.l.b16 %v446
        %v1001 = vunpack.c.l.b16 %v447
        %v1002 = vunpack.c.l.b16 %v448
        %v1003 = vunpack.c.l.b16 %v449
        %v1004 = vunpack.c.l.b16 %v450
        %v1005 = vunpack.c.l.b16 %v451
        %v1006 = vunpack.c.l.b16 %v452
        %v1007 = vunpack.c.l.b16 %v453
        %v1008 = vunpack.c.l.b16 %v454
        %v1009 = vunpack.c.l.b16 %v455
        %v1010 = vunpack.c.l.b16 %v456
        %v1011 = vunpack.c.l.b16 %v457
        %v1012 = vunpack.c.l.b16 %v458
        %v1013 = vunpack.c.l.b16 %v459
        %v1014 = vunpack.c.l.b16 %v460
        %v1015 = vunpack.c.l.b16 %v461
        %v1016 = vunpack.c.l.b16 %v462
        %v1017 = vunpack.c.l.b16 %v463
        %v1018 = vunpack.c.l.b16 %v464
        %v1019 = vunpack.c.l.b16 %v465
        %v1020 = vunpack.c.l.b16 %v466
        %v1021 = vunpack.c.l.b16 %v467
        %v1022 = vunpack.c.l.b16 %v468
        %v1023 = vunpack.c.l.b16 %v469
        %v1024 = vunpack.c.l.b16 %v470
        %v1025 = vunpack.c.l.b16 %v471
        %v1026 = vunpack.c.l.b16 %v472
        %v1027 = vunpack.c.l.b16 %v473
        %v1028 = vunpack.c.l.b16 %v474
        %v1029 = vunpack.c.l.b16 %v475
        %v1030 = vunpack.c.l.b16 %v476
        %v1031 = vunpack.c.l.b16 %v477
        %v1032 = vunpack.c.l.b16 %v478
        %v1033 = vunpack.c.l.b16 %v479
        %v1034 = vunpack.c.l.b16 %v480
        %v1035 = vunpack.c.l.b16 %v481
        %v1036 = vunpack.c.l.b16 %v482
        %v1037 = vunpack.c.l.b16 %v483
        %v1038 = vunpack.c.l.b16 %v484
        %v1039 = vunpack.c.l.b16 %v485
        %v1040 = vunpack.c.l.b16 %v486
        %v1041 = vunpack.c.l.b16 %v487
        %v1042 = vunpack.c.l.b16 %v488
        %v1043 = vunpack.c.l.b16 %v489
        %v1044 = vunpack.c.l.b16 %v490
        %v1045 = vunpack.c.l.b16 %v491
        %v1046 = vunpack.c.l.b16 %v492
        %v1047 = vunpack.c.l.b16 %v493
        %v1048 = vunpack.c.l.b16 %v494
        %v1049 = vunpack.c.l.b16 %v495
        %v1050 = vunpack.c.l.b16 %v496
        %v1051 = vunpack.c.l.b16 %v497
        %v1052 = vunpack.c.l.b16 %v498
        %v1053 = vunpack.c.l.b16 %v499
        %v1054 = vunpack.c.l.b16 %v500
        %v1055 = vunpack.c.l.b16 %v501
        %v1056 = vunpack.c.l.b16 %v502
        %v1057 = vunpack.c.l.b16 %v503
        %v1058 = vunpack.c.l.b16 %v504
        %v1059 = vunpack.c.l.b16 %v505
        %v1060 = vunpack.c.l.b16 %v506
        %v1061 = vunpack.c.l.b16 %v507
        %v1062 = vunpack.c.l.b16 %v508
        %v1063 = vunpack.c.l.b16 %v509
        %v1064 = vunpack.c.l.b16 %v510
        %v1065 = vunpack.c.l.b16 %v511
        %v1066 = vunpack.c.l.b16 %v512
        %v1067 = vunpack.c.l.b16 %v513
        %v1068 = vunpack.c.l.b16 %v514
        %v1069 = vunpack.c.l.b16 %v515
        %v1070 = vunpack.c.l.b16 %v516
        %v1071 = vunpack.c.l.b16 %v517
        %v1072 = vunpack.c.l.b16 %v518
        %v1073 = vunpack.c.l.b16 %v519
        %v1074 = vunpack.c.l.b16 %v520
        %v1075 = vunpack.c.l.b16 %v521
        %v1076 = vunpack.c.l.b16 %v522
        %v1077 = vunpack.c.l.b16 %v523
        %v1078 = vunpack.c.l.b16 %v524
        %v1079 = vunpack.c.l.b16 %v525
        %v1080 = vunpack.c.l.b16 %v526
        %v1081 = vunpack.c.l.b16 %v527
        %v1082 = vunpack.c.l.b16 %v528
        %v1083 = vunpack.c.l.b16 %v529
        %v1084 = vunpack.c.l.b16 %v530
        %v1085 = vunpack.c.l.b16 %v531
        %v1086 = vunpack.c.l.b16 %v532
        %v1087 = vunpack.c.l.b16 %v533
        %v1088 = vunpack.c.l.b16 %v534
        %v1089 = vunpack.c.l.b16 %v535
        %v1090 = vunpack.c.l.b16 %v536
        %v1091 = vunpack.c.l.b16 %v537
        %v1092 = vunpack.c.l.b16 %v538
        %v1093 = vunpack.c.l.b16 %v539
        %v1094 = vunpack.c.l.b16 %v540
        %v1095 = vunpack.c.l.b16 %v541
        %v1096 = vunpack.c.l.b16 %v542
        %v1097 = vunpack.c.l.b16 %v543
        %v1098 = vpack.c.b16 %v843, %v842
        %v1099 = vpack.c.b16 %v845, %v844
        %v1100 = vpack.c.b16 %v847, %v846
        %v1101 = vpack.c.b16 %v849, %v848
        %v1102 = vpack.c.b16 %v851, %v850
        %v1103 = vpack.c.b16 %v853, %v852
        %v1104 = vpack.c.b16 %v855, %v854
        %v1105 = vpack.c.b16 %v857, %v856
        %v1106 = vpack.c.b16 %v859, %v858
        %v1107 = vpack.c.b16 %v861, %v860
        %v1108 = vpack.c.b16 %v863, %v862
        %v1109 = vpack.c.b16 %v865, %v864
        %v1110 = vpack.c.b16 %v867, %v866
        %v1111 = vpack.c.b16 %v869, %v868
        %v1112 = vpack.c.b16 %v871, %v870
        %v1113 = vpack.c.b16 %v873, %v872
        %v1114 = vpack.c.b16 %v875, %v874
        %v1115 = vpack.c.b16 %v877, %v876
        %v1116 = vpack.c.b16 %v879, %v878
        %v1117 = vpack.c.b16 %v881, %v880
        %v1118 = vpack.c.b16 %v883, %v882
        %v1119 = vpack.c.b16 %v885, %v884
        %v1120 = vpack.c.b16 %v887, %v886
        %v1121 = vpack.c.b16 %v889, %v888
        %v1122 = vpack.c.b16 %v891, %v890
        %v1123 = vpack.c.b16 %v893, %v892
        %v1124 = vpack.c.b16 %v895, %v894
        %v1125 = vpack.c.b16 %v897, %v896
        %v1126 = vpack.c.b16 %v899, %v898
        %v1127 = vpack.c.b16 %v901, %v900
        %v1128 = vpack.c.b16 %v903, %v902
        %v1129 = vpack.c.b16 %v905, %v904
        %v1130 = vpack.c.b16 %v907, %v906
        %v1131 = vpack.c.b16 %v909, %v908
        %v1132 = vpack.c.b16 %v911, %v910
        %v1133 = vpack.c.b16 %v913, %v912
        %v1134 = vpack.c.b16 %v915, %v914
        %v1135 = vpack.c.b16 %v917, %v916
        %v1136 = vpack.c.b16 %v919, %v918
        %v1137 = vpack.c.b16 %v921, %v920
        %v1138 = vpack.c.b16 %v923, %v922
        %v1139 = vpack.c.b16 %v925, %v924
        %v1140 = vpack.c.b16 %v927, %v926
        %v1141 = vpack.c.b16 %v929, %v928
        %v1142 = vpack.c.b16 %v931, %v930
        %v1143 = vpack.c.b16 %v933, %v932
        %v1144 = vpack.c.b16 %v935, %v934
        %v1145 = vpack.c.b16 %v937, %v936
        %v1146 = vpack.c.b16 %v939, %v938
        %v1147 = vpack.c.b16 %v941, %v940
        %v1148 = vpack.c.b16 %v943, %v942
        %v1149 = vpack.c.b16 %v945, %v944
        %v1150 = vpack.c.b16 %v947, %v946
        %v1151 = vpack.c.b16 %v949, %v948
        %v1152 = vpack.c.b16 %v951, %v950
        %v1153 = vpack.c.b16 %v953, %v952
        %v1154 = vpack.c.b16 %v955, %v954
        %v1155 = vpack.c.b16 %v957, %v956
        %v1156 = vpack.c.b16 %v959, %v958
        %v1157 = vpack.c.b16 %v961, %v960
        %v1158 = vpack.c.b16 %v963, %v962
        %v1159 = vpack.c.b16 %v965, %v964
        %v1160 = vpack.c.b16 %v967, %v966
        %v1161 = vpack.c.b16 %v969, %v968
        %v1162 = vpack.c.b16 %v971, %v970
        %v1163 = vpack.c.b16 %v973, %v972
        %v1164 = vpack.c.b16 %v975, %v974
        %v1165 = vpack.c.b16 %v977, %v976
        %v1166 = vpack.c.b16 %v979, %v978
        %v1167 = vpack.c.b16 %v981, %v980
        %v1168 = vpack.c.b16 %v983, %v982
        %v1169 = vpack.c.b16 %v985, %v984
        %v1170 = vpack.c.b16 %v987, %v986
        %v1171 = vpack.c.b16 %v989, %v988
        %v1172 = vpack.c.b16 %v991, %v990
        %v1173 = vpack.c.b16 %v993, %v992
        %v1174 = vpack.c.b16 %v995, %v994
        %v1175 = vpack.c.b16 %v997, %v996
        %v1176 = vpack.c.b16 %v999, %v998
        %v1177 = vpack.c.b16 %v1001, %v1000
        %v1178 = vpack.c.b16 %v1003, %v1002
        %v1179 = vpack.c.b16 %v1005, %v1004
        %v1180 = vpack.c.b16 %v1007, %v1006
        %v1181 = vpack.c.b16 %v1009, %v1008
        %v1182 = vpack.c.b16 %v1011, %v1010
        %v1183 = vpack.c.b16 %v1013, %v1012
        %v1184 = vpack.c.b16 %v1015, %v1014
        %v1185 = vpack.c.b16 %v1017, %v1016
        %v1186 = vpack.c.b16 %v1019, %v1018
        %v1187 = vpack.c.b16 %v1021, %v1020
        %v1188 = vpack.c.b16 %v1023, %v1022
        %v1189 = vpack.c.b16 %v1025, %v1024
        %v1190 = vpack.c.b16 %v1027, %v1026
        %v1191 = vpack.c.b16 %v1029, %v1028
        %v1192 = vpack.c.b16 %v1031, %v1030
        %v1193 = vpack.c.b16 %v1033, %v1032
        %v1194 = vpack.c.b16 %v1035, %v1034
        %v1195 = vpack.c.b16 %v1037, %v1036
        %v1196 = vpack.c.b16 %v1039, %v1038
        %v1197 = vpack.c.b16 %v1041, %v1040
        %v1198 = vpack.c.b16 %v1043, %v1042
        %v1199 = vpack.c.b16 %v1045, %v1044
        %v1200 = vpack.c.b16 %v1047, %v1046
        %v1201 = vpack.c.b16 %v1049, %v1048
        %v1202 = vpack.c.b16 %v1051, %v1050
        %v1203 = vpack.c.b16 %v1053, %v1052
        %v1204 = vpack.c.b16 %v1055, %v1054
        %v1205 = vpack.c.b16 %v1057, %v1056
        %v1206 = vpack.c.b16 %v1059, %v1058
        %v1207 = vpack.c.b16 %v1061, %v1060
        %v1208 = vpack.c.b16 %v1063, %v1062
        %v1209 = vpack.c.b16 %v1065, %v1064
        %v1210 = vpack.c.b16 %v1067, %v1066
        %v1211 = vpack.c.b16 %v1069, %v1068
        %v1212 = vpack.c.b16 %v1071, %v1070
        %v1213 = vpack.c.b16 %v1073, %v1072
        %v1214 = vpack.c.b16 %v1075, %v1074
        %v1215 = vpack.c.b16 %v1077, %v1076
        %v1216 = vpack.c.b16 %v1079, %v1078
        %v1217 = vpack.c.b16 %v1081, %v1080
        %v1218 = vpack.c.b16 %v1083, %v1082
        %v1219 = vpack.c.b16 %v1085, %v1084
        %v1220 = vpack.c.b16 %v1087, %v1086
        %v1221 = vpack.c.b16 %v1089, %v1088
        %v1222 = vpack.c.b16 %v1091, %v1090
        %v1223 = vpack.c.b16 %v1093, %v1092
        %v1224 = vpack.c.b16 %v1095, %v1094
        %v1225 = vpack.c.b16 %v1097, %v1096
        %v1386 = vunpack.c.l.b16 %v544
        %v1387 = vunpack.c.h.b16 %v544
        %v1388 = vunpack.c.l.b16 %v545
        %v1389 = vunpack.c.h.b16 %v545
        %v1390 = vunpack.c.l.b16 %v546
        %v1391 = vunpack.c.h.b16 %v546
        %v1392 = vunpack.c.l.b16 %v547
        %v1393 = vunpack.c.h.b16 %v547
        %v1394 = vunpack.c.l.b16 %v548
        %v1395 = vunpack.c.h.b16 %v548
        %v1396 = vunpack.c.l.b16 %v549
        %v1397 = vunpack.c.h.b16 %v549
        %v1398 = vunpack.c.l.b16 %v550
        %v1399 = vunpack.c.h.b16 %v550
        %v1400 = vunpack.c.l.b16 %v551
        %v1401 = vunpack.c.h.b16 %v551
        %v1402 = vunpack.c.l.b16 %v552
        %v1403 = vunpack.c.h.b16 %v552
        %v1404 = vunpack.c.l.b16 %v553
        %v1405 = vunpack.c.h.b16 %v553
        %v1406 = vunpack.c.l.b16 %v554
        %v1407 = vunpack.c.h.b16 %v554
        %v1408 = vunpack.c.l.b16 %v555
        %v1409 = vunpack.c.h.b16 %v555
        %v1410 = vunpack.c.l.b16 %v556
        %v1411 = vunpack.c.h.b16 %v556
        %v1412 = vunpack.c.l.b16 %v557
        %v1413 = vunpack.c.h.b16 %v557
        %v1414 = vunpack.c.l.b16 %v558
        %v1415 = vunpack.c.h.b16 %v558
        %v1416 = vunpack.c.l.b16 %v559
        %v1417 = vunpack.c.h.b16 %v559
        %v1418 = vunpack.c.l.b16 %v560
        %v1419 = vunpack.c.h.b16 %v560
        %v1420 = vunpack.c.l.b16 %v561
        %v1421 = vunpack.c.h.b16 %v561
        %v1422 = vunpack.c.l.b16 %v562
        %v1423 = vunpack.c.h.b16 %v562
        %v1424 = vunpack.c.l.b16 %v563
        %v1425 = vunpack.c.h.b16 %v563
        %v1426 = vunpack.c.l.b16 %v564
        %v1427 = vunpack.c.h.b16 %v564
        %v1428 = vunpack.c.l.b16 %v565
        %v1429 = vunpack.c.h.b16 %v565
        %v1430 = vunpack.c.l.b16 %v566
        %v1431 = vunpack.c.h.b16 %v566
        %v1432 = vunpack.c.l.b16 %v567
        %v1433 = vunpack.c.h.b16 %v567
        %v1434 = vunpack.c.l.b16 %v568
        %v1435 = vunpack.c.h.b16 %v568
        %v1436 = vunpack.c.l.b16 %v569
        %v1437 = vunpack.c.h.b16 %v569
        %v1438 = vunpack.c.l.b16 %v570
        %v1439 = vunpack.c.h.b16 %v570
        %v1440 = vunpack.c.l.b16 %v571
        %v1441 = vunpack.c.h.b16 %v571
        %v1442 = vunpack.c.l.b16 %v572
        %v1443 = vunpack.c.h.b16 %v572
        %v1444 = vunpack.c.l.b16 %v573
        %v1445 = vunpack.c.h.b16 %v573
        %v1446 = vunpack.c.l.b16 %v574
        %v1447 = vunpack.c.h.b16 %v574
        %v1448 = vunpack.c.l.b16 %v575
        %v1449 = vunpack.c.h.b16 %v575
        %v1450 = vpack.c.b16 %v1390, %v1386
        %v1451 = vpack.c.b16 %v1391, %v1387
        %v1452 = vpack.c.b16 %v1392, %v1388
        %v1453 = vpack.c.b16 %v1393, %v1389
        %v1454 = vpack.c.b16 %v1398, %v1394
        %v1455 = vpack.c.b16 %v1399, %v1395
        %v1456 = vpack.c.b16 %v1400, %v1396
        %v1457 = vpack.c.b16 %v1401, %v1397
        %v1458 = vpack.c.b16 %v1406, %v1402
        %v1459 = vpack.c.b16 %v1407, %v1403
        %v1460 = vpack.c.b16 %v1408, %v1404
        %v1461 = vpack.c.b16 %v1409, %v1405
        %v1462 = vpack.c.b16 %v1414, %v1410
        %v1463 = vpack.c.b16 %v1415, %v1411
        %v1464 = vpack.c.b16 %v1416, %v1412
        %v1465 = vpack.c.b16 %v1417, %v1413
        %v1466 = vpack.c.b16 %v1422, %v1418
        %v1467 = vpack.c.b16 %v1423, %v1419
        %v1468 = vpack.c.b16 %v1424, %v1420
        %v1469 = vpack.c.b16 %v1425, %v1421
        %v1470 = vpack.c.b16 %v1430, %v1426
        %v1471 = vpack.c.b16 %v1431, %v1427
        %v1472 = vpack.c.b16 %v1432, %v1428
        %v1473 = vpack.c.b16 %v1433, %v1429
        %v1474 = vpack.c.b16 %v1438, %v1434
        %v1475 = vpack.c.b16 %v1439, %v1435
        %v1476 = vpack.c.b16 %v1440, %v1436
        %v1477 = vpack.c.b16 %v1441, %v1437
        %v1478 = vpack.c.b16 %v1446, %v1442
        %v1479 = vpack.c.b16 %v1447, %v1443
        %v1480 = vpack.c.b16 %v1448, %v1444
        %v1481 = vpack.c.b16 %v1449, %v1445
        %1514 = vmatpush.bf16.msra.mxu0 %v1478
        %1515 = vmatpush.bf16.msra.mxu0 %v1474
        %1516 = vmatpush.bf16.msra.mxu0 %v1470
        %1517 = vmatpush.bf16.msra.mxu0 %v1466
        %1518 = vmatpush.bf16.msra.mxu0 %v1462
        %1519 = vmatpush.bf16.msra.mxu0 %v1458
        %1520 = vmatpush.bf16.msra.mxu0 %v1454
        %1521 = vmatpush.bf16.msra.mxu0 %v1450
        %1522 = vmatmul.bf16.gmra.mxu0 %v1098
        %v1523 = vpop.f32.mrf.mxu0
        %v1524 = vadd.f32 %v578, %v1523
        %v1525 = vpop.f32.mrf.mxu0
        %v1526 = vadd.f32 %v578, %v1525
        %1527 = vmatmul.bf16.gmra.mxu0 %v1099
        %v1528 = vpop.f32.mrf.mxu0
        %v1529 = vadd.f32 %v578, %v1528
        %v1530 = vpop.f32.mrf.mxu0
        %v1531 = vadd.f32 %v578, %v1530
        %1532 = vmatmul.bf16.gmra.mxu0 %v1100
        %v1533 = vpop.f32.mrf.mxu0
        %v1534 = vadd.f32 %v578, %v1533
        %v1535 = vpop.f32.mrf.mxu0
        %v1536 = vadd.f32 %v578, %v1535
        %1537 = vmatmul.bf16.gmra.mxu0 %v1101
        %v1538 = vpop.f32.mrf.mxu0
        %v1539 = vadd.f32 %v578, %v1538
        %v1540 = vpop.f32.mrf.mxu0
        %v1541 = vadd.f32 %v578, %v1540
        %1542 = vmatmul.bf16.gmra.mxu0 %v1102
        %v1543 = vpop.f32.mrf.mxu0
        %v1544 = vadd.f32 %v578, %v1543
        %v1545 = vpop.f32.mrf.mxu0
        %v1546 = vadd.f32 %v578, %v1545
        %1547 = vmatmul.bf16.gmra.mxu0 %v1103
        %v1548 = vpop.f32.mrf.mxu0
        %v1549 = vadd.f32 %v578, %v1548
        %v1550 = vpop.f32.mrf.mxu0
        %v1551 = vadd.f32 %v578, %v1550
        %1552 = vmatmul.bf16.gmra.mxu0 %v1104
        %v1553 = vpop.f32.mrf.mxu0
        %v1554 = vadd.f32 %v578, %v1553
        %v1555 = vpop.f32.mrf.mxu0
        %v1556 = vadd.f32 %v578, %v1555
        %1557 = vmatmul.bf16.gmra.mxu0 %v1105
        %v1558 = vpop.f32.mrf.mxu0
        %v1559 = vadd.f32 %v578, %v1558
        %v1560 = vpop.f32.mrf.mxu0
        %v1561 = vadd.f32 %v578, %v1560
        %1562 = vmatmul.bf16.gmra.mxu0 %v1106
        %v1563 = vpop.f32.mrf.mxu0
        %v1564 = vadd.f32 %v578, %v1563
        %v1565 = vpop.f32.mrf.mxu0
        %v1566 = vadd.f32 %v578, %v1565
        %1567 = vmatmul.bf16.gmra.mxu0 %v1107
        %v1568 = vpop.f32.mrf.mxu0
        %v1569 = vadd.f32 %v578, %v1568
        %v1570 = vpop.f32.mrf.mxu0
        %v1571 = vadd.f32 %v578, %v1570
        %1572 = vmatmul.bf16.gmra.mxu0 %v1108
        %v1573 = vpop.f32.mrf.mxu0
        %v1574 = vadd.f32 %v578, %v1573
        %v1575 = vpop.f32.mrf.mxu0
        %v1576 = vadd.f32 %v578, %v1575
        %1577 = vmatmul.bf16.gmra.mxu0 %v1109
        %v1578 = vpop.f32.mrf.mxu0
        %v1579 = vadd.f32 %v578, %v1578
        %v1580 = vpop.f32.mrf.mxu0
        %v1581 = vadd.f32 %v578, %v1580
        %1582 = vmatmul.bf16.gmra.mxu0 %v1110
        %v1583 = vpop.f32.mrf.mxu0
        %v1584 = vadd.f32 %v578, %v1583
        %v1585 = vpop.f32.mrf.mxu0
        %v1586 = vadd.f32 %v578, %v1585
        %1587 = vmatmul.bf16.gmra.mxu0 %v1111
        %v1588 = vpop.f32.mrf.mxu0
        %v1589 = vadd.f32 %v578, %v1588
        %v1590 = vpop.f32.mrf.mxu0
        %v1591 = vadd.f32 %v578, %v1590
        %1592 = vmatmul.bf16.gmra.mxu0 %v1112
        %v1593 = vpop.f32.mrf.mxu0
        %v1594 = vadd.f32 %v578, %v1593
        %v1595 = vpop.f32.mrf.mxu0
        %v1596 = vadd.f32 %v578, %v1595
        %1597 = vmatmul.bf16.gmra.mxu0 %v1113
        %v1598 = vpop.f32.mrf.mxu0
        %v1599 = vadd.f32 %v578, %v1598
        %v1600 = vpop.f32.mrf.mxu0
        %v1601 = vadd.f32 %v578, %v1600
        %1602 = vmatmul.bf16.gmra.mxu0 %v1114
        %v1603 = vpop.f32.mrf.mxu0
        %v1604 = vadd.f32 %v578, %v1603
        %v1605 = vpop.f32.mrf.mxu0
        %v1606 = vadd.f32 %v578, %v1605
        %1607 = vmatmul.bf16.gmra.mxu0 %v1115
        %v1608 = vpop.f32.mrf.mxu0
        %v1609 = vadd.f32 %v578, %v1608
        %v1610 = vpop.f32.mrf.mxu0
        %v1611 = vadd.f32 %v578, %v1610
        %1612 = vmatmul.bf16.gmra.mxu0 %v1116
        %v1613 = vpop.f32.mrf.mxu0
        %v1614 = vadd.f32 %v578, %v1613
        %v1615 = vpop.f32.mrf.mxu0
        %v1616 = vadd.f32 %v578, %v1615
        %1617 = vmatmul.bf16.gmra.mxu0 %v1117
        %v1618 = vpop.f32.mrf.mxu0
        %v1619 = vadd.f32 %v578, %v1618
        %v1620 = vpop.f32.mrf.mxu0
        %v1621 = vadd.f32 %v578, %v1620
        %1622 = vmatmul.bf16.gmra.mxu0 %v1118
        %v1623 = vpop.f32.mrf.mxu0
        %v1624 = vadd.f32 %v578, %v1623
        %v1625 = vpop.f32.mrf.mxu0
        %v1626 = vadd.f32 %v578, %v1625
        %1627 = vmatmul.bf16.gmra.mxu0 %v1119
        %v1628 = vpop.f32.mrf.mxu0
        %v1629 = vadd.f32 %v578, %v1628
        %v1630 = vpop.f32.mrf.mxu0
        %v1631 = vadd.f32 %v578, %v1630
        %1632 = vmatmul.bf16.gmra.mxu0 %v1120
        %v1633 = vpop.f32.mrf.mxu0
        %v1634 = vadd.f32 %v578, %v1633
        %v1635 = vpop.f32.mrf.mxu0
        %v1636 = vadd.f32 %v578, %v1635
        %1637 = vmatmul.bf16.gmra.mxu0 %v1121
        %v1638 = vpop.f32.mrf.mxu0
        %v1639 = vadd.f32 %v578, %v1638
        %v1640 = vpop.f32.mrf.mxu0
        %v1641 = vadd.f32 %v578, %v1640
        %1642 = vmatmul.bf16.gmra.mxu0 %v1122
        %v1643 = vpop.f32.mrf.mxu0
        %v1644 = vadd.f32 %v578, %v1643
        %v1645 = vpop.f32.mrf.mxu0
        %v1646 = vadd.f32 %v578, %v1645
        %1647 = vmatmul.bf16.gmra.mxu0 %v1123
        %v1648 = vpop.f32.mrf.mxu0
        %v1649 = vadd.f32 %v578, %v1648
        %v1650 = vpop.f32.mrf.mxu0
        %v1651 = vadd.f32 %v578, %v1650
        %1652 = vmatmul.bf16.gmra.mxu0 %v1124
        %v1653 = vpop.f32.mrf.mxu0
        %v1654 = vadd.f32 %v578, %v1653
        %v1655 = vpop.f32.mrf.mxu0
        %v1656 = vadd.f32 %v578, %v1655
        %1657 = vmatmul.bf16.gmra.mxu0 %v1125
        %v1658 = vpop.f32.mrf.mxu0
        %v1659 = vadd.f32 %v578, %v1658
        %v1660 = vpop.f32.mrf.mxu0
        %v1661 = vadd.f32 %v578, %v1660
        %1662 = vmatmul.bf16.gmra.mxu0 %v1126
        %v1663 = vpop.f32.mrf.mxu0
        %v1664 = vadd.f32 %v578, %v1663
        %v1665 = vpop.f32.mrf.mxu0
        %v1666 = vadd.f32 %v578, %v1665
        %1667 = vmatmul.bf16.gmra.mxu0 %v1127
        %v1668 = vpop.f32.mrf.mxu0
        %v1669 = vadd.f32 %v578, %v1668
        %v1670 = vpop.f32.mrf.mxu0
        %v1671 = vadd.f32 %v578, %v1670
        %1672 = vmatmul.bf16.gmra.mxu0 %v1128
        %v1673 = vpop.f32.mrf.mxu0
        %v1674 = vadd.f32 %v578, %v1673
        %v1675 = vpop.f32.mrf.mxu0
        %v1676 = vadd.f32 %v578, %v1675
        %1677 = vmatmul.bf16.gmra.mxu0 %v1129
        %v1678 = vpop.f32.mrf.mxu0
        %v1679 = vadd.f32 %v578, %v1678
        %v1680 = vpop.f32.mrf.mxu0
        %v1681 = vadd.f32 %v578, %v1680
        %1682 = vmatmul.bf16.gmra.mxu0 %v1130
        %v1683 = vpop.f32.mrf.mxu0
        %v1684 = vadd.f32 %v578, %v1683
        %v1685 = vpop.f32.mrf.mxu0
        %v1686 = vadd.f32 %v578, %v1685
        %1687 = vmatmul.bf16.gmra.mxu0 %v1131
        %v1688 = vpop.f32.mrf.mxu0
        %v1689 = vadd.f32 %v578, %v1688
        %v1690 = vpop.f32.mrf.mxu0
        %v1691 = vadd.f32 %v578, %v1690
        %1692 = vmatmul.bf16.gmra.mxu0 %v1132
        %v1693 = vpop.f32.mrf.mxu0
        %v1694 = vadd.f32 %v578, %v1693
        %v1695 = vpop.f32.mrf.mxu0
        %v1696 = vadd.f32 %v578, %v1695
        %1697 = vmatmul.bf16.gmra.mxu0 %v1133
        %v1698 = vpop.f32.mrf.mxu0
        %v1699 = vadd.f32 %v578, %v1698
        %v1700 = vpop.f32.mrf.mxu0
        %v1701 = vadd.f32 %v578, %v1700
        %1702 = vmatmul.bf16.gmra.mxu0 %v1134
        %v1703 = vpop.f32.mrf.mxu0
        %v1704 = vadd.f32 %v578, %v1703
        %v1705 = vpop.f32.mrf.mxu0
        %v1706 = vadd.f32 %v578, %v1705
        %1707 = vmatmul.bf16.gmra.mxu0 %v1135
        %v1708 = vpop.f32.mrf.mxu0
        %v1709 = vadd.f32 %v578, %v1708
        %v1710 = vpop.f32.mrf.mxu0
        %v1711 = vadd.f32 %v578, %v1710
        %1712 = vmatmul.bf16.gmra.mxu0 %v1136
        %v1713 = vpop.f32.mrf.mxu0
        %v1714 = vadd.f32 %v578, %v1713
        %v1715 = vpop.f32.mrf.mxu0
        %v1716 = vadd.f32 %v578, %v1715
        %1717 = vmatmul.bf16.gmra.mxu0 %v1137
        %v1718 = vpop.f32.mrf.mxu0
        %v1719 = vadd.f32 %v578, %v1718
        %v1720 = vpop.f32.mrf.mxu0
        %v1721 = vadd.f32 %v578, %v1720
        %1722 = vmatmul.bf16.gmra.mxu0 %v1138
        %v1723 = vpop.f32.mrf.mxu0
        %v1724 = vadd.f32 %v578, %v1723
        %v1725 = vpop.f32.mrf.mxu0
        %v1726 = vadd.f32 %v578, %v1725
        %1727 = vmatmul.bf16.gmra.mxu0 %v1139
        %v1728 = vpop.f32.mrf.mxu0
        %v1729 = vadd.f32 %v578, %v1728
        %v1730 = vpop.f32.mrf.mxu0
        %v1731 = vadd.f32 %v578, %v1730
        %1732 = vmatmul.bf16.gmra.mxu0 %v1140
        %v1733 = vpop.f32.mrf.mxu0
        %v1734 = vadd.f32 %v578, %v1733
        %v1735 = vpop.f32.mrf.mxu0
        %v1736 = vadd.f32 %v578, %v1735
        %1737 = vmatmul.bf16.gmra.mxu0 %v1141
        %v1738 = vpop.f32.mrf.mxu0
        %v1739 = vadd.f32 %v578, %v1738
        %v1740 = vpop.f32.mrf.mxu0
        %v1741 = vadd.f32 %v578, %v1740
        %1742 = vmatmul.bf16.gmra.mxu0 %v1142
        %v1743 = vpop.f32.mrf.mxu0
        %v1744 = vadd.f32 %v578, %v1743
        %v1745 = vpop.f32.mrf.mxu0
        %v1746 = vadd.f32 %v578, %v1745
        %1747 = vmatmul.bf16.gmra.mxu0 %v1143
        %v1748 = vpop.f32.mrf.mxu0
        %v1749 = vadd.f32 %v578, %v1748
        %v1750 = vpop.f32.mrf.mxu0
        %v1751 = vadd.f32 %v578, %v1750
        %1752 = vmatmul.bf16.gmra.mxu0 %v1144
        %v1753 = vpop.f32.mrf.mxu0
        %v1754 = vadd.f32 %v578, %v1753
        %v1755 = vpop.f32.mrf.mxu0
        %v1756 = vadd.f32 %v578, %v1755
        %1757 = vmatmul.bf16.gmra.mxu0 %v1145
        %v1758 = vpop.f32.mrf.mxu0
        %v1759 = vadd.f32 %v578, %v1758
        %v1760 = vpop.f32.mrf.mxu0
        %v1761 = vadd.f32 %v578, %v1760
        %1762 = vmatmul.bf16.gmra.mxu0 %v1146
        %v1763 = vpop.f32.mrf.mxu0
        %v1764 = vadd.f32 %v578, %v1763
        %v1765 = vpop.f32.mrf.mxu0
        %v1766 = vadd.f32 %v578, %v1765
        %1767 = vmatmul.bf16.gmra.mxu0 %v1147
        %v1768 = vpop.f32.mrf.mxu0
        %v1769 = vadd.f32 %v578, %v1768
        %v1770 = vpop.f32.mrf.mxu0
        %v1771 = vadd.f32 %v578, %v1770
        %1772 = vmatmul.bf16.gmra.mxu0 %v1148
        %v1773 = vpop.f32.mrf.mxu0
        %v1774 = vadd.f32 %v578, %v1773
        %v1775 = vpop.f32.mrf.mxu0
        %v1776 = vadd.f32 %v578, %v1775
        %1777 = vmatmul.bf16.gmra.mxu0 %v1149
        %v1778 = vpop.f32.mrf.mxu0
        %v1779 = vadd.f32 %v578, %v1778
        %v1780 = vpop.f32.mrf.mxu0
        %v1781 = vadd.f32 %v578, %v1780
        %1782 = vmatmul.bf16.gmra.mxu0 %v1150
        %v1783 = vpop.f32.mrf.mxu0
        %v1784 = vadd.f32 %v578, %v1783
        %v1785 = vpop.f32.mrf.mxu0
        %v1786 = vadd.f32 %v578, %v1785
        %1787 = vmatmul.bf16.gmra.mxu0 %v1151
        %v1788 = vpop.f32.mrf.mxu0
        %v1789 = vadd.f32 %v578, %v1788
        %v1790 = vpop.f32.mrf.mxu0
        %v1791 = vadd.f32 %v578, %v1790
        %1792 = vmatmul.bf16.gmra.mxu0 %v1152
        %v1793 = vpop.f32.mrf.mxu0
        %v1794 = vadd.f32 %v578, %v1793
        %v1795 = vpop.f32.mrf.mxu0
        %v1796 = vadd.f32 %v578, %v1795
        %1797 = vmatmul.bf16.gmra.mxu0 %v1153
        %v1798 = vpop.f32.mrf.mxu0
        %v1799 = vadd.f32 %v578, %v1798
        %v1800 = vpop.f32.mrf.mxu0
        %v1801 = vadd.f32 %v578, %v1800
        %1802 = vmatmul.bf16.gmra.mxu0 %v1154
        %v1803 = vpop.f32.mrf.mxu0
        %v1804 = vadd.f32 %v578, %v1803
        %v1805 = vpop.f32.mrf.mxu0
        %v1806 = vadd.f32 %v578, %v1805
        %1807 = vmatmul.bf16.gmra.mxu0 %v1155
        %v1808 = vpop.f32.mrf.mxu0
        %v1809 = vadd.f32 %v578, %v1808
        %v1810 = vpop.f32.mrf.mxu0
        %v1811 = vadd.f32 %v578, %v1810
        %1812 = vmatmul.bf16.gmra.mxu0 %v1156
        %v1813 = vpop.f32.mrf.mxu0
        %v1814 = vadd.f32 %v578, %v1813
        %v1815 = vpop.f32.mrf.mxu0
        %v1816 = vadd.f32 %v578, %v1815
        %1817 = vmatmul.bf16.gmra.mxu0 %v1157
        %v1818 = vpop.f32.mrf.mxu0
        %v1819 = vadd.f32 %v578, %v1818
        %v1820 = vpop.f32.mrf.mxu0
        %v1821 = vadd.f32 %v578, %v1820
        %1822 = vmatmul.bf16.gmra.mxu0 %v1158
        %v1823 = vpop.f32.mrf.mxu0
        %v1824 = vadd.f32 %v578, %v1823
        %v1825 = vpop.f32.mrf.mxu0
        %v1826 = vadd.f32 %v578, %v1825
        %1827 = vmatmul.bf16.gmra.mxu0 %v1159
        %v1828 = vpop.f32.mrf.mxu0
        %v1829 = vadd.f32 %v578, %v1828
        %v1830 = vpop.f32.mrf.mxu0
        %v1831 = vadd.f32 %v578, %v1830
        %1832 = vmatmul.bf16.gmra.mxu0 %v1160
        %v1833 = vpop.f32.mrf.mxu0
        %v1834 = vadd.f32 %v578, %v1833
        %v1835 = vpop.f32.mrf.mxu0
        %v1836 = vadd.f32 %v578, %v1835
        %1837 = vmatmul.bf16.gmra.mxu0 %v1161
        %v1838 = vpop.f32.mrf.mxu0
        %v1839 = vadd.f32 %v578, %v1838
        %v1840 = vpop.f32.mrf.mxu0
        %v1841 = vadd.f32 %v578, %v1840
        %1842 = vmatmul.bf16.gmra.mxu0 %v1162
        %v1843 = vpop.f32.mrf.mxu0
        %v1844 = vadd.f32 %v578, %v1843
        %v1845 = vpop.f32.mrf.mxu0
        %v1846 = vadd.f32 %v578, %v1845
        %1847 = vmatmul.bf16.gmra.mxu0 %v1163
        %v1848 = vpop.f32.mrf.mxu0
        %v1849 = vadd.f32 %v578, %v1848
        %v1850 = vpop.f32.mrf.mxu0
        %v1851 = vadd.f32 %v578, %v1850
        %1852 = vmatmul.bf16.gmra.mxu0 %v1164
        %v1853 = vpop.f32.mrf.mxu0
        %v1854 = vadd.f32 %v578, %v1853
        %v1855 = vpop.f32.mrf.mxu0
        %v1856 = vadd.f32 %v578, %v1855
        %1857 = vmatmul.bf16.gmra.mxu0 %v1165
        %v1858 = vpop.f32.mrf.mxu0
        %v1859 = vadd.f32 %v578, %v1858
        %v1860 = vpop.f32.mrf.mxu0
        %v1861 = vadd.f32 %v578, %v1860
        %1862 = vmatmul.bf16.gmra.mxu0 %v1166
        %v1863 = vpop.f32.mrf.mxu0
        %v1864 = vadd.f32 %v578, %v1863
        %v1865 = vpop.f32.mrf.mxu0
        %v1866 = vadd.f32 %v578, %v1865
        %1867 = vmatmul.bf16.gmra.mxu0 %v1167
        %v1868 = vpop.f32.mrf.mxu0
        %v1869 = vadd.f32 %v578, %v1868
        %v1870 = vpop.f32.mrf.mxu0
        %v1871 = vadd.f32 %v578, %v1870
        %1872 = vmatmul.bf16.gmra.mxu0 %v1168
        %v1873 = vpop.f32.mrf.mxu0
        %v1874 = vadd.f32 %v578, %v1873
        %v1875 = vpop.f32.mrf.mxu0
        %v1876 = vadd.f32 %v578, %v1875
        %1877 = vmatmul.bf16.gmra.mxu0 %v1169
        %v1878 = vpop.f32.mrf.mxu0
        %v1879 = vadd.f32 %v578, %v1878
        %v1880 = vpop.f32.mrf.mxu0
        %v1881 = vadd.f32 %v578, %v1880
        %1882 = vmatmul.bf16.gmra.mxu0 %v1170
        %v1883 = vpop.f32.mrf.mxu0
        %v1884 = vadd.f32 %v578, %v1883
        %v1885 = vpop.f32.mrf.mxu0
        %v1886 = vadd.f32 %v578, %v1885
        %1887 = vmatmul.bf16.gmra.mxu0 %v1171
        %v1888 = vpop.f32.mrf.mxu0
        %v1889 = vadd.f32 %v578, %v1888
        %v1890 = vpop.f32.mrf.mxu0
        %v1891 = vadd.f32 %v578, %v1890
        %1892 = vmatmul.bf16.gmra.mxu0 %v1172
        %v1893 = vpop.f32.mrf.mxu0
        %v1894 = vadd.f32 %v578, %v1893
        %v1895 = vpop.f32.mrf.mxu0
        %v1896 = vadd.f32 %v578, %v1895
        %1897 = vmatmul.bf16.gmra.mxu0 %v1173
        %v1898 = vpop.f32.mrf.mxu0
        %v1899 = vadd.f32 %v578, %v1898
        %v1900 = vpop.f32.mrf.mxu0
        %v1901 = vadd.f32 %v578, %v1900
        %1902 = vmatmul.bf16.gmra.mxu0 %v1174
        %v1903 = vpop.f32.mrf.mxu0
        %v1904 = vadd.f32 %v578, %v1903
        %v1905 = vpop.f32.mrf.mxu0
        %v1906 = vadd.f32 %v578, %v1905
        %1907 = vmatmul.bf16.gmra.mxu0 %v1175
        %v1908 = vpop.f32.mrf.mxu0
        %v1909 = vadd.f32 %v578, %v1908
        %v1910 = vpop.f32.mrf.mxu0
        %v1911 = vadd.f32 %v578, %v1910
        %1912 = vmatmul.bf16.gmra.mxu0 %v1176
        %v1913 = vpop.f32.mrf.mxu0
        %v1914 = vadd.f32 %v578, %v1913
        %v1915 = vpop.f32.mrf.mxu0
        %v1916 = vadd.f32 %v578, %v1915
        %1917 = vmatmul.bf16.gmra.mxu0 %v1177
        %v1918 = vpop.f32.mrf.mxu0
        %v1919 = vadd.f32 %v578, %v1918
        %v1920 = vpop.f32.mrf.mxu0
        %v1921 = vadd.f32 %v578, %v1920
        %1922 = vmatmul.bf16.gmra.mxu0 %v1178
        %v1923 = vpop.f32.mrf.mxu0
        %v1924 = vadd.f32 %v578, %v1923
        %v1925 = vpop.f32.mrf.mxu0
        %v1926 = vadd.f32 %v578, %v1925
        %1927 = vmatmul.bf16.gmra.mxu0 %v1179
        %v1928 = vpop.f32.mrf.mxu0
        %v1929 = vadd.f32 %v578, %v1928
        %v1930 = vpop.f32.mrf.mxu0
        %v1931 = vadd.f32 %v578, %v1930
        %1932 = vmatmul.bf16.gmra.mxu0 %v1180
        %v1933 = vpop.f32.mrf.mxu0
        %v1934 = vadd.f32 %v578, %v1933
        %v1935 = vpop.f32.mrf.mxu0
        %v1936 = vadd.f32 %v578, %v1935
        %1937 = vmatmul.bf16.gmra.mxu0 %v1181
        %v1938 = vpop.f32.mrf.mxu0
        %v1939 = vadd.f32 %v578, %v1938
        %v1940 = vpop.f32.mrf.mxu0
        %v1941 = vadd.f32 %v578, %v1940
        %1942 = vmatmul.bf16.gmra.mxu0 %v1182
        %v1943 = vpop.f32.mrf.mxu0
        %v1944 = vadd.f32 %v578, %v1943
        %v1945 = vpop.f32.mrf.mxu0
        %v1946 = vadd.f32 %v578, %v1945
        %1947 = vmatmul.bf16.gmra.mxu0 %v1183
        %v1948 = vpop.f32.mrf.mxu0
        %v1949 = vadd.f32 %v578, %v1948
        %v1950 = vpop.f32.mrf.mxu0
        %v1951 = vadd.f32 %v578, %v1950
        %1952 = vmatmul.bf16.gmra.mxu0 %v1184
        %v1953 = vpop.f32.mrf.mxu0
        %v1954 = vadd.f32 %v578, %v1953
        %v1955 = vpop.f32.mrf.mxu0
        %v1956 = vadd.f32 %v578, %v1955
        %1957 = vmatmul.bf16.gmra.mxu0 %v1185
        %v1958 = vpop.f32.mrf.mxu0
        %v1959 = vadd.f32 %v578, %v1958
        %v1960 = vpop.f32.mrf.mxu0
        %v1961 = vadd.f32 %v578, %v1960
        %1962 = vmatmul.bf16.gmra.mxu0 %v1186
        %v1963 = vpop.f32.mrf.mxu0
        %v1964 = vadd.f32 %v578, %v1963
        %v1965 = vpop.f32.mrf.mxu0
        %v1966 = vadd.f32 %v578, %v1965
        %1967 = vmatmul.bf16.gmra.mxu0 %v1187
        %v1968 = vpop.f32.mrf.mxu0
        %v1969 = vadd.f32 %v578, %v1968
        %v1970 = vpop.f32.mrf.mxu0
        %v1971 = vadd.f32 %v578, %v1970
        %1972 = vmatmul.bf16.gmra.mxu0 %v1188
        %v1973 = vpop.f32.mrf.mxu0
        %v1974 = vadd.f32 %v578, %v1973
        %v1975 = vpop.f32.mrf.mxu0
        %v1976 = vadd.f32 %v578, %v1975
        %1977 = vmatmul.bf16.gmra.mxu0 %v1189
        %v1978 = vpop.f32.mrf.mxu0
        %v1979 = vadd.f32 %v578, %v1978
        %v1980 = vpop.f32.mrf.mxu0
        %v1981 = vadd.f32 %v578, %v1980
        %1982 = vmatmul.bf16.gmra.mxu0 %v1190
        %v1983 = vpop.f32.mrf.mxu0
        %v1984 = vadd.f32 %v578, %v1983
        %v1985 = vpop.f32.mrf.mxu0
        %v1986 = vadd.f32 %v578, %v1985
        %1987 = vmatmul.bf16.gmra.mxu0 %v1191
        %v1988 = vpop.f32.mrf.mxu0
        %v1989 = vadd.f32 %v578, %v1988
        %v1990 = vpop.f32.mrf.mxu0
        %v1991 = vadd.f32 %v578, %v1990
        %1992 = vmatmul.bf16.gmra.mxu0 %v1192
        %v1993 = vpop.f32.mrf.mxu0
        %v1994 = vadd.f32 %v578, %v1993
        %v1995 = vpop.f32.mrf.mxu0
        %v1996 = vadd.f32 %v578, %v1995
        %1997 = vmatmul.bf16.gmra.mxu0 %v1193
        %v1998 = vpop.f32.mrf.mxu0
        %v1999 = vadd.f32 %v578, %v1998
        %v2000 = vpop.f32.mrf.mxu0
        %v2001 = vadd.f32 %v578, %v2000
        %2002 = vmatmul.bf16.gmra.mxu0 %v1194
        %v2003 = vpop.f32.mrf.mxu0
        %v2004 = vadd.f32 %v578, %v2003
        %v2005 = vpop.f32.mrf.mxu0
        %v2006 = vadd.f32 %v578, %v2005
        %2007 = vmatmul.bf16.gmra.mxu0 %v1195
        %v2008 = vpop.f32.mrf.mxu0
        %v2009 = vadd.f32 %v578, %v2008
        %v2010 = vpop.f32.mrf.mxu0
        %v2011 = vadd.f32 %v578, %v2010
        %2012 = vmatmul.bf16.gmra.mxu0 %v1196
        %v2013 = vpop.f32.mrf.mxu0
        %v2014 = vadd.f32 %v578, %v2013
        %v2015 = vpop.f32.mrf.mxu0
        %v2016 = vadd.f32 %v578, %v2015
        %2017 = vmatmul.bf16.gmra.mxu0 %v1197
        %v2018 = vpop.f32.mrf.mxu0
        %v2019 = vadd.f32 %v578, %v2018
        %v2020 = vpop.f32.mrf.mxu0
        %v2021 = vadd.f32 %v578, %v2020
        %2022 = vmatmul.bf16.gmra.mxu0 %v1198
        %v2023 = vpop.f32.mrf.mxu0
        %v2024 = vadd.f32 %v578, %v2023
        %v2025 = vpop.f32.mrf.mxu0
        %v2026 = vadd.f32 %v578, %v2025
        %2027 = vmatmul.bf16.gmra.mxu0 %v1199
        %v2028 = vpop.f32.mrf.mxu0
        %v2029 = vadd.f32 %v578, %v2028
        %v2030 = vpop.f32.mrf.mxu0
        %v2031 = vadd.f32 %v578, %v2030
        %2032 = vmatmul.bf16.gmra.mxu0 %v1200
        %v2033 = vpop.f32.mrf.mxu0
        %v2034 = vadd.f32 %v578, %v2033
        %v2035 = vpop.f32.mrf.mxu0
        %v2036 = vadd.f32 %v578, %v2035
        %2037 = vmatmul.bf16.gmra.mxu0 %v1201
        %v2038 = vpop.f32.mrf.mxu0
        %v2039 = vadd.f32 %v578, %v2038
        %v2040 = vpop.f32.mrf.mxu0
        %v2041 = vadd.f32 %v578, %v2040
        %2042 = vmatmul.bf16.gmra.mxu0 %v1202
        %v2043 = vpop.f32.mrf.mxu0
        %v2044 = vadd.f32 %v578, %v2043
        %v2045 = vpop.f32.mrf.mxu0
        %v2046 = vadd.f32 %v578, %v2045
        %2047 = vmatmul.bf16.gmra.mxu0 %v1203
        %v2048 = vpop.f32.mrf.mxu0
        %v2049 = vadd.f32 %v578, %v2048
        %v2050 = vpop.f32.mrf.mxu0
        %v2051 = vadd.f32 %v578, %v2050
        %2052 = vmatmul.bf16.gmra.mxu0 %v1204
        %v2053 = vpop.f32.mrf.mxu0
        %v2054 = vadd.f32 %v578, %v2053
        %v2055 = vpop.f32.mrf.mxu0
        %v2056 = vadd.f32 %v578, %v2055
        %2057 = vmatmul.bf16.gmra.mxu0 %v1205
        %v2058 = vpop.f32.mrf.mxu0
        %v2059 = vadd.f32 %v578, %v2058
        %v2060 = vpop.f32.mrf.mxu0
        %v2061 = vadd.f32 %v578, %v2060
        %2062 = vmatmul.bf16.gmra.mxu0 %v1206
        %v2063 = vpop.f32.mrf.mxu0
        %v2064 = vadd.f32 %v578, %v2063
        %v2065 = vpop.f32.mrf.mxu0
        %v2066 = vadd.f32 %v578, %v2065
        %2067 = vmatmul.bf16.gmra.mxu0 %v1207
        %v2068 = vpop.f32.mrf.mxu0
        %v2069 = vadd.f32 %v578, %v2068
        %v2070 = vpop.f32.mrf.mxu0
        %v2071 = vadd.f32 %v578, %v2070
        %2072 = vmatmul.bf16.gmra.mxu0 %v1208
        %v2073 = vpop.f32.mrf.mxu0
        %v2074 = vadd.f32 %v578, %v2073
        %v2075 = vpop.f32.mrf.mxu0
        %v2076 = vadd.f32 %v578, %v2075
        %2077 = vmatmul.bf16.gmra.mxu0 %v1209
        %v2078 = vpop.f32.mrf.mxu0
        %v2079 = vadd.f32 %v578, %v2078
        %v2080 = vpop.f32.mrf.mxu0
        %v2081 = vadd.f32 %v578, %v2080
        %2082 = vmatmul.bf16.gmra.mxu0 %v1210
        %v2083 = vpop.f32.mrf.mxu0
        %v2084 = vadd.f32 %v578, %v2083
        %v2085 = vpop.f32.mrf.mxu0
        %v2086 = vadd.f32 %v578, %v2085
        %2087 = vmatmul.bf16.gmra.mxu0 %v1211
        %v2088 = vpop.f32.mrf.mxu0
        %v2089 = vadd.f32 %v578, %v2088
        %v2090 = vpop.f32.mrf.mxu0
        %v2091 = vadd.f32 %v578, %v2090
        %2092 = vmatmul.bf16.gmra.mxu0 %v1212
        %v2093 = vpop.f32.mrf.mxu0
        %v2094 = vadd.f32 %v578, %v2093
        %v2095 = vpop.f32.mrf.mxu0
        %v2096 = vadd.f32 %v578, %v2095
        %2097 = vmatmul.bf16.gmra.mxu0 %v1213
        %v2098 = vpop.f32.mrf.mxu0
        %v2099 = vadd.f32 %v578, %v2098
        %v2100 = vpop.f32.mrf.mxu0
        %v2101 = vadd.f32 %v578, %v2100
        %2102 = vmatmul.bf16.gmra.mxu0 %v1214
        %v2103 = vpop.f32.mrf.mxu0
        %v2104 = vadd.f32 %v578, %v2103
        %v2105 = vpop.f32.mrf.mxu0
        %v2106 = vadd.f32 %v578, %v2105
        %2107 = vmatmul.bf16.gmra.mxu0 %v1215
        %v2108 = vpop.f32.mrf.mxu0
        %v2109 = vadd.f32 %v578, %v2108
        %v2110 = vpop.f32.mrf.mxu0
        %v2111 = vadd.f32 %v578, %v2110
        %2112 = vmatmul.bf16.gmra.mxu0 %v1216
        %v2113 = vpop.f32.mrf.mxu0
        %v2114 = vadd.f32 %v578, %v2113
        %v2115 = vpop.f32.mrf.mxu0
        %v2116 = vadd.f32 %v578, %v2115
        %2117 = vmatmul.bf16.gmra.mxu0 %v1217
        %v2118 = vpop.f32.mrf.mxu0
        %v2119 = vadd.f32 %v578, %v2118
        %v2120 = vpop.f32.mrf.mxu0
        %v2121 = vadd.f32 %v578, %v2120
        %2122 = vmatmul.bf16.gmra.mxu0 %v1218
        %v2123 = vpop.f32.mrf.mxu0
        %v2124 = vadd.f32 %v578, %v2123
        %v2125 = vpop.f32.mrf.mxu0
        %v2126 = vadd.f32 %v578, %v2125
        %2127 = vmatmul.bf16.gmra.mxu0 %v1219
        %v2128 = vpop.f32.mrf.mxu0
        %v2129 = vadd.f32 %v578, %v2128
        %v2130 = vpop.f32.mrf.mxu0
        %v2131 = vadd.f32 %v578, %v2130
        %2132 = vmatmul.bf16.gmra.mxu0 %v1220
        %v2133 = vpop.f32.mrf.mxu0
        %v2134 = vadd.f32 %v578, %v2133
        %v2135 = vpop.f32.mrf.mxu0
        %v2136 = vadd.f32 %v578, %v2135
        %2137 = vmatmul.bf16.gmra.mxu0 %v1221
        %v2138 = vpop.f32.mrf.mxu0
        %v2139 = vadd.f32 %v578, %v2138
        %v2140 = vpop.f32.mrf.mxu0
        %v2141 = vadd.f32 %v578, %v2140
        %2142 = vmatmul.bf16.gmra.mxu0 %v1222
        %v2143 = vpop.f32.mrf.mxu0
        %v2144 = vadd.f32 %v578, %v2143
        %v2145 = vpop.f32.mrf.mxu0
        %v2146 = vadd.f32 %v578, %v2145
        %2147 = vmatmul.bf16.gmra.mxu0 %v1223
        %v2148 = vpop.f32.mrf.mxu0
        %v2149 = vadd.f32 %v578, %v2148
        %v2150 = vpop.f32.mrf.mxu0
        %v2151 = vadd.f32 %v578, %v2150
        %2152 = vmatmul.bf16.gmra.mxu0 %v1224
        %v2153 = vpop.f32.mrf.mxu0
        %v2154 = vadd.f32 %v578, %v2153
        %v2155 = vpop.f32.mrf.mxu0
        %v2156 = vadd.f32 %v578, %v2155
        %2157 = vmatmul.bf16.gmra.mxu0 %v1225
        %v2158 = vpop.f32.mrf.mxu0
        %v2159 = vadd.f32 %v578, %v2158
        %v2160 = vpop.f32.mrf.mxu0
        %v2161 = vadd.f32 %v578, %v2160
        %2162 = vdwg.mxu0
        %2163 = vmatpush.bf16.msra.mxu0 %v1479
        %2164 = vmatpush.bf16.msra.mxu0 %v1475
        %2165 = vmatpush.bf16.msra.mxu0 %v1471
        %2166 = vmatpush.bf16.msra.mxu0 %v1467
        %2167 = vmatpush.bf16.msra.mxu0 %v1463
        %2168 = vmatpush.bf16.msra.mxu0 %v1459
        %2169 = vmatpush.bf16.msra.mxu0 %v1455
        %2170 = vmatpush.bf16.msra.mxu0 %v1451
        %2171 = vmatmul.bf16.gmra.mxu0 %v1098
        %v2172 = vpop.f32.mrf.mxu0
        %v2173 = vadd.f32 %v579, %v2172
        %v2174 = vpop.f32.mrf.mxu0
        %v2175 = vadd.f32 %v579, %v2174
        %2176 = vmatmul.bf16.gmra.mxu0 %v1099
        %v2177 = vpop.f32.mrf.mxu0
        %v2178 = vadd.f32 %v579, %v2177
        %v2179 = vpop.f32.mrf.mxu0
        %v2180 = vadd.f32 %v579, %v2179
        %2181 = vmatmul.bf16.gmra.mxu0 %v1100
        %v2182 = vpop.f32.mrf.mxu0
        %v2183 = vadd.f32 %v579, %v2182
        %v2184 = vpop.f32.mrf.mxu0
        %v2185 = vadd.f32 %v579, %v2184
        %2186 = vmatmul.bf16.gmra.mxu0 %v1101
        %v2187 = vpop.f32.mrf.mxu0
        %v2188 = vadd.f32 %v579, %v2187
        %v2189 = vpop.f32.mrf.mxu0
        %v2190 = vadd.f32 %v579, %v2189
        %2191 = vmatmul.bf16.gmra.mxu0 %v1102
        %v2192 = vpop.f32.mrf.mxu0
        %v2193 = vadd.f32 %v579, %v2192
        %v2194 = vpop.f32.mrf.mxu0
        %v2195 = vadd.f32 %v579, %v2194
        %2196 = vmatmul.bf16.gmra.mxu0 %v1103
        %v2197 = vpop.f32.mrf.mxu0
        %v2198 = vadd.f32 %v579, %v2197
        %v2199 = vpop.f32.mrf.mxu0
        %v2200 = vadd.f32 %v579, %v2199
        %2201 = vmatmul.bf16.gmra.mxu0 %v1104
        %v2202 = vpop.f32.mrf.mxu0
        %v2203 = vadd.f32 %v579, %v2202
        %v2204 = vpop.f32.mrf.mxu0
        %v2205 = vadd.f32 %v579, %v2204
        %2206 = vmatmul.bf16.gmra.mxu0 %v1105
        %v2207 = vpop.f32.mrf.mxu0
        %v2208 = vadd.f32 %v579, %v2207
        %v2209 = vpop.f32.mrf.mxu0
        %v2210 = vadd.f32 %v579, %v2209
        %2211 = vmatmul.bf16.gmra.mxu0 %v1106
        %v2212 = vpop.f32.mrf.mxu0
        %v2213 = vadd.f32 %v579, %v2212
        %v2214 = vpop.f32.mrf.mxu0
        %v2215 = vadd.f32 %v579, %v2214
        %2216 = vmatmul.bf16.gmra.mxu0 %v1107
        %v2217 = vpop.f32.mrf.mxu0
        %v2218 = vadd.f32 %v579, %v2217
        %v2219 = vpop.f32.mrf.mxu0
        %v2220 = vadd.f32 %v579, %v2219
        %2221 = vmatmul.bf16.gmra.mxu0 %v1108
        %v2222 = vpop.f32.mrf.mxu0
        %v2223 = vadd.f32 %v579, %v2222
        %v2224 = vpop.f32.mrf.mxu0
        %v2225 = vadd.f32 %v579, %v2224
        %2226 = vmatmul.bf16.gmra.mxu0 %v1109
        %v2227 = vpop.f32.mrf.mxu0
        %v2228 = vadd.f32 %v579, %v2227
        %v2229 = vpop.f32.mrf.mxu0
        %v2230 = vadd.f32 %v579, %v2229
        %2231 = vmatmul.bf16.gmra.mxu0 %v1110
        %v2232 = vpop.f32.mrf.mxu0
        %v2233 = vadd.f32 %v579, %v2232
        %v2234 = vpop.f32.mrf.mxu0
        %v2235 = vadd.f32 %v579, %v2234
        %2236 = vmatmul.bf16.gmra.mxu0 %v1111
        %v2237 = vpop.f32.mrf.mxu0
        %v2238 = vadd.f32 %v579, %v2237
        %v2239 = vpop.f32.mrf.mxu0
        %v2240 = vadd.f32 %v579, %v2239
        %2241 = vmatmul.bf16.gmra.mxu0 %v1112
        %v2242 = vpop.f32.mrf.mxu0
        %v2243 = vadd.f32 %v579, %v2242
        %v2244 = vpop.f32.mrf.mxu0
        %v2245 = vadd.f32 %v579, %v2244
        %2246 = vmatmul.bf16.gmra.mxu0 %v1113
        %v2247 = vpop.f32.mrf.mxu0
        %v2248 = vadd.f32 %v579, %v2247
        %v2249 = vpop.f32.mrf.mxu0
        %v2250 = vadd.f32 %v579, %v2249
        %2251 = vmatmul.bf16.gmra.mxu0 %v1114
        %v2252 = vpop.f32.mrf.mxu0
        %v2253 = vadd.f32 %v579, %v2252
        %v2254 = vpop.f32.mrf.mxu0
        %v2255 = vadd.f32 %v579, %v2254
        %2256 = vmatmul.bf16.gmra.mxu0 %v1115
        %v2257 = vpop.f32.mrf.mxu0
        %v2258 = vadd.f32 %v579, %v2257
        %v2259 = vpop.f32.mrf.mxu0
        %v2260 = vadd.f32 %v579, %v2259
        %2261 = vmatmul.bf16.gmra.mxu0 %v1116
        %v2262 = vpop.f32.mrf.mxu0
        %v2263 = vadd.f32 %v579, %v2262
        %v2264 = vpop.f32.mrf.mxu0
        %v2265 = vadd.f32 %v579, %v2264
        %2266 = vmatmul.bf16.gmra.mxu0 %v1117
        %v2267 = vpop.f32.mrf.mxu0
        %v2268 = vadd.f32 %v579, %v2267
        %v2269 = vpop.f32.mrf.mxu0
        %v2270 = vadd.f32 %v579, %v2269
        %2271 = vmatmul.bf16.gmra.mxu0 %v1118
        %v2272 = vpop.f32.mrf.mxu0
        %v2273 = vadd.f32 %v579, %v2272
        %v2274 = vpop.f32.mrf.mxu0
        %v2275 = vadd.f32 %v579, %v2274
        %2276 = vmatmul.bf16.gmra.mxu0 %v1119
        %v2277 = vpop.f32.mrf.mxu0
        %v2278 = vadd.f32 %v579, %v2277
        %v2279 = vpop.f32.mrf.mxu0
        %v2280 = vadd.f32 %v579, %v2279
        %2281 = vmatmul.bf16.gmra.mxu0 %v1120
        %v2282 = vpop.f32.mrf.mxu0
        %v2283 = vadd.f32 %v579, %v2282
        %v2284 = vpop.f32.mrf.mxu0
        %v2285 = vadd.f32 %v579, %v2284
        %2286 = vmatmul.bf16.gmra.mxu0 %v1121
        %v2287 = vpop.f32.mrf.mxu0
        %v2288 = vadd.f32 %v579, %v2287
        %v2289 = vpop.f32.mrf.mxu0
        %v2290 = vadd.f32 %v579, %v2289
        %2291 = vmatmul.bf16.gmra.mxu0 %v1122
        %v2292 = vpop.f32.mrf.mxu0
        %v2293 = vadd.f32 %v579, %v2292
        %v2294 = vpop.f32.mrf.mxu0
        %v2295 = vadd.f32 %v579, %v2294
        %2296 = vmatmul.bf16.gmra.mxu0 %v1123
        %v2297 = vpop.f32.mrf.mxu0
        %v2298 = vadd.f32 %v579, %v2297
        %v2299 = vpop.f32.mrf.mxu0
        %v2300 = vadd.f32 %v579, %v2299
        %2301 = vmatmul.bf16.gmra.mxu0 %v1124
        %v2302 = vpop.f32.mrf.mxu0
        %v2303 = vadd.f32 %v579, %v2302
        %v2304 = vpop.f32.mrf.mxu0
        %v2305 = vadd.f32 %v579, %v2304
        %2306 = vmatmul.bf16.gmra.mxu0 %v1125
        %v2307 = vpop.f32.mrf.mxu0
        %v2308 = vadd.f32 %v579, %v2307
        %v2309 = vpop.f32.mrf.mxu0
        %v2310 = vadd.f32 %v579, %v2309
        %2311 = vmatmul.bf16.gmra.mxu0 %v1126
        %v2312 = vpop.f32.mrf.mxu0
        %v2313 = vadd.f32 %v579, %v2312
        %v2314 = vpop.f32.mrf.mxu0
        %v2315 = vadd.f32 %v579, %v2314
        %2316 = vmatmul.bf16.gmra.mxu0 %v1127
        %v2317 = vpop.f32.mrf.mxu0
        %v2318 = vadd.f32 %v579, %v2317
        %v2319 = vpop.f32.mrf.mxu0
        %v2320 = vadd.f32 %v579, %v2319
        %2321 = vmatmul.bf16.gmra.mxu0 %v1128
        %v2322 = vpop.f32.mrf.mxu0
        %v2323 = vadd.f32 %v579, %v2322
        %v2324 = vpop.f32.mrf.mxu0
        %v2325 = vadd.f32 %v579, %v2324
        %2326 = vmatmul.bf16.gmra.mxu0 %v1129
        %v2327 = vpop.f32.mrf.mxu0
        %v2328 = vadd.f32 %v579, %v2327
        %v2329 = vpop.f32.mrf.mxu0
        %v2330 = vadd.f32 %v579, %v2329
        %2331 = vmatmul.bf16.gmra.mxu0 %v1130
        %v2332 = vpop.f32.mrf.mxu0
        %v2333 = vadd.f32 %v579, %v2332
        %v2334 = vpop.f32.mrf.mxu0
        %v2335 = vadd.f32 %v579, %v2334
        %2336 = vmatmul.bf16.gmra.mxu0 %v1131
        %v2337 = vpop.f32.mrf.mxu0
        %v2338 = vadd.f32 %v579, %v2337
        %v2339 = vpop.f32.mrf.mxu0
        %v2340 = vadd.f32 %v579, %v2339
        %2341 = vmatmul.bf16.gmra.mxu0 %v1132
        %v2342 = vpop.f32.mrf.mxu0
        %v2343 = vadd.f32 %v579, %v2342
        %v2344 = vpop.f32.mrf.mxu0
        %v2345 = vadd.f32 %v579, %v2344
        %2346 = vmatmul.bf16.gmra.mxu0 %v1133
        %v2347 = vpop.f32.mrf.mxu0
        %v2348 = vadd.f32 %v579, %v2347
        %v2349 = vpop.f32.mrf.mxu0
        %v2350 = vadd.f32 %v579, %v2349
        %2351 = vmatmul.bf16.gmra.mxu0 %v1134
        %v2352 = vpop.f32.mrf.mxu0
        %v2353 = vadd.f32 %v579, %v2352
        %v2354 = vpop.f32.mrf.mxu0
        %v2355 = vadd.f32 %v579, %v2354
        %2356 = vmatmul.bf16.gmra.mxu0 %v1135
        %v2357 = vpop.f32.mrf.mxu0
        %v2358 = vadd.f32 %v579, %v2357
        %v2359 = vpop.f32.mrf.mxu0
        %v2360 = vadd.f32 %v579, %v2359
        %2361 = vmatmul.bf16.gmra.mxu0 %v1136
        %v2362 = vpop.f32.mrf.mxu0
        %v2363 = vadd.f32 %v579, %v2362
        %v2364 = vpop.f32.mrf.mxu0
        %v2365 = vadd.f32 %v579, %v2364
        %2366 = vmatmul.bf16.gmra.mxu0 %v1137
        %v2367 = vpop.f32.mrf.mxu0
        %v2368 = vadd.f32 %v579, %v2367
        %v2369 = vpop.f32.mrf.mxu0
        %v2370 = vadd.f32 %v579, %v2369
        %2371 = vmatmul.bf16.gmra.mxu0 %v1138
        %v2372 = vpop.f32.mrf.mxu0
        %v2373 = vadd.f32 %v579, %v2372
        %v2374 = vpop.f32.mrf.mxu0
        %v2375 = vadd.f32 %v579, %v2374
        %2376 = vmatmul.bf16.gmra.mxu0 %v1139
        %v2377 = vpop.f32.mrf.mxu0
        %v2378 = vadd.f32 %v579, %v2377
        %v2379 = vpop.f32.mrf.mxu0
        %v2380 = vadd.f32 %v579, %v2379
        %2381 = vmatmul.bf16.gmra.mxu0 %v1140
        %v2382 = vpop.f32.mrf.mxu0
        %v2383 = vadd.f32 %v579, %v2382
        %v2384 = vpop.f32.mrf.mxu0
        %v2385 = vadd.f32 %v579, %v2384
        %2386 = vmatmul.bf16.gmra.mxu0 %v1141
        %v2387 = vpop.f32.mrf.mxu0
        %v2388 = vadd.f32 %v579, %v2387
        %v2389 = vpop.f32.mrf.mxu0
        %v2390 = vadd.f32 %v579, %v2389
        %2391 = vmatmul.bf16.gmra.mxu0 %v1142
        %v2392 = vpop.f32.mrf.mxu0
        %v2393 = vadd.f32 %v579, %v2392
        %v2394 = vpop.f32.mrf.mxu0
        %v2395 = vadd.f32 %v579, %v2394
        %2396 = vmatmul.bf16.gmra.mxu0 %v1143
        %v2397 = vpop.f32.mrf.mxu0
        %v2398 = vadd.f32 %v579, %v2397
        %v2399 = vpop.f32.mrf.mxu0
        %v2400 = vadd.f32 %v579, %v2399
        %2401 = vmatmul.bf16.gmra.mxu0 %v1144
        %v2402 = vpop.f32.mrf.mxu0
        %v2403 = vadd.f32 %v579, %v2402
        %v2404 = vpop.f32.mrf.mxu0
        %v2405 = vadd.f32 %v579, %v2404
        %2406 = vmatmul.bf16.gmra.mxu0 %v1145
        %v2407 = vpop.f32.mrf.mxu0
        %v2408 = vadd.f32 %v579, %v2407
        %v2409 = vpop.f32.mrf.mxu0
        %v2410 = vadd.f32 %v579, %v2409
        %2411 = vmatmul.bf16.gmra.mxu0 %v1146
        %v2412 = vpop.f32.mrf.mxu0
        %v2413 = vadd.f32 %v579, %v2412
        %v2414 = vpop.f32.mrf.mxu0
        %v2415 = vadd.f32 %v579, %v2414
        %2416 = vmatmul.bf16.gmra.mxu0 %v1147
        %v2417 = vpop.f32.mrf.mxu0
        %v2418 = vadd.f32 %v579, %v2417
        %v2419 = vpop.f32.mrf.mxu0
        %v2420 = vadd.f32 %v579, %v2419
        %2421 = vmatmul.bf16.gmra.mxu0 %v1148
        %v2422 = vpop.f32.mrf.mxu0
        %v2423 = vadd.f32 %v579, %v2422
        %v2424 = vpop.f32.mrf.mxu0
        %v2425 = vadd.f32 %v579, %v2424
        %2426 = vmatmul.bf16.gmra.mxu0 %v1149
        %v2427 = vpop.f32.mrf.mxu0
        %v2428 = vadd.f32 %v579, %v2427
        %v2429 = vpop.f32.mrf.mxu0
        %v2430 = vadd.f32 %v579, %v2429
        %2431 = vmatmul.bf16.gmra.mxu0 %v1150
        %v2432 = vpop.f32.mrf.mxu0
        %v2433 = vadd.f32 %v579, %v2432
        %v2434 = vpop.f32.mrf.mxu0
        %v2435 = vadd.f32 %v579, %v2434
        %2436 = vmatmul.bf16.gmra.mxu0 %v1151
        %v2437 = vpop.f32.mrf.mxu0
        %v2438 = vadd.f32 %v579, %v2437
        %v2439 = vpop.f32.mrf.mxu0
        %v2440 = vadd.f32 %v579, %v2439
        %2441 = vmatmul.bf16.gmra.mxu0 %v1152
        %v2442 = vpop.f32.mrf.mxu0
        %v2443 = vadd.f32 %v579, %v2442
        %v2444 = vpop.f32.mrf.mxu0
        %v2445 = vadd.f32 %v579, %v2444
        %2446 = vmatmul.bf16.gmra.mxu0 %v1153
        %v2447 = vpop.f32.mrf.mxu0
        %v2448 = vadd.f32 %v579, %v2447
        %v2449 = vpop.f32.mrf.mxu0
        %v2450 = vadd.f32 %v579, %v2449
        %2451 = vmatmul.bf16.gmra.mxu0 %v1154
        %v2452 = vpop.f32.mrf.mxu0
        %v2453 = vadd.f32 %v579, %v2452
        %v2454 = vpop.f32.mrf.mxu0
        %v2455 = vadd.f32 %v579, %v2454
        %2456 = vmatmul.bf16.gmra.mxu0 %v1155
        %v2457 = vpop.f32.mrf.mxu0
        %v2458 = vadd.f32 %v579, %v2457
        %v2459 = vpop.f32.mrf.mxu0
        %v2460 = vadd.f32 %v579, %v2459
        %2461 = vmatmul.bf16.gmra.mxu0 %v1156
        %v2462 = vpop.f32.mrf.mxu0
        %v2463 = vadd.f32 %v579, %v2462
        %v2464 = vpop.f32.mrf.mxu0
        %v2465 = vadd.f32 %v579, %v2464
        %2466 = vmatmul.bf16.gmra.mxu0 %v1157
        %v2467 = vpop.f32.mrf.mxu0
        %v2468 = vadd.f32 %v579, %v2467
        %v2469 = vpop.f32.mrf.mxu0
        %v2470 = vadd.f32 %v579, %v2469
        %2471 = vmatmul.bf16.gmra.mxu0 %v1158
        %v2472 = vpop.f32.mrf.mxu0
        %v2473 = vadd.f32 %v579, %v2472
        %v2474 = vpop.f32.mrf.mxu0
        %v2475 = vadd.f32 %v579, %v2474
        %2476 = vmatmul.bf16.gmra.mxu0 %v1159
        %v2477 = vpop.f32.mrf.mxu0
        %v2478 = vadd.f32 %v579, %v2477
        %v2479 = vpop.f32.mrf.mxu0
        %v2480 = vadd.f32 %v579, %v2479
        %2481 = vmatmul.bf16.gmra.mxu0 %v1160
        %v2482 = vpop.f32.mrf.mxu0
        %v2483 = vadd.f32 %v579, %v2482
        %v2484 = vpop.f32.mrf.mxu0
        %v2485 = vadd.f32 %v579, %v2484
        %2486 = vmatmul.bf16.gmra.mxu0 %v1161
        %v2487 = vpop.f32.mrf.mxu0
        %v2488 = vadd.f32 %v579, %v2487
        %v2489 = vpop.f32.mrf.mxu0
        %v2490 = vadd.f32 %v579, %v2489
        %2491 = vmatmul.bf16.gmra.mxu0 %v1162
        %v2492 = vpop.f32.mrf.mxu0
        %v2493 = vadd.f32 %v579, %v2492
        %v2494 = vpop.f32.mrf.mxu0
        %v2495 = vadd.f32 %v579, %v2494
        %2496 = vmatmul.bf16.gmra.mxu0 %v1163
        %v2497 = vpop.f32.mrf.mxu0
        %v2498 = vadd.f32 %v579, %v2497
        %v2499 = vpop.f32.mrf.mxu0
        %v2500 = vadd.f32 %v579, %v2499
        %2501 = vmatmul.bf16.gmra.mxu0 %v1164
        %v2502 = vpop.f32.mrf.mxu0
        %v2503 = vadd.f32 %v579, %v2502
        %v2504 = vpop.f32.mrf.mxu0
        %v2505 = vadd.f32 %v579, %v2504
        %2506 = vmatmul.bf16.gmra.mxu0 %v1165
        %v2507 = vpop.f32.mrf.mxu0
        %v2508 = vadd.f32 %v579, %v2507
        %v2509 = vpop.f32.mrf.mxu0
        %v2510 = vadd.f32 %v579, %v2509
        %2511 = vmatmul.bf16.gmra.mxu0 %v1166
        %v2512 = vpop.f32.mrf.mxu0
        %v2513 = vadd.f32 %v579, %v2512
        %v2514 = vpop.f32.mrf.mxu0
        %v2515 = vadd.f32 %v579, %v2514
        %2516 = vmatmul.bf16.gmra.mxu0 %v1167
        %v2517 = vpop.f32.mrf.mxu0
        %v2518 = vadd.f32 %v579, %v2517
        %v2519 = vpop.f32.mrf.mxu0
        %v2520 = vadd.f32 %v579, %v2519
        %2521 = vmatmul.bf16.gmra.mxu0 %v1168
        %v2522 = vpop.f32.mrf.mxu0
        %v2523 = vadd.f32 %v579, %v2522
        %v2524 = vpop.f32.mrf.mxu0
        %v2525 = vadd.f32 %v579, %v2524
        %2526 = vmatmul.bf16.gmra.mxu0 %v1169
        %v2527 = vpop.f32.mrf.mxu0
        %v2528 = vadd.f32 %v579, %v2527
        %v2529 = vpop.f32.mrf.mxu0
        %v2530 = vadd.f32 %v579, %v2529
        %2531 = vmatmul.bf16.gmra.mxu0 %v1170
        %v2532 = vpop.f32.mrf.mxu0
        %v2533 = vadd.f32 %v579, %v2532
        %v2534 = vpop.f32.mrf.mxu0
        %v2535 = vadd.f32 %v579, %v2534
        %2536 = vmatmul.bf16.gmra.mxu0 %v1171
        %v2537 = vpop.f32.mrf.mxu0
        %v2538 = vadd.f32 %v579, %v2537
        %v2539 = vpop.f32.mrf.mxu0
        %v2540 = vadd.f32 %v579, %v2539
        %2541 = vmatmul.bf16.gmra.mxu0 %v1172
        %v2542 = vpop.f32.mrf.mxu0
        %v2543 = vadd.f32 %v579, %v2542
        %v2544 = vpop.f32.mrf.mxu0
        %v2545 = vadd.f32 %v579, %v2544
        %2546 = vmatmul.bf16.gmra.mxu0 %v1173
        %v2547 = vpop.f32.mrf.mxu0
        %v2548 = vadd.f32 %v579, %v2547
        %v2549 = vpop.f32.mrf.mxu0
        %v2550 = vadd.f32 %v579, %v2549
        %2551 = vmatmul.bf16.gmra.mxu0 %v1174
        %v2552 = vpop.f32.mrf.mxu0
        %v2553 = vadd.f32 %v579, %v2552
        %v2554 = vpop.f32.mrf.mxu0
        %v2555 = vadd.f32 %v579, %v2554
        %2556 = vmatmul.bf16.gmra.mxu0 %v1175
        %v2557 = vpop.f32.mrf.mxu0
        %v2558 = vadd.f32 %v579, %v2557
        %v2559 = vpop.f32.mrf.mxu0
        %v2560 = vadd.f32 %v579, %v2559
        %2561 = vmatmul.bf16.gmra.mxu0 %v1176
        %v2562 = vpop.f32.mrf.mxu0
        %v2563 = vadd.f32 %v579, %v2562
        %v2564 = vpop.f32.mrf.mxu0
        %v2565 = vadd.f32 %v579, %v2564
        %2566 = vmatmul.bf16.gmra.mxu0 %v1177
        %v2567 = vpop.f32.mrf.mxu0
        %v2568 = vadd.f32 %v579, %v2567
        %v2569 = vpop.f32.mrf.mxu0
        %v2570 = vadd.f32 %v579, %v2569
        %2571 = vmatmul.bf16.gmra.mxu0 %v1178
        %v2572 = vpop.f32.mrf.mxu0
        %v2573 = vadd.f32 %v579, %v2572
        %v2574 = vpop.f32.mrf.mxu0
        %v2575 = vadd.f32 %v579, %v2574
        %2576 = vmatmul.bf16.gmra.mxu0 %v1179
        %v2577 = vpop.f32.mrf.mxu0
        %v2578 = vadd.f32 %v579, %v2577
        %v2579 = vpop.f32.mrf.mxu0
        %v2580 = vadd.f32 %v579, %v2579
        %2581 = vmatmul.bf16.gmra.mxu0 %v1180
        %v2582 = vpop.f32.mrf.mxu0
        %v2583 = vadd.f32 %v579, %v2582
        %v2584 = vpop.f32.mrf.mxu0
        %v2585 = vadd.f32 %v579, %v2584
        %2586 = vmatmul.bf16.gmra.mxu0 %v1181
        %v2587 = vpop.f32.mrf.mxu0
        %v2588 = vadd.f32 %v579, %v2587
        %v2589 = vpop.f32.mrf.mxu0
        %v2590 = vadd.f32 %v579, %v2589
        %2591 = vmatmul.bf16.gmra.mxu0 %v1182
        %v2592 = vpop.f32.mrf.mxu0
        %v2593 = vadd.f32 %v579, %v2592
        %v2594 = vpop.f32.mrf.mxu0
        %v2595 = vadd.f32 %v579, %v2594
        %2596 = vmatmul.bf16.gmra.mxu0 %v1183
        %v2597 = vpop.f32.mrf.mxu0
        %v2598 = vadd.f32 %v579, %v2597
        %v2599 = vpop.f32.mrf.mxu0
        %v2600 = vadd.f32 %v579, %v2599
        %2601 = vmatmul.bf16.gmra.mxu0 %v1184
        %v2602 = vpop.f32.mrf.mxu0
        %v2603 = vadd.f32 %v579, %v2602
        %v2604 = vpop.f32.mrf.mxu0
        %v2605 = vadd.f32 %v579, %v2604
        %2606 = vmatmul.bf16.gmra.mxu0 %v1185
        %v2607 = vpop.f32.mrf.mxu0
        %v2608 = vadd.f32 %v579, %v2607
        %v2609 = vpop.f32.mrf.mxu0
        %v2610 = vadd.f32 %v579, %v2609
        %2611 = vmatmul.bf16.gmra.mxu0 %v1186
        %v2612 = vpop.f32.mrf.mxu0
        %v2613 = vadd.f32 %v579, %v2612
        %v2614 = vpop.f32.mrf.mxu0
        %v2615 = vadd.f32 %v579, %v2614
        %2616 = vmatmul.bf16.gmra.mxu0 %v1187
        %v2617 = vpop.f32.mrf.mxu0
        %v2618 = vadd.f32 %v579, %v2617
        %v2619 = vpop.f32.mrf.mxu0
        %v2620 = vadd.f32 %v579, %v2619
        %2621 = vmatmul.bf16.gmra.mxu0 %v1188
        %v2622 = vpop.f32.mrf.mxu0
        %v2623 = vadd.f32 %v579, %v2622
        %v2624 = vpop.f32.mrf.mxu0
        %v2625 = vadd.f32 %v579, %v2624
        %2626 = vmatmul.bf16.gmra.mxu0 %v1189
        %v2627 = vpop.f32.mrf.mxu0
        %v2628 = vadd.f32 %v579, %v2627
        %v2629 = vpop.f32.mrf.mxu0
        %v2630 = vadd.f32 %v579, %v2629
        %2631 = vmatmul.bf16.gmra.mxu0 %v1190
        %v2632 = vpop.f32.mrf.mxu0
        %v2633 = vadd.f32 %v579, %v2632
        %v2634 = vpop.f32.mrf.mxu0
        %v2635 = vadd.f32 %v579, %v2634
        %2636 = vmatmul.bf16.gmra.mxu0 %v1191
        %v2637 = vpop.f32.mrf.mxu0
        %v2638 = vadd.f32 %v579, %v2637
        %v2639 = vpop.f32.mrf.mxu0
        %v2640 = vadd.f32 %v579, %v2639
        %2641 = vmatmul.bf16.gmra.mxu0 %v1192
        %v2642 = vpop.f32.mrf.mxu0
        %v2643 = vadd.f32 %v579, %v2642
        %v2644 = vpop.f32.mrf.mxu0
        %v2645 = vadd.f32 %v579, %v2644
        %2646 = vmatmul.bf16.gmra.mxu0 %v1193
        %v2647 = vpop.f32.mrf.mxu0
        %v2648 = vadd.f32 %v579, %v2647
        %v2649 = vpop.f32.mrf.mxu0
        %v2650 = vadd.f32 %v579, %v2649
        %2651 = vmatmul.bf16.gmra.mxu0 %v1194
        %v2652 = vpop.f32.mrf.mxu0
        %v2653 = vadd.f32 %v579, %v2652
        %v2654 = vpop.f32.mrf.mxu0
        %v2655 = vadd.f32 %v579, %v2654
        %2656 = vmatmul.bf16.gmra.mxu0 %v1195
        %v2657 = vpop.f32.mrf.mxu0
        %v2658 = vadd.f32 %v579, %v2657
        %v2659 = vpop.f32.mrf.mxu0
        %v2660 = vadd.f32 %v579, %v2659
        %2661 = vmatmul.bf16.gmra.mxu0 %v1196
        %v2662 = vpop.f32.mrf.mxu0
        %v2663 = vadd.f32 %v579, %v2662
        %v2664 = vpop.f32.mrf.mxu0
        %v2665 = vadd.f32 %v579, %v2664
        %2666 = vmatmul.bf16.gmra.mxu0 %v1197
        %v2667 = vpop.f32.mrf.mxu0
        %v2668 = vadd.f32 %v579, %v2667
        %v2669 = vpop.f32.mrf.mxu0
        %v2670 = vadd.f32 %v579, %v2669
        %2671 = vmatmul.bf16.gmra.mxu0 %v1198
        %v2672 = vpop.f32.mrf.mxu0
        %v2673 = vadd.f32 %v579, %v2672
        %v2674 = vpop.f32.mrf.mxu0
        %v2675 = vadd.f32 %v579, %v2674
        %2676 = vmatmul.bf16.gmra.mxu0 %v1199
        %v2677 = vpop.f32.mrf.mxu0
        %v2678 = vadd.f32 %v579, %v2677
        %v2679 = vpop.f32.mrf.mxu0
        %v2680 = vadd.f32 %v579, %v2679
        %2681 = vmatmul.bf16.gmra.mxu0 %v1200
        %v2682 = vpop.f32.mrf.mxu0
        %v2683 = vadd.f32 %v579, %v2682
        %v2684 = vpop.f32.mrf.mxu0
        %v2685 = vadd.f32 %v579, %v2684
        %2686 = vmatmul.bf16.gmra.mxu0 %v1201
        %v2687 = vpop.f32.mrf.mxu0
        %v2688 = vadd.f32 %v579, %v2687
        %v2689 = vpop.f32.mrf.mxu0
        %v2690 = vadd.f32 %v579, %v2689
        %2691 = vmatmul.bf16.gmra.mxu0 %v1202
        %v2692 = vpop.f32.mrf.mxu0
        %v2693 = vadd.f32 %v579, %v2692
        %v2694 = vpop.f32.mrf.mxu0
        %v2695 = vadd.f32 %v579, %v2694
        %2696 = vmatmul.bf16.gmra.mxu0 %v1203
        %v2697 = vpop.f32.mrf.mxu0
        %v2698 = vadd.f32 %v579, %v2697
        %v2699 = vpop.f32.mrf.mxu0
        %v2700 = vadd.f32 %v579, %v2699
        %2701 = vmatmul.bf16.gmra.mxu0 %v1204
        %v2702 = vpop.f32.mrf.mxu0
        %v2703 = vadd.f32 %v579, %v2702
        %v2704 = vpop.f32.mrf.mxu0
        %v2705 = vadd.f32 %v579, %v2704
        %2706 = vmatmul.bf16.gmra.mxu0 %v1205
        %v2707 = vpop.f32.mrf.mxu0
        %v2708 = vadd.f32 %v579, %v2707
        %v2709 = vpop.f32.mrf.mxu0
        %v2710 = vadd.f32 %v579, %v2709
        %2711 = vmatmul.bf16.gmra.mxu0 %v1206
        %v2712 = vpop.f32.mrf.mxu0
        %v2713 = vadd.f32 %v579, %v2712
        %v2714 = vpop.f32.mrf.mxu0
        %v2715 = vadd.f32 %v579, %v2714
        %2716 = vmatmul.bf16.gmra.mxu0 %v1207
        %v2717 = vpop.f32.mrf.mxu0
        %v2718 = vadd.f32 %v579, %v2717
        %v2719 = vpop.f32.mrf.mxu0
        %v2720 = vadd.f32 %v579, %v2719
        %2721 = vmatmul.bf16.gmra.mxu0 %v1208
        %v2722 = vpop.f32.mrf.mxu0
        %v2723 = vadd.f32 %v579, %v2722
        %v2724 = vpop.f32.mrf.mxu0
        %v2725 = vadd.f32 %v579, %v2724
        %2726 = vmatmul.bf16.gmra.mxu0 %v1209
        %v2727 = vpop.f32.mrf.mxu0
        %v2728 = vadd.f32 %v579, %v2727
        %v2729 = vpop.f32.mrf.mxu0
        %v2730 = vadd.f32 %v579, %v2729
        %2731 = vmatmul.bf16.gmra.mxu0 %v1210
        %v2732 = vpop.f32.mrf.mxu0
        %v2733 = vadd.f32 %v579, %v2732
        %v2734 = vpop.f32.mrf.mxu0
        %v2735 = vadd.f32 %v579, %v2734
        %2736 = vmatmul.bf16.gmra.mxu0 %v1211
        %v2737 = vpop.f32.mrf.mxu0
        %v2738 = vadd.f32 %v579, %v2737
        %v2739 = vpop.f32.mrf.mxu0
        %v2740 = vadd.f32 %v579, %v2739
        %2741 = vmatmul.bf16.gmra.mxu0 %v1212
        %v2742 = vpop.f32.mrf.mxu0
        %v2743 = vadd.f32 %v579, %v2742
        %v2744 = vpop.f32.mrf.mxu0
        %v2745 = vadd.f32 %v579, %v2744
        %2746 = vmatmul.bf16.gmra.mxu0 %v1213
        %v2747 = vpop.f32.mrf.mxu0
        %v2748 = vadd.f32 %v579, %v2747
        %v2749 = vpop.f32.mrf.mxu0
        %v2750 = vadd.f32 %v579, %v2749
        %2751 = vmatmul.bf16.gmra.mxu0 %v1214
        %v2752 = vpop.f32.mrf.mxu0
        %v2753 = vadd.f32 %v579, %v2752
        %v2754 = vpop.f32.mrf.mxu0
        %v2755 = vadd.f32 %v579, %v2754
        %2756 = vmatmul.bf16.gmra.mxu0 %v1215
        %v2757 = vpop.f32.mrf.mxu0
        %v2758 = vadd.f32 %v579, %v2757
        %v2759 = vpop.f32.mrf.mxu0
        %v2760 = vadd.f32 %v579, %v2759
        %2761 = vmatmul.bf16.gmra.mxu0 %v1216
        %v2762 = vpop.f32.mrf.mxu0
        %v2763 = vadd.f32 %v579, %v2762
        %v2764 = vpop.f32.mrf.mxu0
        %v2765 = vadd.f32 %v579, %v2764
        %2766 = vmatmul.bf16.gmra.mxu0 %v1217
        %v2767 = vpop.f32.mrf.mxu0
        %v2768 = vadd.f32 %v579, %v2767
        %v2769 = vpop.f32.mrf.mxu0
        %v2770 = vadd.f32 %v579, %v2769
        %2771 = vmatmul.bf16.gmra.mxu0 %v1218
        %v2772 = vpop.f32.mrf.mxu0
        %v2773 = vadd.f32 %v579, %v2772
        %v2774 = vpop.f32.mrf.mxu0
        %v2775 = vadd.f32 %v579, %v2774
        %2776 = vmatmul.bf16.gmra.mxu0 %v1219
        %v2777 = vpop.f32.mrf.mxu0
        %v2778 = vadd.f32 %v579, %v2777
        %v2779 = vpop.f32.mrf.mxu0
        %v2780 = vadd.f32 %v579, %v2779
        %2781 = vmatmul.bf16.gmra.mxu0 %v1220
        %v2782 = vpop.f32.mrf.mxu0
        %v2783 = vadd.f32 %v579, %v2782
        %v2784 = vpop.f32.mrf.mxu0
        %v2785 = vadd.f32 %v579, %v2784
        %2786 = vmatmul.bf16.gmra.mxu0 %v1221
        %v2787 = vpop.f32.mrf.mxu0
        %v2788 = vadd.f32 %v579, %v2787
        %v2789 = vpop.f32.mrf.mxu0
        %v2790 = vadd.f32 %v579, %v2789
        %2791 = vmatmul.bf16.gmra.mxu0 %v1222
        %v2792 = vpop.f32.mrf.mxu0
        %v2793 = vadd.f32 %v579, %v2792
        %v2794 = vpop.f32.mrf.mxu0
        %v2795 = vadd.f32 %v579, %v2794
        %2796 = vmatmul.bf16.gmra.mxu0 %v1223
        %v2797 = vpop.f32.mrf.mxu0
        %v2798 = vadd.f32 %v579, %v2797
        %v2799 = vpop.f32.mrf.mxu0
        %v2800 = vadd.f32 %v579, %v2799
        %2801 = vmatmul.bf16.gmra.mxu0 %v1224
        %v2802 = vpop.f32.mrf.mxu0
        %v2803 = vadd.f32 %v579, %v2802
        %v2804 = vpop.f32.mrf.mxu0
        %v2805 = vadd.f32 %v579, %v2804
        %2806 = vmatmul.bf16.gmra.mxu0 %v1225
        %v2807 = vpop.f32.mrf.mxu0
        %v2808 = vadd.f32 %v579, %v2807
        %v2809 = vpop.f32.mrf.mxu0
        %v2810 = vadd.f32 %v579, %v2809
        %2811 = vdwg.mxu0
        %2812 = vmatpush.bf16.msra.mxu0 %v1480
        %2813 = vmatpush.bf16.msra.mxu0 %v1476
        %2814 = vmatpush.bf16.msra.mxu0 %v1472
        %2815 = vmatpush.bf16.msra.mxu0 %v1468
        %2816 = vmatpush.bf16.msra.mxu0 %v1464
        %2817 = vmatpush.bf16.msra.mxu0 %v1460
        %2818 = vmatpush.bf16.msra.mxu0 %v1456
        %2819 = vmatpush.bf16.msra.mxu0 %v1452
        %2820 = vmatmul.bf16.gmra.mxu0 %v1098
        %v2821 = vpop.f32.mrf.mxu0
        %v2822 = vadd.f32 %v580, %v2821
        %v2823 = vpop.f32.mrf.mxu0
        %v2824 = vadd.f32 %v580, %v2823
        %2825 = vmatmul.bf16.gmra.mxu0 %v1099
        %v2826 = vpop.f32.mrf.mxu0
        %v2827 = vadd.f32 %v580, %v2826
        %v2828 = vpop.f32.mrf.mxu0
        %v2829 = vadd.f32 %v580, %v2828
        %2830 = vmatmul.bf16.gmra.mxu0 %v1100
        %v2831 = vpop.f32.mrf.mxu0
        %v2832 = vadd.f32 %v580, %v2831
        %v2833 = vpop.f32.mrf.mxu0
        %v2834 = vadd.f32 %v580, %v2833
        %2835 = vmatmul.bf16.gmra.mxu0 %v1101
        %v2836 = vpop.f32.mrf.mxu0
        %v2837 = vadd.f32 %v580, %v2836
        %v2838 = vpop.f32.mrf.mxu0
        %v2839 = vadd.f32 %v580, %v2838
        %2840 = vmatmul.bf16.gmra.mxu0 %v1102
        %v2841 = vpop.f32.mrf.mxu0
        %v2842 = vadd.f32 %v580, %v2841
        %v2843 = vpop.f32.mrf.mxu0
        %v2844 = vadd.f32 %v580, %v2843
        %2845 = vmatmul.bf16.gmra.mxu0 %v1103
        %v2846 = vpop.f32.mrf.mxu0
        %v2847 = vadd.f32 %v580, %v2846
        %v2848 = vpop.f32.mrf.mxu0
        %v2849 = vadd.f32 %v580, %v2848
        %2850 = vmatmul.bf16.gmra.mxu0 %v1104
        %v2851 = vpop.f32.mrf.mxu0
        %v2852 = vadd.f32 %v580, %v2851
        %v2853 = vpop.f32.mrf.mxu0
        %v2854 = vadd.f32 %v580, %v2853
        %2855 = vmatmul.bf16.gmra.mxu0 %v1105
        %v2856 = vpop.f32.mrf.mxu0
        %v2857 = vadd.f32 %v580, %v2856
        %v2858 = vpop.f32.mrf.mxu0
        %v2859 = vadd.f32 %v580, %v2858
        %2860 = vmatmul.bf16.gmra.mxu0 %v1106
        %v2861 = vpop.f32.mrf.mxu0
        %v2862 = vadd.f32 %v580, %v2861
        %v2863 = vpop.f32.mrf.mxu0
        %v2864 = vadd.f32 %v580, %v2863
        %2865 = vmatmul.bf16.gmra.mxu0 %v1107
        %v2866 = vpop.f32.mrf.mxu0
        %v2867 = vadd.f32 %v580, %v2866
        %v2868 = vpop.f32.mrf.mxu0
        %v2869 = vadd.f32 %v580, %v2868
        %2870 = vmatmul.bf16.gmra.mxu0 %v1108
        %v2871 = vpop.f32.mrf.mxu0
        %v2872 = vadd.f32 %v580, %v2871
        %v2873 = vpop.f32.mrf.mxu0
        %v2874 = vadd.f32 %v580, %v2873
        %2875 = vmatmul.bf16.gmra.mxu0 %v1109
        %v2876 = vpop.f32.mrf.mxu0
        %v2877 = vadd.f32 %v580, %v2876
        %v2878 = vpop.f32.mrf.mxu0
        %v2879 = vadd.f32 %v580, %v2878
        %2880 = vmatmul.bf16.gmra.mxu0 %v1110
        %v2881 = vpop.f32.mrf.mxu0
        %v2882 = vadd.f32 %v580, %v2881
        %v2883 = vpop.f32.mrf.mxu0
        %v2884 = vadd.f32 %v580, %v2883
        %2885 = vmatmul.bf16.gmra.mxu0 %v1111
        %v2886 = vpop.f32.mrf.mxu0
        %v2887 = vadd.f32 %v580, %v2886
        %v2888 = vpop.f32.mrf.mxu0
        %v2889 = vadd.f32 %v580, %v2888
        %2890 = vmatmul.bf16.gmra.mxu0 %v1112
        %v2891 = vpop.f32.mrf.mxu0
        %v2892 = vadd.f32 %v580, %v2891
        %v2893 = vpop.f32.mrf.mxu0
        %v2894 = vadd.f32 %v580, %v2893
        %2895 = vmatmul.bf16.gmra.mxu0 %v1113
        %v2896 = vpop.f32.mrf.mxu0
        %v2897 = vadd.f32 %v580, %v2896
        %v2898 = vpop.f32.mrf.mxu0
        %v2899 = vadd.f32 %v580, %v2898
        %2900 = vmatmul.bf16.gmra.mxu0 %v1114
        %v2901 = vpop.f32.mrf.mxu0
        %v2902 = vadd.f32 %v580, %v2901
        %v2903 = vpop.f32.mrf.mxu0
        %v2904 = vadd.f32 %v580, %v2903
        %2905 = vmatmul.bf16.gmra.mxu0 %v1115
        %v2906 = vpop.f32.mrf.mxu0
        %v2907 = vadd.f32 %v580, %v2906
        %v2908 = vpop.f32.mrf.mxu0
        %v2909 = vadd.f32 %v580, %v2908
        %2910 = vmatmul.bf16.gmra.mxu0 %v1116
        %v2911 = vpop.f32.mrf.mxu0
        %v2912 = vadd.f32 %v580, %v2911
        %v2913 = vpop.f32.mrf.mxu0
        %v2914 = vadd.f32 %v580, %v2913
        %2915 = vmatmul.bf16.gmra.mxu0 %v1117
        %v2916 = vpop.f32.mrf.mxu0
        %v2917 = vadd.f32 %v580, %v2916
        %v2918 = vpop.f32.mrf.mxu0
        %v2919 = vadd.f32 %v580, %v2918
        %2920 = vmatmul.bf16.gmra.mxu0 %v1118
        %v2921 = vpop.f32.mrf.mxu0
        %v2922 = vadd.f32 %v580, %v2921
        %v2923 = vpop.f32.mrf.mxu0
        %v2924 = vadd.f32 %v580, %v2923
        %2925 = vmatmul.bf16.gmra.mxu0 %v1119
        %v2926 = vpop.f32.mrf.mxu0
        %v2927 = vadd.f32 %v580, %v2926
        %v2928 = vpop.f32.mrf.mxu0
        %v2929 = vadd.f32 %v580, %v2928
        %2930 = vmatmul.bf16.gmra.mxu0 %v1120
        %v2931 = vpop.f32.mrf.mxu0
        %v2932 = vadd.f32 %v580, %v2931
        %v2933 = vpop.f32.mrf.mxu0
        %v2934 = vadd.f32 %v580, %v2933
        %2935 = vmatmul.bf16.gmra.mxu0 %v1121
        %v2936 = vpop.f32.mrf.mxu0
        %v2937 = vadd.f32 %v580, %v2936
        %v2938 = vpop.f32.mrf.mxu0
        %v2939 = vadd.f32 %v580, %v2938
        %2940 = vmatmul.bf16.gmra.mxu0 %v1122
        %v2941 = vpop.f32.mrf.mxu0
        %v2942 = vadd.f32 %v580, %v2941
        %v2943 = vpop.f32.mrf.mxu0
        %v2944 = vadd.f32 %v580, %v2943
        %2945 = vmatmul.bf16.gmra.mxu0 %v1123
        %v2946 = vpop.f32.mrf.mxu0
        %v2947 = vadd.f32 %v580, %v2946
        %v2948 = vpop.f32.mrf.mxu0
        %v2949 = vadd.f32 %v580, %v2948
        %2950 = vmatmul.bf16.gmra.mxu0 %v1124
        %v2951 = vpop.f32.mrf.mxu0
        %v2952 = vadd.f32 %v580, %v2951
        %v2953 = vpop.f32.mrf.mxu0
        %v2954 = vadd.f32 %v580, %v2953
        %2955 = vmatmul.bf16.gmra.mxu0 %v1125
        %v2956 = vpop.f32.mrf.mxu0
        %v2957 = vadd.f32 %v580, %v2956
        %v2958 = vpop.f32.mrf.mxu0
        %v2959 = vadd.f32 %v580, %v2958
        %2960 = vmatmul.bf16.gmra.mxu0 %v1126
        %v2961 = vpop.f32.mrf.mxu0
        %v2962 = vadd.f32 %v580, %v2961
        %v2963 = vpop.f32.mrf.mxu0
        %v2964 = vadd.f32 %v580, %v2963
        %2965 = vmatmul.bf16.gmra.mxu0 %v1127
        %v2966 = vpop.f32.mrf.mxu0
        %v2967 = vadd.f32 %v580, %v2966
        %v2968 = vpop.f32.mrf.mxu0
        %v2969 = vadd.f32 %v580, %v2968
        %2970 = vmatmul.bf16.gmra.mxu0 %v1128
        %v2971 = vpop.f32.mrf.mxu0
        %v2972 = vadd.f32 %v580, %v2971
        %v2973 = vpop.f32.mrf.mxu0
        %v2974 = vadd.f32 %v580, %v2973
        %2975 = vmatmul.bf16.gmra.mxu0 %v1129
        %v2976 = vpop.f32.mrf.mxu0
        %v2977 = vadd.f32 %v580, %v2976
        %v2978 = vpop.f32.mrf.mxu0
        %v2979 = vadd.f32 %v580, %v2978
        %2980 = vmatmul.bf16.gmra.mxu0 %v1130
        %v2981 = vpop.f32.mrf.mxu0
        %v2982 = vadd.f32 %v580, %v2981
        %v2983 = vpop.f32.mrf.mxu0
        %v2984 = vadd.f32 %v580, %v2983
        %2985 = vmatmul.bf16.gmra.mxu0 %v1131
        %v2986 = vpop.f32.mrf.mxu0
        %v2987 = vadd.f32 %v580, %v2986
        %v2988 = vpop.f32.mrf.mxu0
        %v2989 = vadd.f32 %v580, %v2988
        %2990 = vmatmul.bf16.gmra.mxu0 %v1132
        %v2991 = vpop.f32.mrf.mxu0
        %v2992 = vadd.f32 %v580, %v2991
        %v2993 = vpop.f32.mrf.mxu0
        %v2994 = vadd.f32 %v580, %v2993
        %2995 = vmatmul.bf16.gmra.mxu0 %v1133
        %v2996 = vpop.f32.mrf.mxu0
        %v2997 = vadd.f32 %v580, %v2996
        %v2998 = vpop.f32.mrf.mxu0
        %v2999 = vadd.f32 %v580, %v2998
        %3000 = vmatmul.bf16.gmra.mxu0 %v1134
        %v3001 = vpop.f32.mrf.mxu0
        %v3002 = vadd.f32 %v580, %v3001
        %v3003 = vpop.f32.mrf.mxu0
        %v3004 = vadd.f32 %v580, %v3003
        %3005 = vmatmul.bf16.gmra.mxu0 %v1135
        %v3006 = vpop.f32.mrf.mxu0
        %v3007 = vadd.f32 %v580, %v3006
        %v3008 = vpop.f32.mrf.mxu0
        %v3009 = vadd.f32 %v580, %v3008
        %3010 = vmatmul.bf16.gmra.mxu0 %v1136
        %v3011 = vpop.f32.mrf.mxu0
        %v3012 = vadd.f32 %v580, %v3011
        %v3013 = vpop.f32.mrf.mxu0
        %v3014 = vadd.f32 %v580, %v3013
        %3015 = vmatmul.bf16.gmra.mxu0 %v1137
        %v3016 = vpop.f32.mrf.mxu0
        %v3017 = vadd.f32 %v580, %v3016
        %v3018 = vpop.f32.mrf.mxu0
        %v3019 = vadd.f32 %v580, %v3018
        %3020 = vmatmul.bf16.gmra.mxu0 %v1138
        %v3021 = vpop.f32.mrf.mxu0
        %v3022 = vadd.f32 %v580, %v3021
        %v3023 = vpop.f32.mrf.mxu0
        %v3024 = vadd.f32 %v580, %v3023
        %3025 = vmatmul.bf16.gmra.mxu0 %v1139
        %v3026 = vpop.f32.mrf.mxu0
        %v3027 = vadd.f32 %v580, %v3026
        %v3028 = vpop.f32.mrf.mxu0
        %v3029 = vadd.f32 %v580, %v3028
        %3030 = vmatmul.bf16.gmra.mxu0 %v1140
        %v3031 = vpop.f32.mrf.mxu0
        %v3032 = vadd.f32 %v580, %v3031
        %v3033 = vpop.f32.mrf.mxu0
        %v3034 = vadd.f32 %v580, %v3033
        %3035 = vmatmul.bf16.gmra.mxu0 %v1141
        %v3036 = vpop.f32.mrf.mxu0
        %v3037 = vadd.f32 %v580, %v3036
        %v3038 = vpop.f32.mrf.mxu0
        %v3039 = vadd.f32 %v580, %v3038
        %3040 = vmatmul.bf16.gmra.mxu0 %v1142
        %v3041 = vpop.f32.mrf.mxu0
        %v3042 = vadd.f32 %v580, %v3041
        %v3043 = vpop.f32.mrf.mxu0
        %v3044 = vadd.f32 %v580, %v3043
        %3045 = vmatmul.bf16.gmra.mxu0 %v1143
        %v3046 = vpop.f32.mrf.mxu0
        %v3047 = vadd.f32 %v580, %v3046
        %v3048 = vpop.f32.mrf.mxu0
        %v3049 = vadd.f32 %v580, %v3048
        %3050 = vmatmul.bf16.gmra.mxu0 %v1144
        %v3051 = vpop.f32.mrf.mxu0
        %v3052 = vadd.f32 %v580, %v3051
        %v3053 = vpop.f32.mrf.mxu0
        %v3054 = vadd.f32 %v580, %v3053
        %3055 = vmatmul.bf16.gmra.mxu0 %v1145
        %v3056 = vpop.f32.mrf.mxu0
        %v3057 = vadd.f32 %v580, %v3056
        %v3058 = vpop.f32.mrf.mxu0
        %v3059 = vadd.f32 %v580, %v3058
        %3060 = vmatmul.bf16.gmra.mxu0 %v1146
        %v3061 = vpop.f32.mrf.mxu0
        %v3062 = vadd.f32 %v580, %v3061
        %v3063 = vpop.f32.mrf.mxu0
        %v3064 = vadd.f32 %v580, %v3063
        %3065 = vmatmul.bf16.gmra.mxu0 %v1147
        %v3066 = vpop.f32.mrf.mxu0
        %v3067 = vadd.f32 %v580, %v3066
        %v3068 = vpop.f32.mrf.mxu0
        %v3069 = vadd.f32 %v580, %v3068
        %3070 = vmatmul.bf16.gmra.mxu0 %v1148
        %v3071 = vpop.f32.mrf.mxu0
        %v3072 = vadd.f32 %v580, %v3071
        %v3073 = vpop.f32.mrf.mxu0
        %v3074 = vadd.f32 %v580, %v3073
        %3075 = vmatmul.bf16.gmra.mxu0 %v1149
        %v3076 = vpop.f32.mrf.mxu0
        %v3077 = vadd.f32 %v580, %v3076
        %v3078 = vpop.f32.mrf.mxu0
        %v3079 = vadd.f32 %v580, %v3078
        %3080 = vmatmul.bf16.gmra.mxu0 %v1150
        %v3081 = vpop.f32.mrf.mxu0
        %v3082 = vadd.f32 %v580, %v3081
        %v3083 = vpop.f32.mrf.mxu0
        %v3084 = vadd.f32 %v580, %v3083
        %3085 = vmatmul.bf16.gmra.mxu0 %v1151
        %v3086 = vpop.f32.mrf.mxu0
        %v3087 = vadd.f32 %v580, %v3086
        %v3088 = vpop.f32.mrf.mxu0
        %v3089 = vadd.f32 %v580, %v3088
        %3090 = vmatmul.bf16.gmra.mxu0 %v1152
        %v3091 = vpop.f32.mrf.mxu0
        %v3092 = vadd.f32 %v580, %v3091
        %v3093 = vpop.f32.mrf.mxu0
        %v3094 = vadd.f32 %v580, %v3093
        %3095 = vmatmul.bf16.gmra.mxu0 %v1153
        %v3096 = vpop.f32.mrf.mxu0
        %v3097 = vadd.f32 %v580, %v3096
        %v3098 = vpop.f32.mrf.mxu0
        %v3099 = vadd.f32 %v580, %v3098
        %3100 = vmatmul.bf16.gmra.mxu0 %v1154
        %v3101 = vpop.f32.mrf.mxu0
        %v3102 = vadd.f32 %v580, %v3101
        %v3103 = vpop.f32.mrf.mxu0
        %v3104 = vadd.f32 %v580, %v3103
        %3105 = vmatmul.bf16.gmra.mxu0 %v1155
        %v3106 = vpop.f32.mrf.mxu0
        %v3107 = vadd.f32 %v580, %v3106
        %v3108 = vpop.f32.mrf.mxu0
        %v3109 = vadd.f32 %v580, %v3108
        %3110 = vmatmul.bf16.gmra.mxu0 %v1156
        %v3111 = vpop.f32.mrf.mxu0
        %v3112 = vadd.f32 %v580, %v3111
        %v3113 = vpop.f32.mrf.mxu0
        %v3114 = vadd.f32 %v580, %v3113
        %3115 = vmatmul.bf16.gmra.mxu0 %v1157
        %v3116 = vpop.f32.mrf.mxu0
        %v3117 = vadd.f32 %v580, %v3116
        %v3118 = vpop.f32.mrf.mxu0
        %v3119 = vadd.f32 %v580, %v3118
        %3120 = vmatmul.bf16.gmra.mxu0 %v1158
        %v3121 = vpop.f32.mrf.mxu0
        %v3122 = vadd.f32 %v580, %v3121
        %v3123 = vpop.f32.mrf.mxu0
        %v3124 = vadd.f32 %v580, %v3123
        %3125 = vmatmul.bf16.gmra.mxu0 %v1159
        %v3126 = vpop.f32.mrf.mxu0
        %v3127 = vadd.f32 %v580, %v3126
        %v3128 = vpop.f32.mrf.mxu0
        %v3129 = vadd.f32 %v580, %v3128
        %3130 = vmatmul.bf16.gmra.mxu0 %v1160
        %v3131 = vpop.f32.mrf.mxu0
        %v3132 = vadd.f32 %v580, %v3131
        %v3133 = vpop.f32.mrf.mxu0
        %v3134 = vadd.f32 %v580, %v3133
        %3135 = vmatmul.bf16.gmra.mxu0 %v1161
        %v3136 = vpop.f32.mrf.mxu0
        %v3137 = vadd.f32 %v580, %v3136
        %v3138 = vpop.f32.mrf.mxu0
        %v3139 = vadd.f32 %v580, %v3138
        %3140 = vmatmul.bf16.gmra.mxu0 %v1162
        %v3141 = vpop.f32.mrf.mxu0
        %v3142 = vadd.f32 %v580, %v3141
        %v3143 = vpop.f32.mrf.mxu0
        %v3144 = vadd.f32 %v580, %v3143
        %3145 = vmatmul.bf16.gmra.mxu0 %v1163
        %v3146 = vpop.f32.mrf.mxu0
        %v3147 = vadd.f32 %v580, %v3146
        %v3148 = vpop.f32.mrf.mxu0
        %v3149 = vadd.f32 %v580, %v3148
        %3150 = vmatmul.bf16.gmra.mxu0 %v1164
        %v3151 = vpop.f32.mrf.mxu0
        %v3152 = vadd.f32 %v580, %v3151
        %v3153 = vpop.f32.mrf.mxu0
        %v3154 = vadd.f32 %v580, %v3153
        %3155 = vmatmul.bf16.gmra.mxu0 %v1165
        %v3156 = vpop.f32.mrf.mxu0
        %v3157 = vadd.f32 %v580, %v3156
        %v3158 = vpop.f32.mrf.mxu0
        %v3159 = vadd.f32 %v580, %v3158
        %3160 = vmatmul.bf16.gmra.mxu0 %v1166
        %v3161 = vpop.f32.mrf.mxu0
        %v3162 = vadd.f32 %v580, %v3161
        %v3163 = vpop.f32.mrf.mxu0
        %v3164 = vadd.f32 %v580, %v3163
        %3165 = vmatmul.bf16.gmra.mxu0 %v1167
        %v3166 = vpop.f32.mrf.mxu0
        %v3167 = vadd.f32 %v580, %v3166
        %v3168 = vpop.f32.mrf.mxu0
        %v3169 = vadd.f32 %v580, %v3168
        %3170 = vmatmul.bf16.gmra.mxu0 %v1168
        %v3171 = vpop.f32.mrf.mxu0
        %v3172 = vadd.f32 %v580, %v3171
        %v3173 = vpop.f32.mrf.mxu0
        %v3174 = vadd.f32 %v580, %v3173
        %3175 = vmatmul.bf16.gmra.mxu0 %v1169
        %v3176 = vpop.f32.mrf.mxu0
        %v3177 = vadd.f32 %v580, %v3176
        %v3178 = vpop.f32.mrf.mxu0
        %v3179 = vadd.f32 %v580, %v3178
        %3180 = vmatmul.bf16.gmra.mxu0 %v1170
        %v3181 = vpop.f32.mrf.mxu0
        %v3182 = vadd.f32 %v580, %v3181
        %v3183 = vpop.f32.mrf.mxu0
        %v3184 = vadd.f32 %v580, %v3183
        %3185 = vmatmul.bf16.gmra.mxu0 %v1171
        %v3186 = vpop.f32.mrf.mxu0
        %v3187 = vadd.f32 %v580, %v3186
        %v3188 = vpop.f32.mrf.mxu0
        %v3189 = vadd.f32 %v580, %v3188
        %3190 = vmatmul.bf16.gmra.mxu0 %v1172
        %v3191 = vpop.f32.mrf.mxu0
        %v3192 = vadd.f32 %v580, %v3191
        %v3193 = vpop.f32.mrf.mxu0
        %v3194 = vadd.f32 %v580, %v3193
        %3195 = vmatmul.bf16.gmra.mxu0 %v1173
        %v3196 = vpop.f32.mrf.mxu0
        %v3197 = vadd.f32 %v580, %v3196
        %v3198 = vpop.f32.mrf.mxu0
        %v3199 = vadd.f32 %v580, %v3198
        %3200 = vmatmul.bf16.gmra.mxu0 %v1174
        %v3201 = vpop.f32.mrf.mxu0
        %v3202 = vadd.f32 %v580, %v3201
        %v3203 = vpop.f32.mrf.mxu0
        %v3204 = vadd.f32 %v580, %v3203
        %3205 = vmatmul.bf16.gmra.mxu0 %v1175
        %v3206 = vpop.f32.mrf.mxu0
        %v3207 = vadd.f32 %v580, %v3206
        %v3208 = vpop.f32.mrf.mxu0
        %v3209 = vadd.f32 %v580, %v3208
        %3210 = vmatmul.bf16.gmra.mxu0 %v1176
        %v3211 = vpop.f32.mrf.mxu0
        %v3212 = vadd.f32 %v580, %v3211
        %v3213 = vpop.f32.mrf.mxu0
        %v3214 = vadd.f32 %v580, %v3213
        %3215 = vmatmul.bf16.gmra.mxu0 %v1177
        %v3216 = vpop.f32.mrf.mxu0
        %v3217 = vadd.f32 %v580, %v3216
        %v3218 = vpop.f32.mrf.mxu0
        %v3219 = vadd.f32 %v580, %v3218
        %3220 = vmatmul.bf16.gmra.mxu0 %v1178
        %v3221 = vpop.f32.mrf.mxu0
        %v3222 = vadd.f32 %v580, %v3221
        %v3223 = vpop.f32.mrf.mxu0
        %v3224 = vadd.f32 %v580, %v3223
        %3225 = vmatmul.bf16.gmra.mxu0 %v1179
        %v3226 = vpop.f32.mrf.mxu0
        %v3227 = vadd.f32 %v580, %v3226
        %v3228 = vpop.f32.mrf.mxu0
        %v3229 = vadd.f32 %v580, %v3228
        %3230 = vmatmul.bf16.gmra.mxu0 %v1180
        %v3231 = vpop.f32.mrf.mxu0
        %v3232 = vadd.f32 %v580, %v3231
        %v3233 = vpop.f32.mrf.mxu0
        %v3234 = vadd.f32 %v580, %v3233
        %3235 = vmatmul.bf16.gmra.mxu0 %v1181
        %v3236 = vpop.f32.mrf.mxu0
        %v3237 = vadd.f32 %v580, %v3236
        %v3238 = vpop.f32.mrf.mxu0
        %v3239 = vadd.f32 %v580, %v3238
        %3240 = vmatmul.bf16.gmra.mxu0 %v1182
        %v3241 = vpop.f32.mrf.mxu0
        %v3242 = vadd.f32 %v580, %v3241
        %v3243 = vpop.f32.mrf.mxu0
        %v3244 = vadd.f32 %v580, %v3243
        %3245 = vmatmul.bf16.gmra.mxu0 %v1183
        %v3246 = vpop.f32.mrf.mxu0
        %v3247 = vadd.f32 %v580, %v3246
        %v3248 = vpop.f32.mrf.mxu0
        %v3249 = vadd.f32 %v580, %v3248
        %3250 = vmatmul.bf16.gmra.mxu0 %v1184
        %v3251 = vpop.f32.mrf.mxu0
        %v3252 = vadd.f32 %v580, %v3251
        %v3253 = vpop.f32.mrf.mxu0
        %v3254 = vadd.f32 %v580, %v3253
        %3255 = vmatmul.bf16.gmra.mxu0 %v1185
        %v3256 = vpop.f32.mrf.mxu0
        %v3257 = vadd.f32 %v580, %v3256
        %v3258 = vpop.f32.mrf.mxu0
        %v3259 = vadd.f32 %v580, %v3258
        %3260 = vmatmul.bf16.gmra.mxu0 %v1186
        %v3261 = vpop.f32.mrf.mxu0
        %v3262 = vadd.f32 %v580, %v3261
        %v3263 = vpop.f32.mrf.mxu0
        %v3264 = vadd.f32 %v580, %v3263
        %3265 = vmatmul.bf16.gmra.mxu0 %v1187
        %v3266 = vpop.f32.mrf.mxu0
        %v3267 = vadd.f32 %v580, %v3266
        %v3268 = vpop.f32.mrf.mxu0
        %v3269 = vadd.f32 %v580, %v3268
        %3270 = vmatmul.bf16.gmra.mxu0 %v1188
        %v3271 = vpop.f32.mrf.mxu0
        %v3272 = vadd.f32 %v580, %v3271
        %v3273 = vpop.f32.mrf.mxu0
        %v3274 = vadd.f32 %v580, %v3273
        %3275 = vmatmul.bf16.gmra.mxu0 %v1189
        %v3276 = vpop.f32.mrf.mxu0
        %v3277 = vadd.f32 %v580, %v3276
        %v3278 = vpop.f32.mrf.mxu0
        %v3279 = vadd.f32 %v580, %v3278
        %3280 = vmatmul.bf16.gmra.mxu0 %v1190
        %v3281 = vpop.f32.mrf.mxu0
        %v3282 = vadd.f32 %v580, %v3281
        %v3283 = vpop.f32.mrf.mxu0
        %v3284 = vadd.f32 %v580, %v3283
        %3285 = vmatmul.bf16.gmra.mxu0 %v1191
        %v3286 = vpop.f32.mrf.mxu0
        %v3287 = vadd.f32 %v580, %v3286
        %v3288 = vpop.f32.mrf.mxu0
        %v3289 = vadd.f32 %v580, %v3288
        %3290 = vmatmul.bf16.gmra.mxu0 %v1192
        %v3291 = vpop.f32.mrf.mxu0
        %v3292 = vadd.f32 %v580, %v3291
        %v3293 = vpop.f32.mrf.mxu0
        %v3294 = vadd.f32 %v580, %v3293
        %3295 = vmatmul.bf16.gmra.mxu0 %v1193
        %v3296 = vpop.f32.mrf.mxu0
        %v3297 = vadd.f32 %v580, %v3296
        %v3298 = vpop.f32.mrf.mxu0
        %v3299 = vadd.f32 %v580, %v3298
        %3300 = vmatmul.bf16.gmra.mxu0 %v1194
        %v3301 = vpop.f32.mrf.mxu0
        %v3302 = vadd.f32 %v580, %v3301
        %v3303 = vpop.f32.mrf.mxu0
        %v3304 = vadd.f32 %v580, %v3303
        %3305 = vmatmul.bf16.gmra.mxu0 %v1195
        %v3306 = vpop.f32.mrf.mxu0
        %v3307 = vadd.f32 %v580, %v3306
        %v3308 = vpop.f32.mrf.mxu0
        %v3309 = vadd.f32 %v580, %v3308
        %3310 = vmatmul.bf16.gmra.mxu0 %v1196
        %v3311 = vpop.f32.mrf.mxu0
        %v3312 = vadd.f32 %v580, %v3311
        %v3313 = vpop.f32.mrf.mxu0
        %v3314 = vadd.f32 %v580, %v3313
        %3315 = vmatmul.bf16.gmra.mxu0 %v1197
        %v3316 = vpop.f32.mrf.mxu0
        %v3317 = vadd.f32 %v580, %v3316
        %v3318 = vpop.f32.mrf.mxu0
        %v3319 = vadd.f32 %v580, %v3318
        %3320 = vmatmul.bf16.gmra.mxu0 %v1198
        %v3321 = vpop.f32.mrf.mxu0
        %v3322 = vadd.f32 %v580, %v3321
        %v3323 = vpop.f32.mrf.mxu0
        %v3324 = vadd.f32 %v580, %v3323
        %3325 = vmatmul.bf16.gmra.mxu0 %v1199
        %v3326 = vpop.f32.mrf.mxu0
        %v3327 = vadd.f32 %v580, %v3326
        %v3328 = vpop.f32.mrf.mxu0
        %v3329 = vadd.f32 %v580, %v3328
        %3330 = vmatmul.bf16.gmra.mxu0 %v1200
        %v3331 = vpop.f32.mrf.mxu0
        %v3332 = vadd.f32 %v580, %v3331
        %v3333 = vpop.f32.mrf.mxu0
        %v3334 = vadd.f32 %v580, %v3333
        %3335 = vmatmul.bf16.gmra.mxu0 %v1201
        %v3336 = vpop.f32.mrf.mxu0
        %v3337 = vadd.f32 %v580, %v3336
        %v3338 = vpop.f32.mrf.mxu0
        %v3339 = vadd.f32 %v580, %v3338
        %3340 = vmatmul.bf16.gmra.mxu0 %v1202
        %v3341 = vpop.f32.mrf.mxu0
        %v3342 = vadd.f32 %v580, %v3341
        %v3343 = vpop.f32.mrf.mxu0
        %v3344 = vadd.f32 %v580, %v3343
        %3345 = vmatmul.bf16.gmra.mxu0 %v1203
        %v3346 = vpop.f32.mrf.mxu0
        %v3347 = vadd.f32 %v580, %v3346
        %v3348 = vpop.f32.mrf.mxu0
        %v3349 = vadd.f32 %v580, %v3348
        %3350 = vmatmul.bf16.gmra.mxu0 %v1204
        %v3351 = vpop.f32.mrf.mxu0
        %v3352 = vadd.f32 %v580, %v3351
        %v3353 = vpop.f32.mrf.mxu0
        %v3354 = vadd.f32 %v580, %v3353
        %3355 = vmatmul.bf16.gmra.mxu0 %v1205
        %v3356 = vpop.f32.mrf.mxu0
        %v3357 = vadd.f32 %v580, %v3356
        %v3358 = vpop.f32.mrf.mxu0
        %v3359 = vadd.f32 %v580, %v3358
        %3360 = vmatmul.bf16.gmra.mxu0 %v1206
        %v3361 = vpop.f32.mrf.mxu0
        %v3362 = vadd.f32 %v580, %v3361
        %v3363 = vpop.f32.mrf.mxu0
        %v3364 = vadd.f32 %v580, %v3363
        %3365 = vmatmul.bf16.gmra.mxu0 %v1207
        %v3366 = vpop.f32.mrf.mxu0
        %v3367 = vadd.f32 %v580, %v3366
        %v3368 = vpop.f32.mrf.mxu0
        %v3369 = vadd.f32 %v580, %v3368
        %3370 = vmatmul.bf16.gmra.mxu0 %v1208
        %v3371 = vpop.f32.mrf.mxu0
        %v3372 = vadd.f32 %v580, %v3371
        %v3373 = vpop.f32.mrf.mxu0
        %v3374 = vadd.f32 %v580, %v3373
        %3375 = vmatmul.bf16.gmra.mxu0 %v1209
        %v3376 = vpop.f32.mrf.mxu0
        %v3377 = vadd.f32 %v580, %v3376
        %v3378 = vpop.f32.mrf.mxu0
        %v3379 = vadd.f32 %v580, %v3378
        %3380 = vmatmul.bf16.gmra.mxu0 %v1210
        %v3381 = vpop.f32.mrf.mxu0
        %v3382 = vadd.f32 %v580, %v3381
        %v3383 = vpop.f32.mrf.mxu0
        %v3384 = vadd.f32 %v580, %v3383
        %3385 = vmatmul.bf16.gmra.mxu0 %v1211
        %v3386 = vpop.f32.mrf.mxu0
        %v3387 = vadd.f32 %v580, %v3386
        %v3388 = vpop.f32.mrf.mxu0
        %v3389 = vadd.f32 %v580, %v3388
        %3390 = vmatmul.bf16.gmra.mxu0 %v1212
        %v3391 = vpop.f32.mrf.mxu0
        %v3392 = vadd.f32 %v580, %v3391
        %v3393 = vpop.f32.mrf.mxu0
        %v3394 = vadd.f32 %v580, %v3393
        %3395 = vmatmul.bf16.gmra.mxu0 %v1213
        %v3396 = vpop.f32.mrf.mxu0
        %v3397 = vadd.f32 %v580, %v3396
        %v3398 = vpop.f32.mrf.mxu0
        %v3399 = vadd.f32 %v580, %v3398
        %3400 = vmatmul.bf16.gmra.mxu0 %v1214
        %v3401 = vpop.f32.mrf.mxu0
        %v3402 = vadd.f32 %v580, %v3401
        %v3403 = vpop.f32.mrf.mxu0
        %v3404 = vadd.f32 %v580, %v3403
        %3405 = vmatmul.bf16.gmra.mxu0 %v1215
        %v3406 = vpop.f32.mrf.mxu0
        %v3407 = vadd.f32 %v580, %v3406
        %v3408 = vpop.f32.mrf.mxu0
        %v3409 = vadd.f32 %v580, %v3408
        %3410 = vmatmul.bf16.gmra.mxu0 %v1216
        %v3411 = vpop.f32.mrf.mxu0
        %v3412 = vadd.f32 %v580, %v3411
        %v3413 = vpop.f32.mrf.mxu0
        %v3414 = vadd.f32 %v580, %v3413
        %3415 = vmatmul.bf16.gmra.mxu0 %v1217
        %v3416 = vpop.f32.mrf.mxu0
        %v3417 = vadd.f32 %v580, %v3416
        %v3418 = vpop.f32.mrf.mxu0
        %v3419 = vadd.f32 %v580, %v3418
        %3420 = vmatmul.bf16.gmra.mxu0 %v1218
        %v3421 = vpop.f32.mrf.mxu0
        %v3422 = vadd.f32 %v580, %v3421
        %v3423 = vpop.f32.mrf.mxu0
        %v3424 = vadd.f32 %v580, %v3423
        %3425 = vmatmul.bf16.gmra.mxu0 %v1219
        %v3426 = vpop.f32.mrf.mxu0
        %v3427 = vadd.f32 %v580, %v3426
        %v3428 = vpop.f32.mrf.mxu0
        %v3429 = vadd.f32 %v580, %v3428
        %3430 = vmatmul.bf16.gmra.mxu0 %v1220
        %v3431 = vpop.f32.mrf.mxu0
        %v3432 = vadd.f32 %v580, %v3431
        %v3433 = vpop.f32.mrf.mxu0
        %v3434 = vadd.f32 %v580, %v3433
        %3435 = vmatmul.bf16.gmra.mxu0 %v1221
        %v3436 = vpop.f32.mrf.mxu0
        %v3437 = vadd.f32 %v580, %v3436
        %v3438 = vpop.f32.mrf.mxu0
        %v3439 = vadd.f32 %v580, %v3438
        %3440 = vmatmul.bf16.gmra.mxu0 %v1222
        %v3441 = vpop.f32.mrf.mxu0
        %v3442 = vadd.f32 %v580, %v3441
        %v3443 = vpop.f32.mrf.mxu0
        %v3444 = vadd.f32 %v580, %v3443
        %3445 = vmatmul.bf16.gmra.mxu0 %v1223
        %v3446 = vpop.f32.mrf.mxu0
        %v3447 = vadd.f32 %v580, %v3446
        %v3448 = vpop.f32.mrf.mxu0
        %v3449 = vadd.f32 %v580, %v3448
        %3450 = vmatmul.bf16.gmra.mxu0 %v1224
        %v3451 = vpop.f32.mrf.mxu0
        %v3452 = vadd.f32 %v580, %v3451
        %v3453 = vpop.f32.mrf.mxu0
        %v3454 = vadd.f32 %v580, %v3453
        %3455 = vmatmul.bf16.gmra.mxu0 %v1225
        %v3456 = vpop.f32.mrf.mxu0
        %v3457 = vadd.f32 %v580, %v3456
        %v3458 = vpop.f32.mrf.mxu0
        %v3459 = vadd.f32 %v580, %v3458
        %3460 = vdwg.mxu0
        %3461 = vmatpush.bf16.msra.mxu0 %v1481
        %3462 = vmatpush.bf16.msra.mxu0 %v1477
        %3463 = vmatpush.bf16.msra.mxu0 %v1473
        %3464 = vmatpush.bf16.msra.mxu0 %v1469
        %3465 = vmatpush.bf16.msra.mxu0 %v1465
        %3466 = vmatpush.bf16.msra.mxu0 %v1461
        %3467 = vmatpush.bf16.msra.mxu0 %v1457
        %3468 = vmatpush.bf16.msra.mxu0 %v1453
        %3469 = vmatmul.bf16.gmra.mxu0 %v1098
        %v3470 = vpop.f32.mrf.mxu0
        %v3471 = vadd.f32 %v581, %v3470
        %v3472 = vpop.f32.mrf.mxu0
        %v3473 = vadd.f32 %v581, %v3472
        %3474 = vmatmul.bf16.gmra.mxu0 %v1099
        %v3475 = vpop.f32.mrf.mxu0
        %v3476 = vadd.f32 %v581, %v3475
        %v3477 = vpop.f32.mrf.mxu0
        %v3478 = vadd.f32 %v581, %v3477
        %3479 = vmatmul.bf16.gmra.mxu0 %v1100
        %v3480 = vpop.f32.mrf.mxu0
        %v3481 = vadd.f32 %v581, %v3480
        %v3482 = vpop.f32.mrf.mxu0
        %v3483 = vadd.f32 %v581, %v3482
        %3484 = vmatmul.bf16.gmra.mxu0 %v1101
        %v3485 = vpop.f32.mrf.mxu0
        %v3486 = vadd.f32 %v581, %v3485
        %v3487 = vpop.f32.mrf.mxu0
        %v3488 = vadd.f32 %v581, %v3487
        %3489 = vmatmul.bf16.gmra.mxu0 %v1102
        %v3490 = vpop.f32.mrf.mxu0
        %v3491 = vadd.f32 %v581, %v3490
        %v3492 = vpop.f32.mrf.mxu0
        %v3493 = vadd.f32 %v581, %v3492
        %3494 = vmatmul.bf16.gmra.mxu0 %v1103
        %v3495 = vpop.f32.mrf.mxu0
        %v3496 = vadd.f32 %v581, %v3495
        %v3497 = vpop.f32.mrf.mxu0
        %v3498 = vadd.f32 %v581, %v3497
        %3499 = vmatmul.bf16.gmra.mxu0 %v1104
        %v3500 = vpop.f32.mrf.mxu0
        %v3501 = vadd.f32 %v581, %v3500
        %v3502 = vpop.f32.mrf.mxu0
        %v3503 = vadd.f32 %v581, %v3502
        %3504 = vmatmul.bf16.gmra.mxu0 %v1105
        %v3505 = vpop.f32.mrf.mxu0
        %v3506 = vadd.f32 %v581, %v3505
        %v3507 = vpop.f32.mrf.mxu0
        %v3508 = vadd.f32 %v581, %v3507
        %3509 = vmatmul.bf16.gmra.mxu0 %v1106
        %v3510 = vpop.f32.mrf.mxu0
        %v3511 = vadd.f32 %v581, %v3510
        %v3512 = vpop.f32.mrf.mxu0
        %v3513 = vadd.f32 %v581, %v3512
        %3514 = vmatmul.bf16.gmra.mxu0 %v1107
        %v3515 = vpop.f32.mrf.mxu0
        %v3516 = vadd.f32 %v581, %v3515
        %v3517 = vpop.f32.mrf.mxu0
        %v3518 = vadd.f32 %v581, %v3517
        %3519 = vmatmul.bf16.gmra.mxu0 %v1108
        %v3520 = vpop.f32.mrf.mxu0
        %v3521 = vadd.f32 %v581, %v3520
        %v3522 = vpop.f32.mrf.mxu0
        %v3523 = vadd.f32 %v581, %v3522
        %3524 = vmatmul.bf16.gmra.mxu0 %v1109
        %v3525 = vpop.f32.mrf.mxu0
        %v3526 = vadd.f32 %v581, %v3525
        %v3527 = vpop.f32.mrf.mxu0
        %v3528 = vadd.f32 %v581, %v3527
        %3529 = vmatmul.bf16.gmra.mxu0 %v1110
        %v3530 = vpop.f32.mrf.mxu0
        %v3531 = vadd.f32 %v581, %v3530
        %v3532 = vpop.f32.mrf.mxu0
        %v3533 = vadd.f32 %v581, %v3532
        %3534 = vmatmul.bf16.gmra.mxu0 %v1111
        %v3535 = vpop.f32.mrf.mxu0
        %v3536 = vadd.f32 %v581, %v3535
        %v3537 = vpop.f32.mrf.mxu0
        %v3538 = vadd.f32 %v581, %v3537
        %3539 = vmatmul.bf16.gmra.mxu0 %v1112
        %v3540 = vpop.f32.mrf.mxu0
        %v3541 = vadd.f32 %v581, %v3540
        %v3542 = vpop.f32.mrf.mxu0
        %v3543 = vadd.f32 %v581, %v3542
        %3544 = vmatmul.bf16.gmra.mxu0 %v1113
        %v3545 = vpop.f32.mrf.mxu0
        %v3546 = vadd.f32 %v581, %v3545
        %v3547 = vpop.f32.mrf.mxu0
        %v3548 = vadd.f32 %v581, %v3547
        %3549 = vmatmul.bf16.gmra.mxu0 %v1114
        %v3550 = vpop.f32.mrf.mxu0
        %v3551 = vadd.f32 %v581, %v3550
        %v3552 = vpop.f32.mrf.mxu0
        %v3553 = vadd.f32 %v581, %v3552
        %3554 = vmatmul.bf16.gmra.mxu0 %v1115
        %v3555 = vpop.f32.mrf.mxu0
        %v3556 = vadd.f32 %v581, %v3555
        %v3557 = vpop.f32.mrf.mxu0
        %v3558 = vadd.f32 %v581, %v3557
        %3559 = vmatmul.bf16.gmra.mxu0 %v1116
        %v3560 = vpop.f32.mrf.mxu0
        %v3561 = vadd.f32 %v581, %v3560
        %v3562 = vpop.f32.mrf.mxu0
        %v3563 = vadd.f32 %v581, %v3562
        %3564 = vmatmul.bf16.gmra.mxu0 %v1117
        %v3565 = vpop.f32.mrf.mxu0
        %v3566 = vadd.f32 %v581, %v3565
        %v3567 = vpop.f32.mrf.mxu0
        %v3568 = vadd.f32 %v581, %v3567
        %3569 = vmatmul.bf16.gmra.mxu0 %v1118
        %v3570 = vpop.f32.mrf.mxu0
        %v3571 = vadd.f32 %v581, %v3570
        %v3572 = vpop.f32.mrf.mxu0
        %v3573 = vadd.f32 %v581, %v3572
        %3574 = vmatmul.bf16.gmra.mxu0 %v1119
        %v3575 = vpop.f32.mrf.mxu0
        %v3576 = vadd.f32 %v581, %v3575
        %v3577 = vpop.f32.mrf.mxu0
        %v3578 = vadd.f32 %v581, %v3577
        %3579 = vmatmul.bf16.gmra.mxu0 %v1120
        %v3580 = vpop.f32.mrf.mxu0
        %v3581 = vadd.f32 %v581, %v3580
        %v3582 = vpop.f32.mrf.mxu0
        %v3583 = vadd.f32 %v581, %v3582
        %3584 = vmatmul.bf16.gmra.mxu0 %v1121
        %v3585 = vpop.f32.mrf.mxu0
        %v3586 = vadd.f32 %v581, %v3585
        %v3587 = vpop.f32.mrf.mxu0
        %v3588 = vadd.f32 %v581, %v3587
        %3589 = vmatmul.bf16.gmra.mxu0 %v1122
        %v3590 = vpop.f32.mrf.mxu0
        %v3591 = vadd.f32 %v581, %v3590
        %v3592 = vpop.f32.mrf.mxu0
        %v3593 = vadd.f32 %v581, %v3592
        %3594 = vmatmul.bf16.gmra.mxu0 %v1123
        %v3595 = vpop.f32.mrf.mxu0
        %v3596 = vadd.f32 %v581, %v3595
        %v3597 = vpop.f32.mrf.mxu0
        %v3598 = vadd.f32 %v581, %v3597
        %3599 = vmatmul.bf16.gmra.mxu0 %v1124
        %v3600 = vpop.f32.mrf.mxu0
        %v3601 = vadd.f32 %v581, %v3600
        %v3602 = vpop.f32.mrf.mxu0
        %v3603 = vadd.f32 %v581, %v3602
        %3604 = vmatmul.bf16.gmra.mxu0 %v1125
        %v3605 = vpop.f32.mrf.mxu0
        %v3606 = vadd.f32 %v581, %v3605
        %v3607 = vpop.f32.mrf.mxu0
        %v3608 = vadd.f32 %v581, %v3607
        %3609 = vmatmul.bf16.gmra.mxu0 %v1126
        %v3610 = vpop.f32.mrf.mxu0
        %v3611 = vadd.f32 %v581, %v3610
        %v3612 = vpop.f32.mrf.mxu0
        %v3613 = vadd.f32 %v581, %v3612
        %3614 = vmatmul.bf16.gmra.mxu0 %v1127
        %v3615 = vpop.f32.mrf.mxu0
        %v3616 = vadd.f32 %v581, %v3615
        %v3617 = vpop.f32.mrf.mxu0
        %v3618 = vadd.f32 %v581, %v3617
        %3619 = vmatmul.bf16.gmra.mxu0 %v1128
        %v3620 = vpop.f32.mrf.mxu0
        %v3621 = vadd.f32 %v581, %v3620
        %v3622 = vpop.f32.mrf.mxu0
        %v3623 = vadd.f32 %v581, %v3622
        %3624 = vmatmul.bf16.gmra.mxu0 %v1129
        %v3625 = vpop.f32.mrf.mxu0
        %v3626 = vadd.f32 %v581, %v3625
        %v3627 = vpop.f32.mrf.mxu0
        %v3628 = vadd.f32 %v581, %v3627
        %3629 = vmatmul.bf16.gmra.mxu0 %v1130
        %v3630 = vpop.f32.mrf.mxu0
        %v3631 = vadd.f32 %v581, %v3630
        %v3632 = vpop.f32.mrf.mxu0
        %v3633 = vadd.f32 %v581, %v3632
        %3634 = vmatmul.bf16.gmra.mxu0 %v1131
        %v3635 = vpop.f32.mrf.mxu0
        %v3636 = vadd.f32 %v581, %v3635
        %v3637 = vpop.f32.mrf.mxu0
        %v3638 = vadd.f32 %v581, %v3637
        %3639 = vmatmul.bf16.gmra.mxu0 %v1132
        %v3640 = vpop.f32.mrf.mxu0
        %v3641 = vadd.f32 %v581, %v3640
        %v3642 = vpop.f32.mrf.mxu0
        %v3643 = vadd.f32 %v581, %v3642
        %3644 = vmatmul.bf16.gmra.mxu0 %v1133
        %v3645 = vpop.f32.mrf.mxu0
        %v3646 = vadd.f32 %v581, %v3645
        %v3647 = vpop.f32.mrf.mxu0
        %v3648 = vadd.f32 %v581, %v3647
        %3649 = vmatmul.bf16.gmra.mxu0 %v1134
        %v3650 = vpop.f32.mrf.mxu0
        %v3651 = vadd.f32 %v581, %v3650
        %v3652 = vpop.f32.mrf.mxu0
        %v3653 = vadd.f32 %v581, %v3652
        %3654 = vmatmul.bf16.gmra.mxu0 %v1135
        %v3655 = vpop.f32.mrf.mxu0
        %v3656 = vadd.f32 %v581, %v3655
        %v3657 = vpop.f32.mrf.mxu0
        %v3658 = vadd.f32 %v581, %v3657
        %3659 = vmatmul.bf16.gmra.mxu0 %v1136
        %v3660 = vpop.f32.mrf.mxu0
        %v3661 = vadd.f32 %v581, %v3660
        %v3662 = vpop.f32.mrf.mxu0
        %v3663 = vadd.f32 %v581, %v3662
        %3664 = vmatmul.bf16.gmra.mxu0 %v1137
        %v3665 = vpop.f32.mrf.mxu0
        %v3666 = vadd.f32 %v581, %v3665
        %v3667 = vpop.f32.mrf.mxu0
        %v3668 = vadd.f32 %v581, %v3667
        %3669 = vmatmul.bf16.gmra.mxu0 %v1138
        %v3670 = vpop.f32.mrf.mxu0
        %v3671 = vadd.f32 %v581, %v3670
        %v3672 = vpop.f32.mrf.mxu0
        %v3673 = vadd.f32 %v581, %v3672
        %3674 = vmatmul.bf16.gmra.mxu0 %v1139
        %v3675 = vpop.f32.mrf.mxu0
        %v3676 = vadd.f32 %v581, %v3675
        %v3677 = vpop.f32.mrf.mxu0
        %v3678 = vadd.f32 %v581, %v3677
        %3679 = vmatmul.bf16.gmra.mxu0 %v1140
        %v3680 = vpop.f32.mrf.mxu0
        %v3681 = vadd.f32 %v581, %v3680
        %v3682 = vpop.f32.mrf.mxu0
        %v3683 = vadd.f32 %v581, %v3682
        %3684 = vmatmul.bf16.gmra.mxu0 %v1141
        %v3685 = vpop.f32.mrf.mxu0
        %v3686 = vadd.f32 %v581, %v3685
        %v3687 = vpop.f32.mrf.mxu0
        %v3688 = vadd.f32 %v581, %v3687
        %3689 = vmatmul.bf16.gmra.mxu0 %v1142
        %v3690 = vpop.f32.mrf.mxu0
        %v3691 = vadd.f32 %v581, %v3690
        %v3692 = vpop.f32.mrf.mxu0
        %v3693 = vadd.f32 %v581, %v3692
        %3694 = vmatmul.bf16.gmra.mxu0 %v1143
        %v3695 = vpop.f32.mrf.mxu0
        %v3696 = vadd.f32 %v581, %v3695
        %v3697 = vpop.f32.mrf.mxu0
        %v3698 = vadd.f32 %v581, %v3697
        %3699 = vmatmul.bf16.gmra.mxu0 %v1144
        %v3700 = vpop.f32.mrf.mxu0
        %v3701 = vadd.f32 %v581, %v3700
        %v3702 = vpop.f32.mrf.mxu0
        %v3703 = vadd.f32 %v581, %v3702
        %3704 = vmatmul.bf16.gmra.mxu0 %v1145
        %v3705 = vpop.f32.mrf.mxu0
        %v3706 = vadd.f32 %v581, %v3705
        %v3707 = vpop.f32.mrf.mxu0
        %v3708 = vadd.f32 %v581, %v3707
        %3709 = vmatmul.bf16.gmra.mxu0 %v1146
        %v3710 = vpop.f32.mrf.mxu0
        %v3711 = vadd.f32 %v581, %v3710
        %v3712 = vpop.f32.mrf.mxu0
        %v3713 = vadd.f32 %v581, %v3712
        %3714 = vmatmul.bf16.gmra.mxu0 %v1147
        %v3715 = vpop.f32.mrf.mxu0
        %v3716 = vadd.f32 %v581, %v3715
        %v3717 = vpop.f32.mrf.mxu0
        %v3718 = vadd.f32 %v581, %v3717
        %3719 = vmatmul.bf16.gmra.mxu0 %v1148
        %v3720 = vpop.f32.mrf.mxu0
        %v3721 = vadd.f32 %v581, %v3720
        %v3722 = vpop.f32.mrf.mxu0
        %v3723 = vadd.f32 %v581, %v3722
        %3724 = vmatmul.bf16.gmra.mxu0 %v1149
        %v3725 = vpop.f32.mrf.mxu0
        %v3726 = vadd.f32 %v581, %v3725
        %v3727 = vpop.f32.mrf.mxu0
        %v3728 = vadd.f32 %v581, %v3727
        %3729 = vmatmul.bf16.gmra.mxu0 %v1150
        %v3730 = vpop.f32.mrf.mxu0
        %v3731 = vadd.f32 %v581, %v3730
        %v3732 = vpop.f32.mrf.mxu0
        %v3733 = vadd.f32 %v581, %v3732
        %3734 = vmatmul.bf16.gmra.mxu0 %v1151
        %v3735 = vpop.f32.mrf.mxu0
        %v3736 = vadd.f32 %v581, %v3735
        %v3737 = vpop.f32.mrf.mxu0
        %v3738 = vadd.f32 %v581, %v3737
        %3739 = vmatmul.bf16.gmra.mxu0 %v1152
        %v3740 = vpop.f32.mrf.mxu0
        %v3741 = vadd.f32 %v581, %v3740
        %v3742 = vpop.f32.mrf.mxu0
        %v3743 = vadd.f32 %v581, %v3742
        %3744 = vmatmul.bf16.gmra.mxu0 %v1153
        %v3745 = vpop.f32.mrf.mxu0
        %v3746 = vadd.f32 %v581, %v3745
        %v3747 = vpop.f32.mrf.mxu0
        %v3748 = vadd.f32 %v581, %v3747
        %3749 = vmatmul.bf16.gmra.mxu0 %v1154
        %v3750 = vpop.f32.mrf.mxu0
        %v3751 = vadd.f32 %v581, %v3750
        %v3752 = vpop.f32.mrf.mxu0
        %v3753 = vadd.f32 %v581, %v3752
        %3754 = vmatmul.bf16.gmra.mxu0 %v1155
        %v3755 = vpop.f32.mrf.mxu0
        %v3756 = vadd.f32 %v581, %v3755
        %v3757 = vpop.f32.mrf.mxu0
        %v3758 = vadd.f32 %v581, %v3757
        %3759 = vmatmul.bf16.gmra.mxu0 %v1156
        %v3760 = vpop.f32.mrf.mxu0
        %v3761 = vadd.f32 %v581, %v3760
        %v3762 = vpop.f32.mrf.mxu0
        %v3763 = vadd.f32 %v581, %v3762
        %3764 = vmatmul.bf16.gmra.mxu0 %v1157
        %v3765 = vpop.f32.mrf.mxu0
        %v3766 = vadd.f32 %v581, %v3765
        %v3767 = vpop.f32.mrf.mxu0
        %v3768 = vadd.f32 %v581, %v3767
        %3769 = vmatmul.bf16.gmra.mxu0 %v1158
        %v3770 = vpop.f32.mrf.mxu0
        %v3771 = vadd.f32 %v581, %v3770
        %v3772 = vpop.f32.mrf.mxu0
        %v3773 = vadd.f32 %v581, %v3772
        %3774 = vmatmul.bf16.gmra.mxu0 %v1159
        %v3775 = vpop.f32.mrf.mxu0
        %v3776 = vadd.f32 %v581, %v3775
        %v3777 = vpop.f32.mrf.mxu0
        %v3778 = vadd.f32 %v581, %v3777
        %3779 = vmatmul.bf16.gmra.mxu0 %v1160
        %v3780 = vpop.f32.mrf.mxu0
        %v3781 = vadd.f32 %v581, %v3780
        %v3782 = vpop.f32.mrf.mxu0
        %v3783 = vadd.f32 %v581, %v3782
        %3784 = vmatmul.bf16.gmra.mxu0 %v1161
        %v3785 = vpop.f32.mrf.mxu0
        %v3786 = vadd.f32 %v581, %v3785
        %v3787 = vpop.f32.mrf.mxu0
        %v3788 = vadd.f32 %v581, %v3787
        %3789 = vmatmul.bf16.gmra.mxu0 %v1162
        %v3790 = vpop.f32.mrf.mxu0
        %v3791 = vadd.f32 %v581, %v3790
        %v3792 = vpop.f32.mrf.mxu0
        %v3793 = vadd.f32 %v581, %v3792
        %3794 = vmatmul.bf16.gmra.mxu0 %v1163
        %v3795 = vpop.f32.mrf.mxu0
        %v3796 = vadd.f32 %v581, %v3795
        %v3797 = vpop.f32.mrf.mxu0
        %v3798 = vadd.f32 %v581, %v3797
        %3799 = vmatmul.bf16.gmra.mxu0 %v1164
        %v3800 = vpop.f32.mrf.mxu0
        %v3801 = vadd.f32 %v581, %v3800
        %v3802 = vpop.f32.mrf.mxu0
        %v3803 = vadd.f32 %v581, %v3802
        %3804 = vmatmul.bf16.gmra.mxu0 %v1165
        %v3805 = vpop.f32.mrf.mxu0
        %v3806 = vadd.f32 %v581, %v3805
        %v3807 = vpop.f32.mrf.mxu0
        %v3808 = vadd.f32 %v581, %v3807
        %3809 = vmatmul.bf16.gmra.mxu0 %v1166
        %v3810 = vpop.f32.mrf.mxu0
        %v3811 = vadd.f32 %v581, %v3810
        %v3812 = vpop.f32.mrf.mxu0
        %v3813 = vadd.f32 %v581, %v3812
        %3814 = vmatmul.bf16.gmra.mxu0 %v1167
        %v3815 = vpop.f32.mrf.mxu0
        %v3816 = vadd.f32 %v581, %v3815
        %v3817 = vpop.f32.mrf.mxu0
        %v3818 = vadd.f32 %v581, %v3817
        %3819 = vmatmul.bf16.gmra.mxu0 %v1168
        %v3820 = vpop.f32.mrf.mxu0
        %v3821 = vadd.f32 %v581, %v3820
        %v3822 = vpop.f32.mrf.mxu0
        %v3823 = vadd.f32 %v581, %v3822
        %3824 = vmatmul.bf16.gmra.mxu0 %v1169
        %v3825 = vpop.f32.mrf.mxu0
        %v3826 = vadd.f32 %v581, %v3825
        %v3827 = vpop.f32.mrf.mxu0
        %v3828 = vadd.f32 %v581, %v3827
        %3829 = vmatmul.bf16.gmra.mxu0 %v1170
        %v3830 = vpop.f32.mrf.mxu0
        %v3831 = vadd.f32 %v581, %v3830
        %v3832 = vpop.f32.mrf.mxu0
        %v3833 = vadd.f32 %v581, %v3832
        %3834 = vmatmul.bf16.gmra.mxu0 %v1171
        %v3835 = vpop.f32.mrf.mxu0
        %v3836 = vadd.f32 %v581, %v3835
        %v3837 = vpop.f32.mrf.mxu0
        %v3838 = vadd.f32 %v581, %v3837
        %3839 = vmatmul.bf16.gmra.mxu0 %v1172
        %v3840 = vpop.f32.mrf.mxu0
        %v3841 = vadd.f32 %v581, %v3840
        %v3842 = vpop.f32.mrf.mxu0
        %v3843 = vadd.f32 %v581, %v3842
        %3844 = vmatmul.bf16.gmra.mxu0 %v1173
        %v3845 = vpop.f32.mrf.mxu0
        %v3846 = vadd.f32 %v581, %v3845
        %v3847 = vpop.f32.mrf.mxu0
        %v3848 = vadd.f32 %v581, %v3847
        %3849 = vmatmul.bf16.gmra.mxu0 %v1174
        %v3850 = vpop.f32.mrf.mxu0
        %v3851 = vadd.f32 %v581, %v3850
        %v3852 = vpop.f32.mrf.mxu0
        %v3853 = vadd.f32 %v581, %v3852
        %3854 = vmatmul.bf16.gmra.mxu0 %v1175
        %v3855 = vpop.f32.mrf.mxu0
        %v3856 = vadd.f32 %v581, %v3855
        %v3857 = vpop.f32.mrf.mxu0
        %v3858 = vadd.f32 %v581, %v3857
        %3859 = vmatmul.bf16.gmra.mxu0 %v1176
        %v3860 = vpop.f32.mrf.mxu0
        %v3861 = vadd.f32 %v581, %v3860
        %v3862 = vpop.f32.mrf.mxu0
        %v3863 = vadd.f32 %v581, %v3862
        %3864 = vmatmul.bf16.gmra.mxu0 %v1177
        %v3865 = vpop.f32.mrf.mxu0
        %v3866 = vadd.f32 %v581, %v3865
        %v3867 = vpop.f32.mrf.mxu0
        %v3868 = vadd.f32 %v581, %v3867
        %3869 = vmatmul.bf16.gmra.mxu0 %v1178
        %v3870 = vpop.f32.mrf.mxu0
        %v3871 = vadd.f32 %v581, %v3870
        %v3872 = vpop.f32.mrf.mxu0
        %v3873 = vadd.f32 %v581, %v3872
        %3874 = vmatmul.bf16.gmra.mxu0 %v1179
        %v3875 = vpop.f32.mrf.mxu0
        %v3876 = vadd.f32 %v581, %v3875
        %v3877 = vpop.f32.mrf.mxu0
        %v3878 = vadd.f32 %v581, %v3877
        %3879 = vmatmul.bf16.gmra.mxu0 %v1180
        %v3880 = vpop.f32.mrf.mxu0
        %v3881 = vadd.f32 %v581, %v3880
        %v3882 = vpop.f32.mrf.mxu0
        %v3883 = vadd.f32 %v581, %v3882
        %3884 = vmatmul.bf16.gmra.mxu0 %v1181
        %v3885 = vpop.f32.mrf.mxu0
        %v3886 = vadd.f32 %v581, %v3885
        %v3887 = vpop.f32.mrf.mxu0
        %v3888 = vadd.f32 %v581, %v3887
        %3889 = vmatmul.bf16.gmra.mxu0 %v1182
        %v3890 = vpop.f32.mrf.mxu0
        %v3891 = vadd.f32 %v581, %v3890
        %v3892 = vpop.f32.mrf.mxu0
        %v3893 = vadd.f32 %v581, %v3892
        %3894 = vmatmul.bf16.gmra.mxu0 %v1183
        %v3895 = vpop.f32.mrf.mxu0
        %v3896 = vadd.f32 %v581, %v3895
        %v3897 = vpop.f32.mrf.mxu0
        %v3898 = vadd.f32 %v581, %v3897
        %3899 = vmatmul.bf16.gmra.mxu0 %v1184
        %v3900 = vpop.f32.mrf.mxu0
        %v3901 = vadd.f32 %v581, %v3900
        %v3902 = vpop.f32.mrf.mxu0
        %v3903 = vadd.f32 %v581, %v3902
        %3904 = vmatmul.bf16.gmra.mxu0 %v1185
        %v3905 = vpop.f32.mrf.mxu0
        %v3906 = vadd.f32 %v581, %v3905
        %v3907 = vpop.f32.mrf.mxu0
        %v3908 = vadd.f32 %v581, %v3907
        %3909 = vmatmul.bf16.gmra.mxu0 %v1186
        %v3910 = vpop.f32.mrf.mxu0
        %v3911 = vadd.f32 %v581, %v3910
        %v3912 = vpop.f32.mrf.mxu0
        %v3913 = vadd.f32 %v581, %v3912
        %3914 = vmatmul.bf16.gmra.mxu0 %v1187
        %v3915 = vpop.f32.mrf.mxu0
        %v3916 = vadd.f32 %v581, %v3915
        %v3917 = vpop.f32.mrf.mxu0
        %v3918 = vadd.f32 %v581, %v3917
        %3919 = vmatmul.bf16.gmra.mxu0 %v1188
        %v3920 = vpop.f32.mrf.mxu0
        %v3921 = vadd.f32 %v581, %v3920
        %v3922 = vpop.f32.mrf.mxu0
        %v3923 = vadd.f32 %v581, %v3922
        %3924 = vmatmul.bf16.gmra.mxu0 %v1189
        %v3925 = vpop.f32.mrf.mxu0
        %v3926 = vadd.f32 %v581, %v3925
        %v3927 = vpop.f32.mrf.mxu0
        %v3928 = vadd.f32 %v581, %v3927
        %3929 = vmatmul.bf16.gmra.mxu0 %v1190
        %v3930 = vpop.f32.mrf.mxu0
        %v3931 = vadd.f32 %v581, %v3930
        %v3932 = vpop.f32.mrf.mxu0
        %v3933 = vadd.f32 %v581, %v3932
        %3934 = vmatmul.bf16.gmra.mxu0 %v1191
        %v3935 = vpop.f32.mrf.mxu0
        %v3936 = vadd.f32 %v581, %v3935
        %v3937 = vpop.f32.mrf.mxu0
        %v3938 = vadd.f32 %v581, %v3937
        %3939 = vmatmul.bf16.gmra.mxu0 %v1192
        %v3940 = vpop.f32.mrf.mxu0
        %v3941 = vadd.f32 %v581, %v3940
        %v3942 = vpop.f32.mrf.mxu0
        %v3943 = vadd.f32 %v581, %v3942
        %3944 = vmatmul.bf16.gmra.mxu0 %v1193
        %v3945 = vpop.f32.mrf.mxu0
        %v3946 = vadd.f32 %v581, %v3945
        %v3947 = vpop.f32.mrf.mxu0
        %v3948 = vadd.f32 %v581, %v3947
        %3949 = vmatmul.bf16.gmra.mxu0 %v1194
        %v3950 = vpop.f32.mrf.mxu0
        %v3951 = vadd.f32 %v581, %v3950
        %v3952 = vpop.f32.mrf.mxu0
        %v3953 = vadd.f32 %v581, %v3952
        %3954 = vmatmul.bf16.gmra.mxu0 %v1195
        %v3955 = vpop.f32.mrf.mxu0
        %v3956 = vadd.f32 %v581, %v3955
        %v3957 = vpop.f32.mrf.mxu0
        %v3958 = vadd.f32 %v581, %v3957
        %3959 = vmatmul.bf16.gmra.mxu0 %v1196
        %v3960 = vpop.f32.mrf.mxu0
        %v3961 = vadd.f32 %v581, %v3960
        %v3962 = vpop.f32.mrf.mxu0
        %v3963 = vadd.f32 %v581, %v3962
        %3964 = vmatmul.bf16.gmra.mxu0 %v1197
        %v3965 = vpop.f32.mrf.mxu0
        %v3966 = vadd.f32 %v581, %v3965
        %v3967 = vpop.f32.mrf.mxu0
        %v3968 = vadd.f32 %v581, %v3967
        %3969 = vmatmul.bf16.gmra.mxu0 %v1198
        %v3970 = vpop.f32.mrf.mxu0
        %v3971 = vadd.f32 %v581, %v3970
        %v3972 = vpop.f32.mrf.mxu0
        %v3973 = vadd.f32 %v581, %v3972
        %3974 = vmatmul.bf16.gmra.mxu0 %v1199
        %v3975 = vpop.f32.mrf.mxu0
        %v3976 = vadd.f32 %v581, %v3975
        %v3977 = vpop.f32.mrf.mxu0
        %v3978 = vadd.f32 %v581, %v3977
        %3979 = vmatmul.bf16.gmra.mxu0 %v1200
        %v3980 = vpop.f32.mrf.mxu0
        %v3981 = vadd.f32 %v581, %v3980
        %v3982 = vpop.f32.mrf.mxu0
        %v3983 = vadd.f32 %v581, %v3982
        %3984 = vmatmul.bf16.gmra.mxu0 %v1201
        %v3985 = vpop.f32.mrf.mxu0
        %v3986 = vadd.f32 %v581, %v3985
        %v3987 = vpop.f32.mrf.mxu0
        %v3988 = vadd.f32 %v581, %v3987
        %3989 = vmatmul.bf16.gmra.mxu0 %v1202
        %v3990 = vpop.f32.mrf.mxu0
        %v3991 = vadd.f32 %v581, %v3990
        %v3992 = vpop.f32.mrf.mxu0
        %v3993 = vadd.f32 %v581, %v3992
        %3994 = vmatmul.bf16.gmra.mxu0 %v1203
        %v3995 = vpop.f32.mrf.mxu0
        %v3996 = vadd.f32 %v581, %v3995
        %v3997 = vpop.f32.mrf.mxu0
        %v3998 = vadd.f32 %v581, %v3997
        %3999 = vmatmul.bf16.gmra.mxu0 %v1204
        %v4000 = vpop.f32.mrf.mxu0
        %v4001 = vadd.f32 %v581, %v4000
        %v4002 = vpop.f32.mrf.mxu0
        %v4003 = vadd.f32 %v581, %v4002
        %4004 = vmatmul.bf16.gmra.mxu0 %v1205
        %v4005 = vpop.f32.mrf.mxu0
        %v4006 = vadd.f32 %v581, %v4005
        %v4007 = vpop.f32.mrf.mxu0
        %v4008 = vadd.f32 %v581, %v4007
        %4009 = vmatmul.bf16.gmra.mxu0 %v1206
        %v4010 = vpop.f32.mrf.mxu0
        %v4011 = vadd.f32 %v581, %v4010
        %v4012 = vpop.f32.mrf.mxu0
        %v4013 = vadd.f32 %v581, %v4012
        %4014 = vmatmul.bf16.gmra.mxu0 %v1207
        %v4015 = vpop.f32.mrf.mxu0
        %v4016 = vadd.f32 %v581, %v4015
        %v4017 = vpop.f32.mrf.mxu0
        %v4018 = vadd.f32 %v581, %v4017
        %4019 = vmatmul.bf16.gmra.mxu0 %v1208
        %v4020 = vpop.f32.mrf.mxu0
        %v4021 = vadd.f32 %v581, %v4020
        %v4022 = vpop.f32.mrf.mxu0
        %v4023 = vadd.f32 %v581, %v4022
        %4024 = vmatmul.bf16.gmra.mxu0 %v1209
        %v4025 = vpop.f32.mrf.mxu0
        %v4026 = vadd.f32 %v581, %v4025
        %v4027 = vpop.f32.mrf.mxu0
        %v4028 = vadd.f32 %v581, %v4027
        %4029 = vmatmul.bf16.gmra.mxu0 %v1210
        %v4030 = vpop.f32.mrf.mxu0
        %v4031 = vadd.f32 %v581, %v4030
        %v4032 = vpop.f32.mrf.mxu0
        %v4033 = vadd.f32 %v581, %v4032
        %4034 = vmatmul.bf16.gmra.mxu0 %v1211
        %v4035 = vpop.f32.mrf.mxu0
        %v4036 = vadd.f32 %v581, %v4035
        %v4037 = vpop.f32.mrf.mxu0
        %v4038 = vadd.f32 %v581, %v4037
        %4039 = vmatmul.bf16.gmra.mxu0 %v1212
        %v4040 = vpop.f32.mrf.mxu0
        %v4041 = vadd.f32 %v581, %v4040
        %v4042 = vpop.f32.mrf.mxu0
        %v4043 = vadd.f32 %v581, %v4042
        %4044 = vmatmul.bf16.gmra.mxu0 %v1213
        %v4045 = vpop.f32.mrf.mxu0
        %v4046 = vadd.f32 %v581, %v4045
        %v4047 = vpop.f32.mrf.mxu0
        %v4048 = vadd.f32 %v581, %v4047
        %4049 = vmatmul.bf16.gmra.mxu0 %v1214
        %v4050 = vpop.f32.mrf.mxu0
        %v4051 = vadd.f32 %v581, %v4050
        %v4052 = vpop.f32.mrf.mxu0
        %v4053 = vadd.f32 %v581, %v4052
        %4054 = vmatmul.bf16.gmra.mxu0 %v1215
        %v4055 = vpop.f32.mrf.mxu0
        %v4056 = vadd.f32 %v581, %v4055
        %v4057 = vpop.f32.mrf.mxu0
        %v4058 = vadd.f32 %v581, %v4057
        %4059 = vmatmul.bf16.gmra.mxu0 %v1216
        %v4060 = vpop.f32.mrf.mxu0
        %v4061 = vadd.f32 %v581, %v4060
        %v4062 = vpop.f32.mrf.mxu0
        %v4063 = vadd.f32 %v581, %v4062
        %4064 = vmatmul.bf16.gmra.mxu0 %v1217
        %v4065 = vpop.f32.mrf.mxu0
        %v4066 = vadd.f32 %v581, %v4065
        %v4067 = vpop.f32.mrf.mxu0
        %v4068 = vadd.f32 %v581, %v4067
        %4069 = vmatmul.bf16.gmra.mxu0 %v1218
        %v4070 = vpop.f32.mrf.mxu0
        %v4071 = vadd.f32 %v581, %v4070
        %v4072 = vpop.f32.mrf.mxu0
        %v4073 = vadd.f32 %v581, %v4072
        %4074 = vmatmul.bf16.gmra.mxu0 %v1219
        %v4075 = vpop.f32.mrf.mxu0
        %v4076 = vadd.f32 %v581, %v4075
        %v4077 = vpop.f32.mrf.mxu0
        %v4078 = vadd.f32 %v581, %v4077
        %4079 = vmatmul.bf16.gmra.mxu0 %v1220
        %v4080 = vpop.f32.mrf.mxu0
        %v4081 = vadd.f32 %v581, %v4080
        %v4082 = vpop.f32.mrf.mxu0
        %v4083 = vadd.f32 %v581, %v4082
        %4084 = vmatmul.bf16.gmra.mxu0 %v1221
        %v4085 = vpop.f32.mrf.mxu0
        %v4086 = vadd.f32 %v581, %v4085
        %v4087 = vpop.f32.mrf.mxu0
        %v4088 = vadd.f32 %v581, %v4087
        %4089 = vmatmul.bf16.gmra.mxu0 %v1222
        %v4090 = vpop.f32.mrf.mxu0
        %v4091 = vadd.f32 %v581, %v4090
        %v4092 = vpop.f32.mrf.mxu0
        %v4093 = vadd.f32 %v581, %v4092
        %4094 = vmatmul.bf16.gmra.mxu0 %v1223
        %v4095 = vpop.f32.mrf.mxu0
        %v4096 = vadd.f32 %v581, %v4095
        %v4097 = vpop.f32.mrf.mxu0
        %v4098 = vadd.f32 %v581, %v4097
        %4099 = vmatmul.bf16.gmra.mxu0 %v1224
        %v4100 = vpop.f32.mrf.mxu0
        %v4101 = vadd.f32 %v581, %v4100
        %v4102 = vpop.f32.mrf.mxu0
        %v4103 = vadd.f32 %v581, %v4102
        %4104 = vmatmul.bf16.gmra.mxu0 %v1225
        %v4105 = vpop.f32.mrf.mxu0
        %v4106 = vadd.f32 %v581, %v4105
        %v4107 = vpop.f32.mrf.mxu0
        %v4108 = vadd.f32 %v581, %v4107
        %4109 = vdwg.mxu0
        %v4110 = vmax.f32 %v1524, 0.0
        %v4111 = vmax.f32 %v2173, 0.0
        %v4112 = vmax.f32 %v2822, 0.0
        %v4113 = vmax.f32 %v3471, 0.0
        %v4114 = vmax.f32 %v1526, 0.0
        %v4115 = vmax.f32 %v2175, 0.0
        %v4116 = vmax.f32 %v2824, 0.0
        %v4117 = vmax.f32 %v3473, 0.0
        %v4118 = vmax.f32 %v1529, 0.0
        %v4119 = vmax.f32 %v2178, 0.0
        %v4120 = vmax.f32 %v2827, 0.0
        %v4121 = vmax.f32 %v3476, 0.0
        %v4122 = vmax.f32 %v1531, 0.0
        %v4123 = vmax.f32 %v2180, 0.0
        %v4124 = vmax.f32 %v2829, 0.0
        %v4125 = vmax.f32 %v3478, 0.0
        %v4126 = vmax.f32 %v1534, 0.0
        %v4127 = vmax.f32 %v2183, 0.0
        %v4128 = vmax.f32 %v2832, 0.0
        %v4129 = vmax.f32 %v3481, 0.0
        %v4130 = vmax.f32 %v1536, 0.0
        %v4131 = vmax.f32 %v2185, 0.0
        %v4132 = vmax.f32 %v2834, 0.0
        %v4133 = vmax.f32 %v3483, 0.0
        %v4134 = vmax.f32 %v1539, 0.0
        %v4135 = vmax.f32 %v2188, 0.0
        %v4136 = vmax.f32 %v2837, 0.0
        %v4137 = vmax.f32 %v3486, 0.0
        %v4138 = vmax.f32 %v1541, 0.0
        %v4139 = vmax.f32 %v2190, 0.0
        %v4140 = vmax.f32 %v2839, 0.0
        %v4141 = vmax.f32 %v3488, 0.0
        %v4142 = vmax.f32 %v1544, 0.0
        %v4143 = vmax.f32 %v2193, 0.0
        %v4144 = vmax.f32 %v2842, 0.0
        %v4145 = vmax.f32 %v3491, 0.0
        %v4146 = vmax.f32 %v1546, 0.0
        %v4147 = vmax.f32 %v2195, 0.0
        %v4148 = vmax.f32 %v2844, 0.0
        %v4149 = vmax.f32 %v3493, 0.0
        %v4150 = vmax.f32 %v1549, 0.0
        %v4151 = vmax.f32 %v2198, 0.0
        %v4152 = vmax.f32 %v2847, 0.0
        %v4153 = vmax.f32 %v3496, 0.0
        %v4154 = vmax.f32 %v1551, 0.0
        %v4155 = vmax.f32 %v2200, 0.0
        %v4156 = vmax.f32 %v2849, 0.0
        %v4157 = vmax.f32 %v3498, 0.0
        %v4158 = vmax.f32 %v1554, 0.0
        %v4159 = vmax.f32 %v2203, 0.0
        %v4160 = vmax.f32 %v2852, 0.0
        %v4161 = vmax.f32 %v3501, 0.0
        %v4162 = vmax.f32 %v1556, 0.0
        %v4163 = vmax.f32 %v2205, 0.0
        %v4164 = vmax.f32 %v2854, 0.0
        %v4165 = vmax.f32 %v3503, 0.0
        %v4166 = vmax.f32 %v1559, 0.0
        %v4167 = vmax.f32 %v2208, 0.0
        %v4168 = vmax.f32 %v2857, 0.0
        %v4169 = vmax.f32 %v3506, 0.0
        %v4170 = vmax.f32 %v1561, 0.0
        %v4171 = vmax.f32 %v2210, 0.0
        %v4172 = vmax.f32 %v2859, 0.0
        %v4173 = vmax.f32 %v3508, 0.0
        %v4174 = vmax.f32 %v1564, 0.0
        %v4175 = vmax.f32 %v2213, 0.0
        %v4176 = vmax.f32 %v2862, 0.0
        %v4177 = vmax.f32 %v3511, 0.0
        %v4178 = vmax.f32 %v1566, 0.0
        %v4179 = vmax.f32 %v2215, 0.0
        %v4180 = vmax.f32 %v2864, 0.0
        %v4181 = vmax.f32 %v3513, 0.0
        %v4182 = vmax.f32 %v1569, 0.0
        %v4183 = vmax.f32 %v2218, 0.0
        %v4184 = vmax.f32 %v2867, 0.0
        %v4185 = vmax.f32 %v3516, 0.0
        %v4186 = vmax.f32 %v1571, 0.0
        %v4187 = vmax.f32 %v2220, 0.0
        %v4188 = vmax.f32 %v2869, 0.0
        %v4189 = vmax.f32 %v3518, 0.0
        %v4190 = vmax.f32 %v1574, 0.0
        %v4191 = vmax.f32 %v2223, 0.0
        %v4192 = vmax.f32 %v2872, 0.0
        %v4193 = vmax.f32 %v3521, 0.0
        %v4194 = vmax.f32 %v1576, 0.0
        %v4195 = vmax.f32 %v2225, 0.0
        %v4196 = vmax.f32 %v2874, 0.0
        %v4197 = vmax.f32 %v3523, 0.0
        %v4198 = vmax.f32 %v1579, 0.0
        %v4199 = vmax.f32 %v2228, 0.0
        %v4200 = vmax.f32 %v2877, 0.0
        %v4201 = vmax.f32 %v3526, 0.0
        %v4202 = vmax.f32 %v1581, 0.0
        %v4203 = vmax.f32 %v2230, 0.0
        %v4204 = vmax.f32 %v2879, 0.0
        %v4205 = vmax.f32 %v3528, 0.0
        %v4206 = vmax.f32 %v1584, 0.0
        %v4207 = vmax.f32 %v2233, 0.0
        %v4208 = vmax.f32 %v2882, 0.0
        %v4209 = vmax.f32 %v3531, 0.0
        %v4210 = vmax.f32 %v1586, 0.0
        %v4211 = vmax.f32 %v2235, 0.0
        %v4212 = vmax.f32 %v2884, 0.0
        %v4213 = vmax.f32 %v3533, 0.0
        %v4214 = vmax.f32 %v1589, 0.0
        %v4215 = vmax.f32 %v2238, 0.0
        %v4216 = vmax.f32 %v2887, 0.0
        %v4217 = vmax.f32 %v3536, 0.0
        %v4218 = vmax.f32 %v1591, 0.0
        %v4219 = vmax.f32 %v2240, 0.0
        %v4220 = vmax.f32 %v2889, 0.0
        %v4221 = vmax.f32 %v3538, 0.0
        %v4222 = vmax.f32 %v1594, 0.0
        %v4223 = vmax.f32 %v2243, 0.0
        %v4224 = vmax.f32 %v2892, 0.0
        %v4225 = vmax.f32 %v3541, 0.0
        %v4226 = vmax.f32 %v1596, 0.0
        %v4227 = vmax.f32 %v2245, 0.0
        %v4228 = vmax.f32 %v2894, 0.0
        %v4229 = vmax.f32 %v3543, 0.0
        %v4230 = vmax.f32 %v1599, 0.0
        %v4231 = vmax.f32 %v2248, 0.0
        %v4232 = vmax.f32 %v2897, 0.0
        %v4233 = vmax.f32 %v3546, 0.0
        %v4234 = vmax.f32 %v1601, 0.0
        %v4235 = vmax.f32 %v2250, 0.0
        %v4236 = vmax.f32 %v2899, 0.0
        %v4237 = vmax.f32 %v3548, 0.0
        %v4238 = vmax.f32 %v1604, 0.0
        %v4239 = vmax.f32 %v2253, 0.0
        %v4240 = vmax.f32 %v2902, 0.0
        %v4241 = vmax.f32 %v3551, 0.0
        %v4242 = vmax.f32 %v1606, 0.0
        %v4243 = vmax.f32 %v2255, 0.0
        %v4244 = vmax.f32 %v2904, 0.0
        %v4245 = vmax.f32 %v3553, 0.0
        %v4246 = vmax.f32 %v1609, 0.0
        %v4247 = vmax.f32 %v2258, 0.0
        %v4248 = vmax.f32 %v2907, 0.0
        %v4249 = vmax.f32 %v3556, 0.0
        %v4250 = vmax.f32 %v1611, 0.0
        %v4251 = vmax.f32 %v2260, 0.0
        %v4252 = vmax.f32 %v2909, 0.0
        %v4253 = vmax.f32 %v3558, 0.0
        %v4254 = vmax.f32 %v1614, 0.0
        %v4255 = vmax.f32 %v2263, 0.0
        %v4256 = vmax.f32 %v2912, 0.0
        %v4257 = vmax.f32 %v3561, 0.0
        %v4258 = vmax.f32 %v1616, 0.0
        %v4259 = vmax.f32 %v2265, 0.0
        %v4260 = vmax.f32 %v2914, 0.0
        %v4261 = vmax.f32 %v3563, 0.0
        %v4262 = vmax.f32 %v1619, 0.0
        %v4263 = vmax.f32 %v2268, 0.0
        %v4264 = vmax.f32 %v2917, 0.0
        %v4265 = vmax.f32 %v3566, 0.0
        %v4266 = vmax.f32 %v1621, 0.0
        %v4267 = vmax.f32 %v2270, 0.0
        %v4268 = vmax.f32 %v2919, 0.0
        %v4269 = vmax.f32 %v3568, 0.0
        %v4270 = vmax.f32 %v1624, 0.0
        %v4271 = vmax.f32 %v2273, 0.0
        %v4272 = vmax.f32 %v2922, 0.0
        %v4273 = vmax.f32 %v3571, 0.0
        %v4274 = vmax.f32 %v1626, 0.0
        %v4275 = vmax.f32 %v2275, 0.0
        %v4276 = vmax.f32 %v2924, 0.0
        %v4277 = vmax.f32 %v3573, 0.0
        %v4278 = vmax.f32 %v1629, 0.0
        %v4279 = vmax.f32 %v2278, 0.0
        %v4280 = vmax.f32 %v2927, 0.0
        %v4281 = vmax.f32 %v3576, 0.0
        %v4282 = vmax.f32 %v1631, 0.0
        %v4283 = vmax.f32 %v2280, 0.0
        %v4284 = vmax.f32 %v2929, 0.0
        %v4285 = vmax.f32 %v3578, 0.0
        %v4286 = vmax.f32 %v1634, 0.0
        %v4287 = vmax.f32 %v2283, 0.0
        %v4288 = vmax.f32 %v2932, 0.0
        %v4289 = vmax.f32 %v3581, 0.0
        %v4290 = vmax.f32 %v1636, 0.0
        %v4291 = vmax.f32 %v2285, 0.0
        %v4292 = vmax.f32 %v2934, 0.0
        %v4293 = vmax.f32 %v3583, 0.0
        %v4294 = vmax.f32 %v1639, 0.0
        %v4295 = vmax.f32 %v2288, 0.0
        %v4296 = vmax.f32 %v2937, 0.0
        %v4297 = vmax.f32 %v3586, 0.0
        %v4298 = vmax.f32 %v1641, 0.0
        %v4299 = vmax.f32 %v2290, 0.0
        %v4300 = vmax.f32 %v2939, 0.0
        %v4301 = vmax.f32 %v3588, 0.0
        %v4302 = vmax.f32 %v1644, 0.0
        %v4303 = vmax.f32 %v2293, 0.0
        %v4304 = vmax.f32 %v2942, 0.0
        %v4305 = vmax.f32 %v3591, 0.0
        %v4306 = vmax.f32 %v1646, 0.0
        %v4307 = vmax.f32 %v2295, 0.0
        %v4308 = vmax.f32 %v2944, 0.0
        %v4309 = vmax.f32 %v3593, 0.0
        %v4310 = vmax.f32 %v1649, 0.0
        %v4311 = vmax.f32 %v2298, 0.0
        %v4312 = vmax.f32 %v2947, 0.0
        %v4313 = vmax.f32 %v3596, 0.0
        %v4314 = vmax.f32 %v1651, 0.0
        %v4315 = vmax.f32 %v2300, 0.0
        %v4316 = vmax.f32 %v2949, 0.0
        %v4317 = vmax.f32 %v3598, 0.0
        %v4318 = vmax.f32 %v1654, 0.0
        %v4319 = vmax.f32 %v2303, 0.0
        %v4320 = vmax.f32 %v2952, 0.0
        %v4321 = vmax.f32 %v3601, 0.0
        %v4322 = vmax.f32 %v1656, 0.0
        %v4323 = vmax.f32 %v2305, 0.0
        %v4324 = vmax.f32 %v2954, 0.0
        %v4325 = vmax.f32 %v3603, 0.0
        %v4326 = vmax.f32 %v1659, 0.0
        %v4327 = vmax.f32 %v2308, 0.0
        %v4328 = vmax.f32 %v2957, 0.0
        %v4329 = vmax.f32 %v3606, 0.0
        %v4330 = vmax.f32 %v1661, 0.0
        %v4331 = vmax.f32 %v2310, 0.0
        %v4332 = vmax.f32 %v2959, 0.0
        %v4333 = vmax.f32 %v3608, 0.0
        %v4334 = vmax.f32 %v1664, 0.0
        %v4335 = vmax.f32 %v2313, 0.0
        %v4336 = vmax.f32 %v2962, 0.0
        %v4337 = vmax.f32 %v3611, 0.0
        %v4338 = vmax.f32 %v1666, 0.0
        %v4339 = vmax.f32 %v2315, 0.0
        %v4340 = vmax.f32 %v2964, 0.0
        %v4341 = vmax.f32 %v3613, 0.0
        %v4342 = vmax.f32 %v1669, 0.0
        %v4343 = vmax.f32 %v2318, 0.0
        %v4344 = vmax.f32 %v2967, 0.0
        %v4345 = vmax.f32 %v3616, 0.0
        %v4346 = vmax.f32 %v1671, 0.0
        %v4347 = vmax.f32 %v2320, 0.0
        %v4348 = vmax.f32 %v2969, 0.0
        %v4349 = vmax.f32 %v3618, 0.0
        %v4350 = vmax.f32 %v1674, 0.0
        %v4351 = vmax.f32 %v2323, 0.0
        %v4352 = vmax.f32 %v2972, 0.0
        %v4353 = vmax.f32 %v3621, 0.0
        %v4354 = vmax.f32 %v1676, 0.0
        %v4355 = vmax.f32 %v2325, 0.0
        %v4356 = vmax.f32 %v2974, 0.0
        %v4357 = vmax.f32 %v3623, 0.0
        %v4358 = vmax.f32 %v1679, 0.0
        %v4359 = vmax.f32 %v2328, 0.0
        %v4360 = vmax.f32 %v2977, 0.0
        %v4361 = vmax.f32 %v3626, 0.0
        %v4362 = vmax.f32 %v1681, 0.0
        %v4363 = vmax.f32 %v2330, 0.0
        %v4364 = vmax.f32 %v2979, 0.0
        %v4365 = vmax.f32 %v3628, 0.0
        %v4366 = vmax.f32 %v1684, 0.0
        %v4367 = vmax.f32 %v2333, 0.0
        %v4368 = vmax.f32 %v2982, 0.0
        %v4369 = vmax.f32 %v3631, 0.0
        %v4370 = vmax.f32 %v1686, 0.0
        %v4371 = vmax.f32 %v2335, 0.0
        %v4372 = vmax.f32 %v2984, 0.0
        %v4373 = vmax.f32 %v3633, 0.0
        %v4374 = vmax.f32 %v1689, 0.0
        %v4375 = vmax.f32 %v2338, 0.0
        %v4376 = vmax.f32 %v2987, 0.0
        %v4377 = vmax.f32 %v3636, 0.0
        %v4378 = vmax.f32 %v1691, 0.0
        %v4379 = vmax.f32 %v2340, 0.0
        %v4380 = vmax.f32 %v2989, 0.0
        %v4381 = vmax.f32 %v3638, 0.0
        %v4382 = vmax.f32 %v1694, 0.0
        %v4383 = vmax.f32 %v2343, 0.0
        %v4384 = vmax.f32 %v2992, 0.0
        %v4385 = vmax.f32 %v3641, 0.0
        %v4386 = vmax.f32 %v1696, 0.0
        %v4387 = vmax.f32 %v2345, 0.0
        %v4388 = vmax.f32 %v2994, 0.0
        %v4389 = vmax.f32 %v3643, 0.0
        %v4390 = vmax.f32 %v1699, 0.0
        %v4391 = vmax.f32 %v2348, 0.0
        %v4392 = vmax.f32 %v2997, 0.0
        %v4393 = vmax.f32 %v3646, 0.0
        %v4394 = vmax.f32 %v1701, 0.0
        %v4395 = vmax.f32 %v2350, 0.0
        %v4396 = vmax.f32 %v2999, 0.0
        %v4397 = vmax.f32 %v3648, 0.0
        %v4398 = vmax.f32 %v1704, 0.0
        %v4399 = vmax.f32 %v2353, 0.0
        %v4400 = vmax.f32 %v3002, 0.0
        %v4401 = vmax.f32 %v3651, 0.0
        %v4402 = vmax.f32 %v1706, 0.0
        %v4403 = vmax.f32 %v2355, 0.0
        %v4404 = vmax.f32 %v3004, 0.0
        %v4405 = vmax.f32 %v3653, 0.0
        %v4406 = vmax.f32 %v1709, 0.0
        %v4407 = vmax.f32 %v2358, 0.0
        %v4408 = vmax.f32 %v3007, 0.0
        %v4409 = vmax.f32 %v3656, 0.0
        %v4410 = vmax.f32 %v1711, 0.0
        %v4411 = vmax.f32 %v2360, 0.0
        %v4412 = vmax.f32 %v3009, 0.0
        %v4413 = vmax.f32 %v3658, 0.0
        %v4414 = vmax.f32 %v1714, 0.0
        %v4415 = vmax.f32 %v2363, 0.0
        %v4416 = vmax.f32 %v3012, 0.0
        %v4417 = vmax.f32 %v3661, 0.0
        %v4418 = vmax.f32 %v1716, 0.0
        %v4419 = vmax.f32 %v2365, 0.0
        %v4420 = vmax.f32 %v3014, 0.0
        %v4421 = vmax.f32 %v3663, 0.0
        %v4422 = vmax.f32 %v1719, 0.0
        %v4423 = vmax.f32 %v2368, 0.0
        %v4424 = vmax.f32 %v3017, 0.0
        %v4425 = vmax.f32 %v3666, 0.0
        %v4426 = vmax.f32 %v1721, 0.0
        %v4427 = vmax.f32 %v2370, 0.0
        %v4428 = vmax.f32 %v3019, 0.0
        %v4429 = vmax.f32 %v3668, 0.0
        %v4430 = vmax.f32 %v1724, 0.0
        %v4431 = vmax.f32 %v2373, 0.0
        %v4432 = vmax.f32 %v3022, 0.0
        %v4433 = vmax.f32 %v3671, 0.0
        %v4434 = vmax.f32 %v1726, 0.0
        %v4435 = vmax.f32 %v2375, 0.0
        %v4436 = vmax.f32 %v3024, 0.0
        %v4437 = vmax.f32 %v3673, 0.0
        %v4438 = vmax.f32 %v1729, 0.0
        %v4439 = vmax.f32 %v2378, 0.0
        %v4440 = vmax.f32 %v3027, 0.0
        %v4441 = vmax.f32 %v3676, 0.0
        %v4442 = vmax.f32 %v1731, 0.0
        %v4443 = vmax.f32 %v2380, 0.0
        %v4444 = vmax.f32 %v3029, 0.0
        %v4445 = vmax.f32 %v3678, 0.0
        %v4446 = vmax.f32 %v1734, 0.0
        %v4447 = vmax.f32 %v2383, 0.0
        %v4448 = vmax.f32 %v3032, 0.0
        %v4449 = vmax.f32 %v3681, 0.0
        %v4450 = vmax.f32 %v1736, 0.0
        %v4451 = vmax.f32 %v2385, 0.0
        %v4452 = vmax.f32 %v3034, 0.0
        %v4453 = vmax.f32 %v3683, 0.0
        %v4454 = vmax.f32 %v1739, 0.0
        %v4455 = vmax.f32 %v2388, 0.0
        %v4456 = vmax.f32 %v3037, 0.0
        %v4457 = vmax.f32 %v3686, 0.0
        %v4458 = vmax.f32 %v1741, 0.0
        %v4459 = vmax.f32 %v2390, 0.0
        %v4460 = vmax.f32 %v3039, 0.0
        %v4461 = vmax.f32 %v3688, 0.0
        %v4462 = vmax.f32 %v1744, 0.0
        %v4463 = vmax.f32 %v2393, 0.0
        %v4464 = vmax.f32 %v3042, 0.0
        %v4465 = vmax.f32 %v3691, 0.0
        %v4466 = vmax.f32 %v1746, 0.0
        %v4467 = vmax.f32 %v2395, 0.0
        %v4468 = vmax.f32 %v3044, 0.0
        %v4469 = vmax.f32 %v3693, 0.0
        %v4470 = vmax.f32 %v1749, 0.0
        %v4471 = vmax.f32 %v2398, 0.0
        %v4472 = vmax.f32 %v3047, 0.0
        %v4473 = vmax.f32 %v3696, 0.0
        %v4474 = vmax.f32 %v1751, 0.0
        %v4475 = vmax.f32 %v2400, 0.0
        %v4476 = vmax.f32 %v3049, 0.0
        %v4477 = vmax.f32 %v3698, 0.0
        %v4478 = vmax.f32 %v1754, 0.0
        %v4479 = vmax.f32 %v2403, 0.0
        %v4480 = vmax.f32 %v3052, 0.0
        %v4481 = vmax.f32 %v3701, 0.0
        %v4482 = vmax.f32 %v1756, 0.0
        %v4483 = vmax.f32 %v2405, 0.0
        %v4484 = vmax.f32 %v3054, 0.0
        %v4485 = vmax.f32 %v3703, 0.0
        %v4486 = vmax.f32 %v1759, 0.0
        %v4487 = vmax.f32 %v2408, 0.0
        %v4488 = vmax.f32 %v3057, 0.0
        %v4489 = vmax.f32 %v3706, 0.0
        %v4490 = vmax.f32 %v1761, 0.0
        %v4491 = vmax.f32 %v2410, 0.0
        %v4492 = vmax.f32 %v3059, 0.0
        %v4493 = vmax.f32 %v3708, 0.0
        %v4494 = vmax.f32 %v1764, 0.0
        %v4495 = vmax.f32 %v2413, 0.0
        %v4496 = vmax.f32 %v3062, 0.0
        %v4497 = vmax.f32 %v3711, 0.0
        %v4498 = vmax.f32 %v1766, 0.0
        %v4499 = vmax.f32 %v2415, 0.0
        %v4500 = vmax.f32 %v3064, 0.0
        %v4501 = vmax.f32 %v3713, 0.0
        %v4502 = vmax.f32 %v1769, 0.0
        %v4503 = vmax.f32 %v2418, 0.0
        %v4504 = vmax.f32 %v3067, 0.0
        %v4505 = vmax.f32 %v3716, 0.0
        %v4506 = vmax.f32 %v1771, 0.0
        %v4507 = vmax.f32 %v2420, 0.0
        %v4508 = vmax.f32 %v3069, 0.0
        %v4509 = vmax.f32 %v3718, 0.0
        %v4510 = vmax.f32 %v1774, 0.0
        %v4511 = vmax.f32 %v2423, 0.0
        %v4512 = vmax.f32 %v3072, 0.0
        %v4513 = vmax.f32 %v3721, 0.0
        %v4514 = vmax.f32 %v1776, 0.0
        %v4515 = vmax.f32 %v2425, 0.0
        %v4516 = vmax.f32 %v3074, 0.0
        %v4517 = vmax.f32 %v3723, 0.0
        %v4518 = vmax.f32 %v1779, 0.0
        %v4519 = vmax.f32 %v2428, 0.0
        %v4520 = vmax.f32 %v3077, 0.0
        %v4521 = vmax.f32 %v3726, 0.0
        %v4522 = vmax.f32 %v1781, 0.0
        %v4523 = vmax.f32 %v2430, 0.0
        %v4524 = vmax.f32 %v3079, 0.0
        %v4525 = vmax.f32 %v3728, 0.0
        %v4526 = vmax.f32 %v1784, 0.0
        %v4527 = vmax.f32 %v2433, 0.0
        %v4528 = vmax.f32 %v3082, 0.0
        %v4529 = vmax.f32 %v3731, 0.0
        %v4530 = vmax.f32 %v1786, 0.0
        %v4531 = vmax.f32 %v2435, 0.0
        %v4532 = vmax.f32 %v3084, 0.0
        %v4533 = vmax.f32 %v3733, 0.0
        %v4534 = vmax.f32 %v1789, 0.0
        %v4535 = vmax.f32 %v2438, 0.0
        %v4536 = vmax.f32 %v3087, 0.0
        %v4537 = vmax.f32 %v3736, 0.0
        %v4538 = vmax.f32 %v1791, 0.0
        %v4539 = vmax.f32 %v2440, 0.0
        %v4540 = vmax.f32 %v3089, 0.0
        %v4541 = vmax.f32 %v3738, 0.0
        %v4542 = vmax.f32 %v1794, 0.0
        %v4543 = vmax.f32 %v2443, 0.0
        %v4544 = vmax.f32 %v3092, 0.0
        %v4545 = vmax.f32 %v3741, 0.0
        %v4546 = vmax.f32 %v1796, 0.0
        %v4547 = vmax.f32 %v2445, 0.0
        %v4548 = vmax.f32 %v3094, 0.0
        %v4549 = vmax.f32 %v3743, 0.0
        %v4550 = vmax.f32 %v1799, 0.0
        %v4551 = vmax.f32 %v2448, 0.0
        %v4552 = vmax.f32 %v3097, 0.0
        %v4553 = vmax.f32 %v3746, 0.0
        %v4554 = vmax.f32 %v1801, 0.0
        %v4555 = vmax.f32 %v2450, 0.0
        %v4556 = vmax.f32 %v3099, 0.0
        %v4557 = vmax.f32 %v3748, 0.0
        %v4558 = vmax.f32 %v1804, 0.0
        %v4559 = vmax.f32 %v2453, 0.0
        %v4560 = vmax.f32 %v3102, 0.0
        %v4561 = vmax.f32 %v3751, 0.0
        %v4562 = vmax.f32 %v1806, 0.0
        %v4563 = vmax.f32 %v2455, 0.0
        %v4564 = vmax.f32 %v3104, 0.0
        %v4565 = vmax.f32 %v3753, 0.0
        %v4566 = vmax.f32 %v1809, 0.0
        %v4567 = vmax.f32 %v2458, 0.0
        %v4568 = vmax.f32 %v3107, 0.0
        %v4569 = vmax.f32 %v3756, 0.0
        %v4570 = vmax.f32 %v1811, 0.0
        %v4571 = vmax.f32 %v2460, 0.0
        %v4572 = vmax.f32 %v3109, 0.0
        %v4573 = vmax.f32 %v3758, 0.0
        %v4574 = vmax.f32 %v1814, 0.0
        %v4575 = vmax.f32 %v2463, 0.0
        %v4576 = vmax.f32 %v3112, 0.0
        %v4577 = vmax.f32 %v3761, 0.0
        %v4578 = vmax.f32 %v1816, 0.0
        %v4579 = vmax.f32 %v2465, 0.0
        %v4580 = vmax.f32 %v3114, 0.0
        %v4581 = vmax.f32 %v3763, 0.0
        %v4582 = vmax.f32 %v1819, 0.0
        %v4583 = vmax.f32 %v2468, 0.0
        %v4584 = vmax.f32 %v3117, 0.0
        %v4585 = vmax.f32 %v3766, 0.0
        %v4586 = vmax.f32 %v1821, 0.0
        %v4587 = vmax.f32 %v2470, 0.0
        %v4588 = vmax.f32 %v3119, 0.0
        %v4589 = vmax.f32 %v3768, 0.0
        %v4590 = vmax.f32 %v1824, 0.0
        %v4591 = vmax.f32 %v2473, 0.0
        %v4592 = vmax.f32 %v3122, 0.0
        %v4593 = vmax.f32 %v3771, 0.0
        %v4594 = vmax.f32 %v1826, 0.0
        %v4595 = vmax.f32 %v2475, 0.0
        %v4596 = vmax.f32 %v3124, 0.0
        %v4597 = vmax.f32 %v3773, 0.0
        %v4598 = vmax.f32 %v1829, 0.0
        %v4599 = vmax.f32 %v2478, 0.0
        %v4600 = vmax.f32 %v3127, 0.0
        %v4601 = vmax.f32 %v3776, 0.0
        %v4602 = vmax.f32 %v1831, 0.0
        %v4603 = vmax.f32 %v2480, 0.0
        %v4604 = vmax.f32 %v3129, 0.0
        %v4605 = vmax.f32 %v3778, 0.0
        %v4606 = vmax.f32 %v1834, 0.0
        %v4607 = vmax.f32 %v2483, 0.0
        %v4608 = vmax.f32 %v3132, 0.0
        %v4609 = vmax.f32 %v3781, 0.0
        %v4610 = vmax.f32 %v1836, 0.0
        %v4611 = vmax.f32 %v2485, 0.0
        %v4612 = vmax.f32 %v3134, 0.0
        %v4613 = vmax.f32 %v3783, 0.0
        %v4614 = vmax.f32 %v1839, 0.0
        %v4615 = vmax.f32 %v2488, 0.0
        %v4616 = vmax.f32 %v3137, 0.0
        %v4617 = vmax.f32 %v3786, 0.0
        %v4618 = vmax.f32 %v1841, 0.0
        %v4619 = vmax.f32 %v2490, 0.0
        %v4620 = vmax.f32 %v3139, 0.0
        %v4621 = vmax.f32 %v3788, 0.0
        %v4622 = vmax.f32 %v1844, 0.0
        %v4623 = vmax.f32 %v2493, 0.0
        %v4624 = vmax.f32 %v3142, 0.0
        %v4625 = vmax.f32 %v3791, 0.0
        %v4626 = vmax.f32 %v1846, 0.0
        %v4627 = vmax.f32 %v2495, 0.0
        %v4628 = vmax.f32 %v3144, 0.0
        %v4629 = vmax.f32 %v3793, 0.0
        %v4630 = vmax.f32 %v1849, 0.0
        %v4631 = vmax.f32 %v2498, 0.0
        %v4632 = vmax.f32 %v3147, 0.0
        %v4633 = vmax.f32 %v3796, 0.0
        %v4634 = vmax.f32 %v1851, 0.0
        %v4635 = vmax.f32 %v2500, 0.0
        %v4636 = vmax.f32 %v3149, 0.0
        %v4637 = vmax.f32 %v3798, 0.0
        %v4638 = vmax.f32 %v1854, 0.0
        %v4639 = vmax.f32 %v2503, 0.0
        %v4640 = vmax.f32 %v3152, 0.0
        %v4641 = vmax.f32 %v3801, 0.0
        %v4642 = vmax.f32 %v1856, 0.0
        %v4643 = vmax.f32 %v2505, 0.0
        %v4644 = vmax.f32 %v3154, 0.0
        %v4645 = vmax.f32 %v3803, 0.0
        %v4646 = vmax.f32 %v1859, 0.0
        %v4647 = vmax.f32 %v2508, 0.0
        %v4648 = vmax.f32 %v3157, 0.0
        %v4649 = vmax.f32 %v3806, 0.0
        %v4650 = vmax.f32 %v1861, 0.0
        %v4651 = vmax.f32 %v2510, 0.0
        %v4652 = vmax.f32 %v3159, 0.0
        %v4653 = vmax.f32 %v3808, 0.0
        %v4654 = vmax.f32 %v1864, 0.0
        %v4655 = vmax.f32 %v2513, 0.0
        %v4656 = vmax.f32 %v3162, 0.0
        %v4657 = vmax.f32 %v3811, 0.0
        %v4658 = vmax.f32 %v1866, 0.0
        %v4659 = vmax.f32 %v2515, 0.0
        %v4660 = vmax.f32 %v3164, 0.0
        %v4661 = vmax.f32 %v3813, 0.0
        %v4662 = vmax.f32 %v1869, 0.0
        %v4663 = vmax.f32 %v2518, 0.0
        %v4664 = vmax.f32 %v3167, 0.0
        %v4665 = vmax.f32 %v3816, 0.0
        %v4666 = vmax.f32 %v1871, 0.0
        %v4667 = vmax.f32 %v2520, 0.0
        %v4668 = vmax.f32 %v3169, 0.0
        %v4669 = vmax.f32 %v3818, 0.0
        %v4670 = vmax.f32 %v1874, 0.0
        %v4671 = vmax.f32 %v2523, 0.0
        %v4672 = vmax.f32 %v3172, 0.0
        %v4673 = vmax.f32 %v3821, 0.0
        %v4674 = vmax.f32 %v1876, 0.0
        %v4675 = vmax.f32 %v2525, 0.0
        %v4676 = vmax.f32 %v3174, 0.0
        %v4677 = vmax.f32 %v3823, 0.0
        %v4678 = vmax.f32 %v1879, 0.0
        %v4679 = vmax.f32 %v2528, 0.0
        %v4680 = vmax.f32 %v3177, 0.0
        %v4681 = vmax.f32 %v3826, 0.0
        %v4682 = vmax.f32 %v1881, 0.0
        %v4683 = vmax.f32 %v2530, 0.0
        %v4684 = vmax.f32 %v3179, 0.0
        %v4685 = vmax.f32 %v3828, 0.0
        %v4686 = vmax.f32 %v1884, 0.0
        %v4687 = vmax.f32 %v2533, 0.0
        %v4688 = vmax.f32 %v3182, 0.0
        %v4689 = vmax.f32 %v3831, 0.0
        %v4690 = vmax.f32 %v1886, 0.0
        %v4691 = vmax.f32 %v2535, 0.0
        %v4692 = vmax.f32 %v3184, 0.0
        %v4693 = vmax.f32 %v3833, 0.0
        %v4694 = vmax.f32 %v1889, 0.0
        %v4695 = vmax.f32 %v2538, 0.0
        %v4696 = vmax.f32 %v3187, 0.0
        %v4697 = vmax.f32 %v3836, 0.0
        %v4698 = vmax.f32 %v1891, 0.0
        %v4699 = vmax.f32 %v2540, 0.0
        %v4700 = vmax.f32 %v3189, 0.0
        %v4701 = vmax.f32 %v3838, 0.0
        %v4702 = vmax.f32 %v1894, 0.0
        %v4703 = vmax.f32 %v2543, 0.0
        %v4704 = vmax.f32 %v3192, 0.0
        %v4705 = vmax.f32 %v3841, 0.0
        %v4706 = vmax.f32 %v1896, 0.0
        %v4707 = vmax.f32 %v2545, 0.0
        %v4708 = vmax.f32 %v3194, 0.0
        %v4709 = vmax.f32 %v3843, 0.0
        %v4710 = vmax.f32 %v1899, 0.0
        %v4711 = vmax.f32 %v2548, 0.0
        %v4712 = vmax.f32 %v3197, 0.0
        %v4713 = vmax.f32 %v3846, 0.0
        %v4714 = vmax.f32 %v1901, 0.0
        %v4715 = vmax.f32 %v2550, 0.0
        %v4716 = vmax.f32 %v3199, 0.0
        %v4717 = vmax.f32 %v3848, 0.0
        %v4718 = vmax.f32 %v1904, 0.0
        %v4719 = vmax.f32 %v2553, 0.0
        %v4720 = vmax.f32 %v3202, 0.0
        %v4721 = vmax.f32 %v3851, 0.0
        %v4722 = vmax.f32 %v1906, 0.0
        %v4723 = vmax.f32 %v2555, 0.0
        %v4724 = vmax.f32 %v3204, 0.0
        %v4725 = vmax.f32 %v3853, 0.0
        %v4726 = vmax.f32 %v1909, 0.0
        %v4727 = vmax.f32 %v2558, 0.0
        %v4728 = vmax.f32 %v3207, 0.0
        %v4729 = vmax.f32 %v3856, 0.0
        %v4730 = vmax.f32 %v1911, 0.0
        %v4731 = vmax.f32 %v2560, 0.0
        %v4732 = vmax.f32 %v3209, 0.0
        %v4733 = vmax.f32 %v3858, 0.0
        %v4734 = vmax.f32 %v1914, 0.0
        %v4735 = vmax.f32 %v2563, 0.0
        %v4736 = vmax.f32 %v3212, 0.0
        %v4737 = vmax.f32 %v3861, 0.0
        %v4738 = vmax.f32 %v1916, 0.0
        %v4739 = vmax.f32 %v2565, 0.0
        %v4740 = vmax.f32 %v3214, 0.0
        %v4741 = vmax.f32 %v3863, 0.0
        %v4742 = vmax.f32 %v1919, 0.0
        %v4743 = vmax.f32 %v2568, 0.0
        %v4744 = vmax.f32 %v3217, 0.0
        %v4745 = vmax.f32 %v3866, 0.0
        %v4746 = vmax.f32 %v1921, 0.0
        %v4747 = vmax.f32 %v2570, 0.0
        %v4748 = vmax.f32 %v3219, 0.0
        %v4749 = vmax.f32 %v3868, 0.0
        %v4750 = vmax.f32 %v1924, 0.0
        %v4751 = vmax.f32 %v2573, 0.0
        %v4752 = vmax.f32 %v3222, 0.0
        %v4753 = vmax.f32 %v3871, 0.0
        %v4754 = vmax.f32 %v1926, 0.0
        %v4755 = vmax.f32 %v2575, 0.0
        %v4756 = vmax.f32 %v3224, 0.0
        %v4757 = vmax.f32 %v3873, 0.0
        %v4758 = vmax.f32 %v1929, 0.0
        %v4759 = vmax.f32 %v2578, 0.0
        %v4760 = vmax.f32 %v3227, 0.0
        %v4761 = vmax.f32 %v3876, 0.0
        %v4762 = vmax.f32 %v1931, 0.0
        %v4763 = vmax.f32 %v2580, 0.0
        %v4764 = vmax.f32 %v3229, 0.0
        %v4765 = vmax.f32 %v3878, 0.0
        %v4766 = vmax.f32 %v1934, 0.0
        %v4767 = vmax.f32 %v2583, 0.0
        %v4768 = vmax.f32 %v3232, 0.0
        %v4769 = vmax.f32 %v3881, 0.0
        %v4770 = vmax.f32 %v1936, 0.0
        %v4771 = vmax.f32 %v2585, 0.0
        %v4772 = vmax.f32 %v3234, 0.0
        %v4773 = vmax.f32 %v3883, 0.0
        %v4774 = vmax.f32 %v1939, 0.0
        %v4775 = vmax.f32 %v2588, 0.0
        %v4776 = vmax.f32 %v3237, 0.0
        %v4777 = vmax.f32 %v3886, 0.0
        %v4778 = vmax.f32 %v1941, 0.0
        %v4779 = vmax.f32 %v2590, 0.0
        %v4780 = vmax.f32 %v3239, 0.0
        %v4781 = vmax.f32 %v3888, 0.0
        %v4782 = vmax.f32 %v1944, 0.0
        %v4783 = vmax.f32 %v2593, 0.0
        %v4784 = vmax.f32 %v3242, 0.0
        %v4785 = vmax.f32 %v3891, 0.0
        %v4786 = vmax.f32 %v1946, 0.0
        %v4787 = vmax.f32 %v2595, 0.0
        %v4788 = vmax.f32 %v3244, 0.0
        %v4789 = vmax.f32 %v3893, 0.0
        %v4790 = vmax.f32 %v1949, 0.0
        %v4791 = vmax.f32 %v2598, 0.0
        %v4792 = vmax.f32 %v3247, 0.0
        %v4793 = vmax.f32 %v3896, 0.0
        %v4794 = vmax.f32 %v1951, 0.0
        %v4795 = vmax.f32 %v2600, 0.0
        %v4796 = vmax.f32 %v3249, 0.0
        %v4797 = vmax.f32 %v3898, 0.0
        %v4798 = vmax.f32 %v1954, 0.0
        %v4799 = vmax.f32 %v2603, 0.0
        %v4800 = vmax.f32 %v3252, 0.0
        %v4801 = vmax.f32 %v3901, 0.0
        %v4802 = vmax.f32 %v1956, 0.0
        %v4803 = vmax.f32 %v2605, 0.0
        %v4804 = vmax.f32 %v3254, 0.0
        %v4805 = vmax.f32 %v3903, 0.0
        %v4806 = vmax.f32 %v1959, 0.0
        %v4807 = vmax.f32 %v2608, 0.0
        %v4808 = vmax.f32 %v3257, 0.0
        %v4809 = vmax.f32 %v3906, 0.0
        %v4810 = vmax.f32 %v1961, 0.0
        %v4811 = vmax.f32 %v2610, 0.0
        %v4812 = vmax.f32 %v3259, 0.0
        %v4813 = vmax.f32 %v3908, 0.0
        %v4814 = vmax.f32 %v1964, 0.0
        %v4815 = vmax.f32 %v2613, 0.0
        %v4816 = vmax.f32 %v3262, 0.0
        %v4817 = vmax.f32 %v3911, 0.0
        %v4818 = vmax.f32 %v1966, 0.0
        %v4819 = vmax.f32 %v2615, 0.0
        %v4820 = vmax.f32 %v3264, 0.0
        %v4821 = vmax.f32 %v3913, 0.0
        %v4822 = vmax.f32 %v1969, 0.0
        %v4823 = vmax.f32 %v2618, 0.0
        %v4824 = vmax.f32 %v3267, 0.0
        %v4825 = vmax.f32 %v3916, 0.0
        %v4826 = vmax.f32 %v1971, 0.0
        %v4827 = vmax.f32 %v2620, 0.0
        %v4828 = vmax.f32 %v3269, 0.0
        %v4829 = vmax.f32 %v3918, 0.0
        %v4830 = vmax.f32 %v1974, 0.0
        %v4831 = vmax.f32 %v2623, 0.0
        %v4832 = vmax.f32 %v3272, 0.0
        %v4833 = vmax.f32 %v3921, 0.0
        %v4834 = vmax.f32 %v1976, 0.0
        %v4835 = vmax.f32 %v2625, 0.0
        %v4836 = vmax.f32 %v3274, 0.0
        %v4837 = vmax.f32 %v3923, 0.0
        %v4838 = vmax.f32 %v1979, 0.0
        %v4839 = vmax.f32 %v2628, 0.0
        %v4840 = vmax.f32 %v3277, 0.0
        %v4841 = vmax.f32 %v3926, 0.0
        %v4842 = vmax.f32 %v1981, 0.0
        %v4843 = vmax.f32 %v2630, 0.0
        %v4844 = vmax.f32 %v3279, 0.0
        %v4845 = vmax.f32 %v3928, 0.0
        %v4846 = vmax.f32 %v1984, 0.0
        %v4847 = vmax.f32 %v2633, 0.0
        %v4848 = vmax.f32 %v3282, 0.0
        %v4849 = vmax.f32 %v3931, 0.0
        %v4850 = vmax.f32 %v1986, 0.0
        %v4851 = vmax.f32 %v2635, 0.0
        %v4852 = vmax.f32 %v3284, 0.0
        %v4853 = vmax.f32 %v3933, 0.0
        %v4854 = vmax.f32 %v1989, 0.0
        %v4855 = vmax.f32 %v2638, 0.0
        %v4856 = vmax.f32 %v3287, 0.0
        %v4857 = vmax.f32 %v3936, 0.0
        %v4858 = vmax.f32 %v1991, 0.0
        %v4859 = vmax.f32 %v2640, 0.0
        %v4860 = vmax.f32 %v3289, 0.0
        %v4861 = vmax.f32 %v3938, 0.0
        %v4862 = vmax.f32 %v1994, 0.0
        %v4863 = vmax.f32 %v2643, 0.0
        %v4864 = vmax.f32 %v3292, 0.0
        %v4865 = vmax.f32 %v3941, 0.0
        %v4866 = vmax.f32 %v1996, 0.0
        %v4867 = vmax.f32 %v2645, 0.0
        %v4868 = vmax.f32 %v3294, 0.0
        %v4869 = vmax.f32 %v3943, 0.0
        %v4870 = vmax.f32 %v1999, 0.0
        %v4871 = vmax.f32 %v2648, 0.0
        %v4872 = vmax.f32 %v3297, 0.0
        %v4873 = vmax.f32 %v3946, 0.0
        %v4874 = vmax.f32 %v2001, 0.0
        %v4875 = vmax.f32 %v2650, 0.0
        %v4876 = vmax.f32 %v3299, 0.0
        %v4877 = vmax.f32 %v3948, 0.0
        %v4878 = vmax.f32 %v2004, 0.0
        %v4879 = vmax.f32 %v2653, 0.0
        %v4880 = vmax.f32 %v3302, 0.0
        %v4881 = vmax.f32 %v3951, 0.0
        %v4882 = vmax.f32 %v2006, 0.0
        %v4883 = vmax.f32 %v2655, 0.0
        %v4884 = vmax.f32 %v3304, 0.0
        %v4885 = vmax.f32 %v3953, 0.0
        %v4886 = vmax.f32 %v2009, 0.0
        %v4887 = vmax.f32 %v2658, 0.0
        %v4888 = vmax.f32 %v3307, 0.0
        %v4889 = vmax.f32 %v3956, 0.0
        %v4890 = vmax.f32 %v2011, 0.0
        %v4891 = vmax.f32 %v2660, 0.0
        %v4892 = vmax.f32 %v3309, 0.0
        %v4893 = vmax.f32 %v3958, 0.0
        %v4894 = vmax.f32 %v2014, 0.0
        %v4895 = vmax.f32 %v2663, 0.0
        %v4896 = vmax.f32 %v3312, 0.0
        %v4897 = vmax.f32 %v3961, 0.0
        %v4898 = vmax.f32 %v2016, 0.0
        %v4899 = vmax.f32 %v2665, 0.0
        %v4900 = vmax.f32 %v3314, 0.0
        %v4901 = vmax.f32 %v3963, 0.0
        %v4902 = vmax.f32 %v2019, 0.0
        %v4903 = vmax.f32 %v2668, 0.0
        %v4904 = vmax.f32 %v3317, 0.0
        %v4905 = vmax.f32 %v3966, 0.0
        %v4906 = vmax.f32 %v2021, 0.0
        %v4907 = vmax.f32 %v2670, 0.0
        %v4908 = vmax.f32 %v3319, 0.0
        %v4909 = vmax.f32 %v3968, 0.0
        %v4910 = vmax.f32 %v2024, 0.0
        %v4911 = vmax.f32 %v2673, 0.0
        %v4912 = vmax.f32 %v3322, 0.0
        %v4913 = vmax.f32 %v3971, 0.0
        %v4914 = vmax.f32 %v2026, 0.0
        %v4915 = vmax.f32 %v2675, 0.0
        %v4916 = vmax.f32 %v3324, 0.0
        %v4917 = vmax.f32 %v3973, 0.0
        %v4918 = vmax.f32 %v2029, 0.0
        %v4919 = vmax.f32 %v2678, 0.0
        %v4920 = vmax.f32 %v3327, 0.0
        %v4921 = vmax.f32 %v3976, 0.0
        %v4922 = vmax.f32 %v2031, 0.0
        %v4923 = vmax.f32 %v2680, 0.0
        %v4924 = vmax.f32 %v3329, 0.0
        %v4925 = vmax.f32 %v3978, 0.0
        %v4926 = vmax.f32 %v2034, 0.0
        %v4927 = vmax.f32 %v2683, 0.0
        %v4928 = vmax.f32 %v3332, 0.0
        %v4929 = vmax.f32 %v3981, 0.0
        %v4930 = vmax.f32 %v2036, 0.0
        %v4931 = vmax.f32 %v2685, 0.0
        %v4932 = vmax.f32 %v3334, 0.0
        %v4933 = vmax.f32 %v3983, 0.0
        %v4934 = vmax.f32 %v2039, 0.0
        %v4935 = vmax.f32 %v2688, 0.0
        %v4936 = vmax.f32 %v3337, 0.0
        %v4937 = vmax.f32 %v3986, 0.0
        %v4938 = vmax.f32 %v2041, 0.0
        %v4939 = vmax.f32 %v2690, 0.0
        %v4940 = vmax.f32 %v3339, 0.0
        %v4941 = vmax.f32 %v3988, 0.0
        %v4942 = vmax.f32 %v2044, 0.0
        %v4943 = vmax.f32 %v2693, 0.0
        %v4944 = vmax.f32 %v3342, 0.0
        %v4945 = vmax.f32 %v3991, 0.0
        %v4946 = vmax.f32 %v2046, 0.0
        %v4947 = vmax.f32 %v2695, 0.0
        %v4948 = vmax.f32 %v3344, 0.0
        %v4949 = vmax.f32 %v3993, 0.0
        %v4950 = vmax.f32 %v2049, 0.0
        %v4951 = vmax.f32 %v2698, 0.0
        %v4952 = vmax.f32 %v3347, 0.0
        %v4953 = vmax.f32 %v3996, 0.0
        %v4954 = vmax.f32 %v2051, 0.0
        %v4955 = vmax.f32 %v2700, 0.0
        %v4956 = vmax.f32 %v3349, 0.0
        %v4957 = vmax.f32 %v3998, 0.0
        %v4958 = vmax.f32 %v2054, 0.0
        %v4959 = vmax.f32 %v2703, 0.0
        %v4960 = vmax.f32 %v3352, 0.0
        %v4961 = vmax.f32 %v4001, 0.0
        %v4962 = vmax.f32 %v2056, 0.0
        %v4963 = vmax.f32 %v2705, 0.0
        %v4964 = vmax.f32 %v3354, 0.0
        %v4965 = vmax.f32 %v4003, 0.0
        %v4966 = vmax.f32 %v2059, 0.0
        %v4967 = vmax.f32 %v2708, 0.0
        %v4968 = vmax.f32 %v3357, 0.0
        %v4969 = vmax.f32 %v4006, 0.0
        %v4970 = vmax.f32 %v2061, 0.0
        %v4971 = vmax.f32 %v2710, 0.0
        %v4972 = vmax.f32 %v3359, 0.0
        %v4973 = vmax.f32 %v4008, 0.0
        %v4974 = vmax.f32 %v2064, 0.0
        %v4975 = vmax.f32 %v2713, 0.0
        %v4976 = vmax.f32 %v3362, 0.0
        %v4977 = vmax.f32 %v4011, 0.0
        %v4978 = vmax.f32 %v2066, 0.0
        %v4979 = vmax.f32 %v2715, 0.0
        %v4980 = vmax.f32 %v3364, 0.0
        %v4981 = vmax.f32 %v4013, 0.0
        %v4982 = vmax.f32 %v2069, 0.0
        %v4983 = vmax.f32 %v2718, 0.0
        %v4984 = vmax.f32 %v3367, 0.0
        %v4985 = vmax.f32 %v4016, 0.0
        %v4986 = vmax.f32 %v2071, 0.0
        %v4987 = vmax.f32 %v2720, 0.0
        %v4988 = vmax.f32 %v3369, 0.0
        %v4989 = vmax.f32 %v4018, 0.0
        %v4990 = vmax.f32 %v2074, 0.0
        %v4991 = vmax.f32 %v2723, 0.0
        %v4992 = vmax.f32 %v3372, 0.0
        %v4993 = vmax.f32 %v4021, 0.0
        %v4994 = vmax.f32 %v2076, 0.0
        %v4995 = vmax.f32 %v2725, 0.0
        %v4996 = vmax.f32 %v3374, 0.0
        %v4997 = vmax.f32 %v4023, 0.0
        %v4998 = vmax.f32 %v2079, 0.0
        %v4999 = vmax.f32 %v2728, 0.0
        %v5000 = vmax.f32 %v3377, 0.0
        %v5001 = vmax.f32 %v4026, 0.0
        %v5002 = vmax.f32 %v2081, 0.0
        %v5003 = vmax.f32 %v2730, 0.0
        %v5004 = vmax.f32 %v3379, 0.0
        %v5005 = vmax.f32 %v4028, 0.0
        %v5006 = vmax.f32 %v2084, 0.0
        %v5007 = vmax.f32 %v2733, 0.0
        %v5008 = vmax.f32 %v3382, 0.0
        %v5009 = vmax.f32 %v4031, 0.0
        %v5010 = vmax.f32 %v2086, 0.0
        %v5011 = vmax.f32 %v2735, 0.0
        %v5012 = vmax.f32 %v3384, 0.0
        %v5013 = vmax.f32 %v4033, 0.0
        %v5014 = vmax.f32 %v2089, 0.0
        %v5015 = vmax.f32 %v2738, 0.0
        %v5016 = vmax.f32 %v3387, 0.0
        %v5017 = vmax.f32 %v4036, 0.0
        %v5018 = vmax.f32 %v2091, 0.0
        %v5019 = vmax.f32 %v2740, 0.0
        %v5020 = vmax.f32 %v3389, 0.0
        %v5021 = vmax.f32 %v4038, 0.0
        %v5022 = vmax.f32 %v2094, 0.0
        %v5023 = vmax.f32 %v2743, 0.0
        %v5024 = vmax.f32 %v3392, 0.0
        %v5025 = vmax.f32 %v4041, 0.0
        %v5026 = vmax.f32 %v2096, 0.0
        %v5027 = vmax.f32 %v2745, 0.0
        %v5028 = vmax.f32 %v3394, 0.0
        %v5029 = vmax.f32 %v4043, 0.0
        %v5030 = vmax.f32 %v2099, 0.0
        %v5031 = vmax.f32 %v2748, 0.0
        %v5032 = vmax.f32 %v3397, 0.0
        %v5033 = vmax.f32 %v4046, 0.0
        %v5034 = vmax.f32 %v2101, 0.0
        %v5035 = vmax.f32 %v2750, 0.0
        %v5036 = vmax.f32 %v3399, 0.0
        %v5037 = vmax.f32 %v4048, 0.0
        %v5038 = vmax.f32 %v2104, 0.0
        %v5039 = vmax.f32 %v2753, 0.0
        %v5040 = vmax.f32 %v3402, 0.0
        %v5041 = vmax.f32 %v4051, 0.0
        %v5042 = vmax.f32 %v2106, 0.0
        %v5043 = vmax.f32 %v2755, 0.0
        %v5044 = vmax.f32 %v3404, 0.0
        %v5045 = vmax.f32 %v4053, 0.0
        %v5046 = vmax.f32 %v2109, 0.0
        %v5047 = vmax.f32 %v2758, 0.0
        %v5048 = vmax.f32 %v3407, 0.0
        %v5049 = vmax.f32 %v4056, 0.0
        %v5050 = vmax.f32 %v2111, 0.0
        %v5051 = vmax.f32 %v2760, 0.0
        %v5052 = vmax.f32 %v3409, 0.0
        %v5053 = vmax.f32 %v4058, 0.0
        %v5054 = vmax.f32 %v2114, 0.0
        %v5055 = vmax.f32 %v2763, 0.0
        %v5056 = vmax.f32 %v3412, 0.0
        %v5057 = vmax.f32 %v4061, 0.0
        %v5058 = vmax.f32 %v2116, 0.0
        %v5059 = vmax.f32 %v2765, 0.0
        %v5060 = vmax.f32 %v3414, 0.0
        %v5061 = vmax.f32 %v4063, 0.0
        %v5062 = vmax.f32 %v2119, 0.0
        %v5063 = vmax.f32 %v2768, 0.0
        %v5064 = vmax.f32 %v3417, 0.0
        %v5065 = vmax.f32 %v4066, 0.0
        %v5066 = vmax.f32 %v2121, 0.0
        %v5067 = vmax.f32 %v2770, 0.0
        %v5068 = vmax.f32 %v3419, 0.0
        %v5069 = vmax.f32 %v4068, 0.0
        %v5070 = vmax.f32 %v2124, 0.0
        %v5071 = vmax.f32 %v2773, 0.0
        %v5072 = vmax.f32 %v3422, 0.0
        %v5073 = vmax.f32 %v4071, 0.0
        %v5074 = vmax.f32 %v2126, 0.0
        %v5075 = vmax.f32 %v2775, 0.0
        %v5076 = vmax.f32 %v3424, 0.0
        %v5077 = vmax.f32 %v4073, 0.0
        %v5078 = vmax.f32 %v2129, 0.0
        %v5079 = vmax.f32 %v2778, 0.0
        %v5080 = vmax.f32 %v3427, 0.0
        %v5081 = vmax.f32 %v4076, 0.0
        %v5082 = vmax.f32 %v2131, 0.0
        %v5083 = vmax.f32 %v2780, 0.0
        %v5084 = vmax.f32 %v3429, 0.0
        %v5085 = vmax.f32 %v4078, 0.0
        %v5086 = vmax.f32 %v2134, 0.0
        %v5087 = vmax.f32 %v2783, 0.0
        %v5088 = vmax.f32 %v3432, 0.0
        %v5089 = vmax.f32 %v4081, 0.0
        %v5090 = vmax.f32 %v2136, 0.0
        %v5091 = vmax.f32 %v2785, 0.0
        %v5092 = vmax.f32 %v3434, 0.0
        %v5093 = vmax.f32 %v4083, 0.0
        %v5094 = vmax.f32 %v2139, 0.0
        %v5095 = vmax.f32 %v2788, 0.0
        %v5096 = vmax.f32 %v3437, 0.0
        %v5097 = vmax.f32 %v4086, 0.0
        %v5098 = vmax.f32 %v2141, 0.0
        %v5099 = vmax.f32 %v2790, 0.0
        %v5100 = vmax.f32 %v3439, 0.0
        %v5101 = vmax.f32 %v4088, 0.0
        %v5102 = vmax.f32 %v2144, 0.0
        %v5103 = vmax.f32 %v2793, 0.0
        %v5104 = vmax.f32 %v3442, 0.0
        %v5105 = vmax.f32 %v4091, 0.0
        %v5106 = vmax.f32 %v2146, 0.0
        %v5107 = vmax.f32 %v2795, 0.0
        %v5108 = vmax.f32 %v3444, 0.0
        %v5109 = vmax.f32 %v4093, 0.0
        %v5110 = vmax.f32 %v2149, 0.0
        %v5111 = vmax.f32 %v2798, 0.0
        %v5112 = vmax.f32 %v3447, 0.0
        %v5113 = vmax.f32 %v4096, 0.0
        %v5114 = vmax.f32 %v2151, 0.0
        %v5115 = vmax.f32 %v2800, 0.0
        %v5116 = vmax.f32 %v3449, 0.0
        %v5117 = vmax.f32 %v4098, 0.0
        %v5118 = vmax.f32 %v2154, 0.0
        %v5119 = vmax.f32 %v2803, 0.0
        %v5120 = vmax.f32 %v3452, 0.0
        %v5121 = vmax.f32 %v4101, 0.0
        %v5122 = vmax.f32 %v2156, 0.0
        %v5123 = vmax.f32 %v2805, 0.0
        %v5124 = vmax.f32 %v3454, 0.0
        %v5125 = vmax.f32 %v4103, 0.0
        %v5126 = vmax.f32 %v2159, 0.0
        %v5127 = vmax.f32 %v2808, 0.0
        %v5128 = vmax.f32 %v3457, 0.0
        %v5129 = vmax.f32 %v4106, 0.0
        %v5130 = vmax.f32 %v2161, 0.0
        %v5131 = vmax.f32 %v2810, 0.0
        %v5132 = vmax.f32 %v3459, 0.0
        %v5133 = vmax.f32 %v4108, 0.0
        %v5134 = vadd.f32 %v4110, %v4114
        %v5135 = vadd.f32 %v5134, %v4118
        %v5136 = vadd.f32 %v5135, %v4122
        %v5137 = vadd.f32 %v5136, %v4126
        %v5138 = vadd.f32 %v5137, %v4130
        %v5139 = vadd.f32 %v5138, %v4134
        %v5140 = vadd.f32 %v5139, %v4138
        %v5141 = vrot.slane %v5140, 4
        %v5142 = vadd.f32 %v5140, %v5141
        %v5143 = vrot.slane %v5142, 2
        %v5144 = vadd.f32 %v5142, %v5143
        %v5145 = vrot.slane %v5144, 1
        %v5146 = vadd.f32 %v5144, %v5145
        %v5147 = vadd.f32 %v4111, %v4115
        %v5148 = vadd.f32 %v5147, %v4119
        %v5149 = vadd.f32 %v5148, %v4123
        %v5150 = vadd.f32 %v5149, %v4127
        %v5151 = vadd.f32 %v5150, %v4131
        %v5152 = vadd.f32 %v5151, %v4135
        %v5153 = vadd.f32 %v5152, %v4139
        %v5154 = vrot.slane %v5153, 4
        %v5155 = vadd.f32 %v5153, %v5154
        %v5156 = vrot.slane %v5155, 2
        %v5157 = vadd.f32 %v5155, %v5156
        %v5158 = vrot.slane %v5157, 1
        %v5159 = vadd.f32 %v5157, %v5158
        %v5160 = vadd.f32 %v4112, %v4116
        %v5161 = vadd.f32 %v5160, %v4120
        %v5162 = vadd.f32 %v5161, %v4124
        %v5163 = vadd.f32 %v5162, %v4128
        %v5164 = vadd.f32 %v5163, %v4132
        %v5165 = vadd.f32 %v5164, %v4136
        %v5166 = vadd.f32 %v5165, %v4140
        %v5167 = vrot.slane %v5166, 4
        %v5168 = vadd.f32 %v5166, %v5167
        %v5169 = vrot.slane %v5168, 2
        %v5170 = vadd.f32 %v5168, %v5169
        %v5171 = vrot.slane %v5170, 1
        %v5172 = vadd.f32 %v5170, %v5171
        %v5173 = vadd.f32 %v4113, %v4117
        %v5174 = vadd.f32 %v5173, %v4121
        %v5175 = vadd.f32 %v5174, %v4125
        %v5176 = vadd.f32 %v5175, %v4129
        %v5177 = vadd.f32 %v5176, %v4133
        %v5178 = vadd.f32 %v5177, %v4137
        %v5179 = vadd.f32 %v5178, %v4141
        %v5180 = vrot.slane %v5179, 4
        %v5181 = vadd.f32 %v5179, %v5180
        %v5182 = vrot.slane %v5181, 2
        %v5183 = vadd.f32 %v5181, %v5182
        %v5184 = vrot.slane %v5183, 1
        %v5185 = vadd.f32 %v5183, %v5184
        %v5186 = vadd.f32 %v4142, %v4146
        %v5187 = vadd.f32 %v5186, %v4150
        %v5188 = vadd.f32 %v5187, %v4154
        %v5189 = vadd.f32 %v5188, %v4158
        %v5190 = vadd.f32 %v5189, %v4162
        %v5191 = vadd.f32 %v5190, %v4166
        %v5192 = vadd.f32 %v5191, %v4170
        %v5193 = vrot.slane %v5192, 4
        %v5194 = vadd.f32 %v5192, %v5193
        %v5195 = vrot.slane %v5194, 2
        %v5196 = vadd.f32 %v5194, %v5195
        %v5197 = vrot.slane %v5196, 1
        %v5198 = vadd.f32 %v5196, %v5197
        %v5199 = vadd.f32 %v4143, %v4147
        %v5200 = vadd.f32 %v5199, %v4151
        %v5201 = vadd.f32 %v5200, %v4155
        %v5202 = vadd.f32 %v5201, %v4159
        %v5203 = vadd.f32 %v5202, %v4163
        %v5204 = vadd.f32 %v5203, %v4167
        %v5205 = vadd.f32 %v5204, %v4171
        %v5206 = vrot.slane %v5205, 4
        %v5207 = vadd.f32 %v5205, %v5206
        %v5208 = vrot.slane %v5207, 2
        %v5209 = vadd.f32 %v5207, %v5208
        %v5210 = vrot.slane %v5209, 1
        %v5211 = vadd.f32 %v5209, %v5210
        %v5212 = vadd.f32 %v4144, %v4148
        %v5213 = vadd.f32 %v5212, %v4152
        %v5214 = vadd.f32 %v5213, %v4156
        %v5215 = vadd.f32 %v5214, %v4160
        %v5216 = vadd.f32 %v5215, %v4164
        %v5217 = vadd.f32 %v5216, %v4168
        %v5218 = vadd.f32 %v5217, %v4172
        %v5219 = vrot.slane %v5218, 4
        %v5220 = vadd.f32 %v5218, %v5219
        %v5221 = vrot.slane %v5220, 2
        %v5222 = vadd.f32 %v5220, %v5221
        %v5223 = vrot.slane %v5222, 1
        %v5224 = vadd.f32 %v5222, %v5223
        %v5225 = vadd.f32 %v4145, %v4149
        %v5226 = vadd.f32 %v5225, %v4153
        %v5227 = vadd.f32 %v5226, %v4157
        %v5228 = vadd.f32 %v5227, %v4161
        %v5229 = vadd.f32 %v5228, %v4165
        %v5230 = vadd.f32 %v5229, %v4169
        %v5231 = vadd.f32 %v5230, %v4173
        %v5232 = vrot.slane %v5231, 4
        %v5233 = vadd.f32 %v5231, %v5232
        %v5234 = vrot.slane %v5233, 2
        %v5235 = vadd.f32 %v5233, %v5234
        %v5236 = vrot.slane %v5235, 1
        %v5237 = vadd.f32 %v5235, %v5236
        %v5238 = vadd.f32 %v4174, %v4178
        %v5239 = vadd.f32 %v5238, %v4182
        %v5240 = vadd.f32 %v5239, %v4186
        %v5241 = vadd.f32 %v5240, %v4190
        %v5242 = vadd.f32 %v5241, %v4194
        %v5243 = vadd.f32 %v5242, %v4198
        %v5244 = vadd.f32 %v5243, %v4202
        %v5245 = vrot.slane %v5244, 4
        %v5246 = vadd.f32 %v5244, %v5245
        %v5247 = vrot.slane %v5246, 2
        %v5248 = vadd.f32 %v5246, %v5247
        %v5249 = vrot.slane %v5248, 1
        %v5250 = vadd.f32 %v5248, %v5249
        %v5251 = vadd.f32 %v4175, %v4179
        %v5252 = vadd.f32 %v5251, %v4183
        %v5253 = vadd.f32 %v5252, %v4187
        %v5254 = vadd.f32 %v5253, %v4191
        %v5255 = vadd.f32 %v5254, %v4195
        %v5256 = vadd.f32 %v5255, %v4199
        %v5257 = vadd.f32 %v5256, %v4203
        %v5258 = vrot.slane %v5257, 4
        %v5259 = vadd.f32 %v5257, %v5258
        %v5260 = vrot.slane %v5259, 2
        %v5261 = vadd.f32 %v5259, %v5260
        %v5262 = vrot.slane %v5261, 1
        %v5263 = vadd.f32 %v5261, %v5262
        %v5264 = vadd.f32 %v4176, %v4180
        %v5265 = vadd.f32 %v5264, %v4184
        %v5266 = vadd.f32 %v5265, %v4188
        %v5267 = vadd.f32 %v5266, %v4192
        %v5268 = vadd.f32 %v5267, %v4196
        %v5269 = vadd.f32 %v5268, %v4200
        %v5270 = vadd.f32 %v5269, %v4204
        %v5271 = vrot.slane %v5270, 4
        %v5272 = vadd.f32 %v5270, %v5271
        %v5273 = vrot.slane %v5272, 2
        %v5274 = vadd.f32 %v5272, %v5273
        %v5275 = vrot.slane %v5274, 1
        %v5276 = vadd.f32 %v5274, %v5275
        %v5277 = vadd.f32 %v4177, %v4181
        %v5278 = vadd.f32 %v5277, %v4185
        %v5279 = vadd.f32 %v5278, %v4189
        %v5280 = vadd.f32 %v5279, %v4193
        %v5281 = vadd.f32 %v5280, %v4197
        %v5282 = vadd.f32 %v5281, %v4201
        %v5283 = vadd.f32 %v5282, %v4205
        %v5284 = vrot.slane %v5283, 4
        %v5285 = vadd.f32 %v5283, %v5284
        %v5286 = vrot.slane %v5285, 2
        %v5287 = vadd.f32 %v5285, %v5286
        %v5288 = vrot.slane %v5287, 1
        %v5289 = vadd.f32 %v5287, %v5288
        %v5290 = vadd.f32 %v4206, %v4210
        %v5291 = vadd.f32 %v5290, %v4214
        %v5292 = vadd.f32 %v5291, %v4218
        %v5293 = vadd.f32 %v5292, %v4222
        %v5294 = vadd.f32 %v5293, %v4226
        %v5295 = vadd.f32 %v5294, %v4230
        %v5296 = vadd.f32 %v5295, %v4234
        %v5297 = vrot.slane %v5296, 4
        %v5298 = vadd.f32 %v5296, %v5297
        %v5299 = vrot.slane %v5298, 2
        %v5300 = vadd.f32 %v5298, %v5299
        %v5301 = vrot.slane %v5300, 1
        %v5302 = vadd.f32 %v5300, %v5301
        %v5303 = vadd.f32 %v4207, %v4211
        %v5304 = vadd.f32 %v5303, %v4215
        %v5305 = vadd.f32 %v5304, %v4219
        %v5306 = vadd.f32 %v5305, %v4223
        %v5307 = vadd.f32 %v5306, %v4227
        %v5308 = vadd.f32 %v5307, %v4231
        %v5309 = vadd.f32 %v5308, %v4235
        %v5310 = vrot.slane %v5309, 4
        %v5311 = vadd.f32 %v5309, %v5310
        %v5312 = vrot.slane %v5311, 2
        %v5313 = vadd.f32 %v5311, %v5312
        %v5314 = vrot.slane %v5313, 1
        %v5315 = vadd.f32 %v5313, %v5314
        %v5316 = vadd.f32 %v4208, %v4212
        %v5317 = vadd.f32 %v5316, %v4216
        %v5318 = vadd.f32 %v5317, %v4220
        %v5319 = vadd.f32 %v5318, %v4224
        %v5320 = vadd.f32 %v5319, %v4228
        %v5321 = vadd.f32 %v5320, %v4232
        %v5322 = vadd.f32 %v5321, %v4236
        %v5323 = vrot.slane %v5322, 4
        %v5324 = vadd.f32 %v5322, %v5323
        %v5325 = vrot.slane %v5324, 2
        %v5326 = vadd.f32 %v5324, %v5325
        %v5327 = vrot.slane %v5326, 1
        %v5328 = vadd.f32 %v5326, %v5327
        %v5329 = vadd.f32 %v4209, %v4213
        %v5330 = vadd.f32 %v5329, %v4217
        %v5331 = vadd.f32 %v5330, %v4221
        %v5332 = vadd.f32 %v5331, %v4225
        %v5333 = vadd.f32 %v5332, %v4229
        %v5334 = vadd.f32 %v5333, %v4233
        %v5335 = vadd.f32 %v5334, %v4237
        %v5336 = vrot.slane %v5335, 4
        %v5337 = vadd.f32 %v5335, %v5336
        %v5338 = vrot.slane %v5337, 2
        %v5339 = vadd.f32 %v5337, %v5338
        %v5340 = vrot.slane %v5339, 1
        %v5341 = vadd.f32 %v5339, %v5340
        %v5342 = vadd.f32 %v4238, %v4242
        %v5343 = vadd.f32 %v5342, %v4246
        %v5344 = vadd.f32 %v5343, %v4250
        %v5345 = vadd.f32 %v5344, %v4254
        %v5346 = vadd.f32 %v5345, %v4258
        %v5347 = vadd.f32 %v5346, %v4262
        %v5348 = vadd.f32 %v5347, %v4266
        %v5349 = vrot.slane %v5348, 4
        %v5350 = vadd.f32 %v5348, %v5349
        %v5351 = vrot.slane %v5350, 2
        %v5352 = vadd.f32 %v5350, %v5351
        %v5353 = vrot.slane %v5352, 1
        %v5354 = vadd.f32 %v5352, %v5353
        %v5355 = vadd.f32 %v4239, %v4243
        %v5356 = vadd.f32 %v5355, %v4247
        %v5357 = vadd.f32 %v5356, %v4251
        %v5358 = vadd.f32 %v5357, %v4255
        %v5359 = vadd.f32 %v5358, %v4259
        %v5360 = vadd.f32 %v5359, %v4263
        %v5361 = vadd.f32 %v5360, %v4267
        %v5362 = vrot.slane %v5361, 4
        %v5363 = vadd.f32 %v5361, %v5362
        %v5364 = vrot.slane %v5363, 2
        %v5365 = vadd.f32 %v5363, %v5364
        %v5366 = vrot.slane %v5365, 1
        %v5367 = vadd.f32 %v5365, %v5366
        %v5368 = vadd.f32 %v4240, %v4244
        %v5369 = vadd.f32 %v5368, %v4248
        %v5370 = vadd.f32 %v5369, %v4252
        %v5371 = vadd.f32 %v5370, %v4256
        %v5372 = vadd.f32 %v5371, %v4260
        %v5373 = vadd.f32 %v5372, %v4264
        %v5374 = vadd.f32 %v5373, %v4268
        %v5375 = vrot.slane %v5374, 4
        %v5376 = vadd.f32 %v5374, %v5375
        %v5377 = vrot.slane %v5376, 2
        %v5378 = vadd.f32 %v5376, %v5377
        %v5379 = vrot.slane %v5378, 1
        %v5380 = vadd.f32 %v5378, %v5379
        %v5381 = vadd.f32 %v4241, %v4245
        %v5382 = vadd.f32 %v5381, %v4249
        %v5383 = vadd.f32 %v5382, %v4253
        %v5384 = vadd.f32 %v5383, %v4257
        %v5385 = vadd.f32 %v5384, %v4261
        %v5386 = vadd.f32 %v5385, %v4265
        %v5387 = vadd.f32 %v5386, %v4269
        %v5388 = vrot.slane %v5387, 4
        %v5389 = vadd.f32 %v5387, %v5388
        %v5390 = vrot.slane %v5389, 2
        %v5391 = vadd.f32 %v5389, %v5390
        %v5392 = vrot.slane %v5391, 1
        %v5393 = vadd.f32 %v5391, %v5392
        %v5394 = vadd.f32 %v4270, %v4274
        %v5395 = vadd.f32 %v5394, %v4278
        %v5396 = vadd.f32 %v5395, %v4282
        %v5397 = vadd.f32 %v5396, %v4286
        %v5398 = vadd.f32 %v5397, %v4290
        %v5399 = vadd.f32 %v5398, %v4294
        %v5400 = vadd.f32 %v5399, %v4298
        %v5401 = vrot.slane %v5400, 4
        %v5402 = vadd.f32 %v5400, %v5401
        %v5403 = vrot.slane %v5402, 2
        %v5404 = vadd.f32 %v5402, %v5403
        %v5405 = vrot.slane %v5404, 1
        %v5406 = vadd.f32 %v5404, %v5405
        %v5407 = vadd.f32 %v4271, %v4275
        %v5408 = vadd.f32 %v5407, %v4279
        %v5409 = vadd.f32 %v5408, %v4283
        %v5410 = vadd.f32 %v5409, %v4287
        %v5411 = vadd.f32 %v5410, %v4291
        %v5412 = vadd.f32 %v5411, %v4295
        %v5413 = vadd.f32 %v5412, %v4299
        %v5414 = vrot.slane %v5413, 4
        %v5415 = vadd.f32 %v5413, %v5414
        %v5416 = vrot.slane %v5415, 2
        %v5417 = vadd.f32 %v5415, %v5416
        %v5418 = vrot.slane %v5417, 1
        %v5419 = vadd.f32 %v5417, %v5418
        %v5420 = vadd.f32 %v4272, %v4276
        %v5421 = vadd.f32 %v5420, %v4280
        %v5422 = vadd.f32 %v5421, %v4284
        %v5423 = vadd.f32 %v5422, %v4288
        %v5424 = vadd.f32 %v5423, %v4292
        %v5425 = vadd.f32 %v5424, %v4296
        %v5426 = vadd.f32 %v5425, %v4300
        %v5427 = vrot.slane %v5426, 4
        %v5428 = vadd.f32 %v5426, %v5427
        %v5429 = vrot.slane %v5428, 2
        %v5430 = vadd.f32 %v5428, %v5429
        %v5431 = vrot.slane %v5430, 1
        %v5432 = vadd.f32 %v5430, %v5431
        %v5433 = vadd.f32 %v4273, %v4277
        %v5434 = vadd.f32 %v5433, %v4281
        %v5435 = vadd.f32 %v5434, %v4285
        %v5436 = vadd.f32 %v5435, %v4289
        %v5437 = vadd.f32 %v5436, %v4293
        %v5438 = vadd.f32 %v5437, %v4297
        %v5439 = vadd.f32 %v5438, %v4301
        %v5440 = vrot.slane %v5439, 4
        %v5441 = vadd.f32 %v5439, %v5440
        %v5442 = vrot.slane %v5441, 2
        %v5443 = vadd.f32 %v5441, %v5442
        %v5444 = vrot.slane %v5443, 1
        %v5445 = vadd.f32 %v5443, %v5444
        %v5446 = vadd.f32 %v4302, %v4306
        %v5447 = vadd.f32 %v5446, %v4310
        %v5448 = vadd.f32 %v5447, %v4314
        %v5449 = vadd.f32 %v5448, %v4318
        %v5450 = vadd.f32 %v5449, %v4322
        %v5451 = vadd.f32 %v5450, %v4326
        %v5452 = vadd.f32 %v5451, %v4330
        %v5453 = vrot.slane %v5452, 4
        %v5454 = vadd.f32 %v5452, %v5453
        %v5455 = vrot.slane %v5454, 2
        %v5456 = vadd.f32 %v5454, %v5455
        %v5457 = vrot.slane %v5456, 1
        %v5458 = vadd.f32 %v5456, %v5457
        %v5459 = vadd.f32 %v4303, %v4307
        %v5460 = vadd.f32 %v5459, %v4311
        %v5461 = vadd.f32 %v5460, %v4315
        %v5462 = vadd.f32 %v5461, %v4319
        %v5463 = vadd.f32 %v5462, %v4323
        %v5464 = vadd.f32 %v5463, %v4327
        %v5465 = vadd.f32 %v5464, %v4331
        %v5466 = vrot.slane %v5465, 4
        %v5467 = vadd.f32 %v5465, %v5466
        %v5468 = vrot.slane %v5467, 2
        %v5469 = vadd.f32 %v5467, %v5468
        %v5470 = vrot.slane %v5469, 1
        %v5471 = vadd.f32 %v5469, %v5470
        %v5472 = vadd.f32 %v4304, %v4308
        %v5473 = vadd.f32 %v5472, %v4312
        %v5474 = vadd.f32 %v5473, %v4316
        %v5475 = vadd.f32 %v5474, %v4320
        %v5476 = vadd.f32 %v5475, %v4324
        %v5477 = vadd.f32 %v5476, %v4328
        %v5478 = vadd.f32 %v5477, %v4332
        %v5479 = vrot.slane %v5478, 4
        %v5480 = vadd.f32 %v5478, %v5479
        %v5481 = vrot.slane %v5480, 2
        %v5482 = vadd.f32 %v5480, %v5481
        %v5483 = vrot.slane %v5482, 1
        %v5484 = vadd.f32 %v5482, %v5483
        %v5485 = vadd.f32 %v4305, %v4309
        %v5486 = vadd.f32 %v5485, %v4313
        %v5487 = vadd.f32 %v5486, %v4317
        %v5488 = vadd.f32 %v5487, %v4321
        %v5489 = vadd.f32 %v5488, %v4325
        %v5490 = vadd.f32 %v5489, %v4329
        %v5491 = vadd.f32 %v5490, %v4333
        %v5492 = vrot.slane %v5491, 4
        %v5493 = vadd.f32 %v5491, %v5492
        %v5494 = vrot.slane %v5493, 2
        %v5495 = vadd.f32 %v5493, %v5494
        %v5496 = vrot.slane %v5495, 1
        %v5497 = vadd.f32 %v5495, %v5496
        %v5498 = vadd.f32 %v4334, %v4338
        %v5499 = vadd.f32 %v5498, %v4342
        %v5500 = vadd.f32 %v5499, %v4346
        %v5501 = vadd.f32 %v5500, %v4350
        %v5502 = vadd.f32 %v5501, %v4354
        %v5503 = vadd.f32 %v5502, %v4358
        %v5504 = vadd.f32 %v5503, %v4362
        %v5505 = vrot.slane %v5504, 4
        %v5506 = vadd.f32 %v5504, %v5505
        %v5507 = vrot.slane %v5506, 2
        %v5508 = vadd.f32 %v5506, %v5507
        %v5509 = vrot.slane %v5508, 1
        %v5510 = vadd.f32 %v5508, %v5509
        %v5511 = vadd.f32 %v4335, %v4339
        %v5512 = vadd.f32 %v5511, %v4343
        %v5513 = vadd.f32 %v5512, %v4347
        %v5514 = vadd.f32 %v5513, %v4351
        %v5515 = vadd.f32 %v5514, %v4355
        %v5516 = vadd.f32 %v5515, %v4359
        %v5517 = vadd.f32 %v5516, %v4363
        %v5518 = vrot.slane %v5517, 4
        %v5519 = vadd.f32 %v5517, %v5518
        %v5520 = vrot.slane %v5519, 2
        %v5521 = vadd.f32 %v5519, %v5520
        %v5522 = vrot.slane %v5521, 1
        %v5523 = vadd.f32 %v5521, %v5522
        %v5524 = vadd.f32 %v4336, %v4340
        %v5525 = vadd.f32 %v5524, %v4344
        %v5526 = vadd.f32 %v5525, %v4348
        %v5527 = vadd.f32 %v5526, %v4352
        %v5528 = vadd.f32 %v5527, %v4356
        %v5529 = vadd.f32 %v5528, %v4360
        %v5530 = vadd.f32 %v5529, %v4364
        %v5531 = vrot.slane %v5530, 4
        %v5532 = vadd.f32 %v5530, %v5531
        %v5533 = vrot.slane %v5532, 2
        %v5534 = vadd.f32 %v5532, %v5533
        %v5535 = vrot.slane %v5534, 1
        %v5536 = vadd.f32 %v5534, %v5535
        %v5537 = vadd.f32 %v4337, %v4341
        %v5538 = vadd.f32 %v5537, %v4345
        %v5539 = vadd.f32 %v5538, %v4349
        %v5540 = vadd.f32 %v5539, %v4353
        %v5541 = vadd.f32 %v5540, %v4357
        %v5542 = vadd.f32 %v5541, %v4361
        %v5543 = vadd.f32 %v5542, %v4365
        %v5544 = vrot.slane %v5543, 4
        %v5545 = vadd.f32 %v5543, %v5544
        %v5546 = vrot.slane %v5545, 2
        %v5547 = vadd.f32 %v5545, %v5546
        %v5548 = vrot.slane %v5547, 1
        %v5549 = vadd.f32 %v5547, %v5548
        %v5550 = vadd.f32 %v4366, %v4370
        %v5551 = vadd.f32 %v5550, %v4374
        %v5552 = vadd.f32 %v5551, %v4378
        %v5553 = vadd.f32 %v5552, %v4382
        %v5554 = vadd.f32 %v5553, %v4386
        %v5555 = vadd.f32 %v5554, %v4390
        %v5556 = vadd.f32 %v5555, %v4394
        %v5557 = vrot.slane %v5556, 4
        %v5558 = vadd.f32 %v5556, %v5557
        %v5559 = vrot.slane %v5558, 2
        %v5560 = vadd.f32 %v5558, %v5559
        %v5561 = vrot.slane %v5560, 1
        %v5562 = vadd.f32 %v5560, %v5561
        %v5563 = vadd.f32 %v4367, %v4371
        %v5564 = vadd.f32 %v5563, %v4375
        %v5565 = vadd.f32 %v5564, %v4379
        %v5566 = vadd.f32 %v5565, %v4383
        %v5567 = vadd.f32 %v5566, %v4387
        %v5568 = vadd.f32 %v5567, %v4391
        %v5569 = vadd.f32 %v5568, %v4395
        %v5570 = vrot.slane %v5569, 4
        %v5571 = vadd.f32 %v5569, %v5570
        %v5572 = vrot.slane %v5571, 2
        %v5573 = vadd.f32 %v5571, %v5572
        %v5574 = vrot.slane %v5573, 1
        %v5575 = vadd.f32 %v5573, %v5574
        %v5576 = vadd.f32 %v4368, %v4372
        %v5577 = vadd.f32 %v5576, %v4376
        %v5578 = vadd.f32 %v5577, %v4380
        %v5579 = vadd.f32 %v5578, %v4384
        %v5580 = vadd.f32 %v5579, %v4388
        %v5581 = vadd.f32 %v5580, %v4392
        %v5582 = vadd.f32 %v5581, %v4396
        %v5583 = vrot.slane %v5582, 4
        %v5584 = vadd.f32 %v5582, %v5583
        %v5585 = vrot.slane %v5584, 2
        %v5586 = vadd.f32 %v5584, %v5585
        %v5587 = vrot.slane %v5586, 1
        %v5588 = vadd.f32 %v5586, %v5587
        %v5589 = vadd.f32 %v4369, %v4373
        %v5590 = vadd.f32 %v5589, %v4377
        %v5591 = vadd.f32 %v5590, %v4381
        %v5592 = vadd.f32 %v5591, %v4385
        %v5593 = vadd.f32 %v5592, %v4389
        %v5594 = vadd.f32 %v5593, %v4393
        %v5595 = vadd.f32 %v5594, %v4397
        %v5596 = vrot.slane %v5595, 4
        %v5597 = vadd.f32 %v5595, %v5596
        %v5598 = vrot.slane %v5597, 2
        %v5599 = vadd.f32 %v5597, %v5598
        %v5600 = vrot.slane %v5599, 1
        %v5601 = vadd.f32 %v5599, %v5600
        %v5602 = vadd.f32 %v4398, %v4402
        %v5603 = vadd.f32 %v5602, %v4406
        %v5604 = vadd.f32 %v5603, %v4410
        %v5605 = vadd.f32 %v5604, %v4414
        %v5606 = vadd.f32 %v5605, %v4418
        %v5607 = vadd.f32 %v5606, %v4422
        %v5608 = vadd.f32 %v5607, %v4426
        %v5609 = vrot.slane %v5608, 4
        %v5610 = vadd.f32 %v5608, %v5609
        %v5611 = vrot.slane %v5610, 2
        %v5612 = vadd.f32 %v5610, %v5611
        %v5613 = vrot.slane %v5612, 1
        %v5614 = vadd.f32 %v5612, %v5613
        %v5615 = vadd.f32 %v4399, %v4403
        %v5616 = vadd.f32 %v5615, %v4407
        %v5617 = vadd.f32 %v5616, %v4411
        %v5618 = vadd.f32 %v5617, %v4415
        %v5619 = vadd.f32 %v5618, %v4419
        %v5620 = vadd.f32 %v5619, %v4423
        %v5621 = vadd.f32 %v5620, %v4427
        %v5622 = vrot.slane %v5621, 4
        %v5623 = vadd.f32 %v5621, %v5622
        %v5624 = vrot.slane %v5623, 2
        %v5625 = vadd.f32 %v5623, %v5624
        %v5626 = vrot.slane %v5625, 1
        %v5627 = vadd.f32 %v5625, %v5626
        %v5628 = vadd.f32 %v4400, %v4404
        %v5629 = vadd.f32 %v5628, %v4408
        %v5630 = vadd.f32 %v5629, %v4412
        %v5631 = vadd.f32 %v5630, %v4416
        %v5632 = vadd.f32 %v5631, %v4420
        %v5633 = vadd.f32 %v5632, %v4424
        %v5634 = vadd.f32 %v5633, %v4428
        %v5635 = vrot.slane %v5634, 4
        %v5636 = vadd.f32 %v5634, %v5635
        %v5637 = vrot.slane %v5636, 2
        %v5638 = vadd.f32 %v5636, %v5637
        %v5639 = vrot.slane %v5638, 1
        %v5640 = vadd.f32 %v5638, %v5639
        %v5641 = vadd.f32 %v4401, %v4405
        %v5642 = vadd.f32 %v5641, %v4409
        %v5643 = vadd.f32 %v5642, %v4413
        %v5644 = vadd.f32 %v5643, %v4417
        %v5645 = vadd.f32 %v5644, %v4421
        %v5646 = vadd.f32 %v5645, %v4425
        %v5647 = vadd.f32 %v5646, %v4429
        %v5648 = vrot.slane %v5647, 4
        %v5649 = vadd.f32 %v5647, %v5648
        %v5650 = vrot.slane %v5649, 2
        %v5651 = vadd.f32 %v5649, %v5650
        %v5652 = vrot.slane %v5651, 1
        %v5653 = vadd.f32 %v5651, %v5652
        %v5654 = vadd.f32 %v4430, %v4434
        %v5655 = vadd.f32 %v5654, %v4438
        %v5656 = vadd.f32 %v5655, %v4442
        %v5657 = vadd.f32 %v5656, %v4446
        %v5658 = vadd.f32 %v5657, %v4450
        %v5659 = vadd.f32 %v5658, %v4454
        %v5660 = vadd.f32 %v5659, %v4458
        %v5661 = vrot.slane %v5660, 4
        %v5662 = vadd.f32 %v5660, %v5661
        %v5663 = vrot.slane %v5662, 2
        %v5664 = vadd.f32 %v5662, %v5663
        %v5665 = vrot.slane %v5664, 1
        %v5666 = vadd.f32 %v5664, %v5665
        %v5667 = vadd.f32 %v4431, %v4435
        %v5668 = vadd.f32 %v5667, %v4439
        %v5669 = vadd.f32 %v5668, %v4443
        %v5670 = vadd.f32 %v5669, %v4447
        %v5671 = vadd.f32 %v5670, %v4451
        %v5672 = vadd.f32 %v5671, %v4455
        %v5673 = vadd.f32 %v5672, %v4459
        %v5674 = vrot.slane %v5673, 4
        %v5675 = vadd.f32 %v5673, %v5674
        %v5676 = vrot.slane %v5675, 2
        %v5677 = vadd.f32 %v5675, %v5676
        %v5678 = vrot.slane %v5677, 1
        %v5679 = vadd.f32 %v5677, %v5678
        %v5680 = vadd.f32 %v4432, %v4436
        %v5681 = vadd.f32 %v5680, %v4440
        %v5682 = vadd.f32 %v5681, %v4444
        %v5683 = vadd.f32 %v5682, %v4448
        %v5684 = vadd.f32 %v5683, %v4452
        %v5685 = vadd.f32 %v5684, %v4456
        %v5686 = vadd.f32 %v5685, %v4460
        %v5687 = vrot.slane %v5686, 4
        %v5688 = vadd.f32 %v5686, %v5687
        %v5689 = vrot.slane %v5688, 2
        %v5690 = vadd.f32 %v5688, %v5689
        %v5691 = vrot.slane %v5690, 1
        %v5692 = vadd.f32 %v5690, %v5691
        %v5693 = vadd.f32 %v4433, %v4437
        %v5694 = vadd.f32 %v5693, %v4441
        %v5695 = vadd.f32 %v5694, %v4445
        %v5696 = vadd.f32 %v5695, %v4449
        %v5697 = vadd.f32 %v5696, %v4453
        %v5698 = vadd.f32 %v5697, %v4457
        %v5699 = vadd.f32 %v5698, %v4461
        %v5700 = vrot.slane %v5699, 4
        %v5701 = vadd.f32 %v5699, %v5700
        %v5702 = vrot.slane %v5701, 2
        %v5703 = vadd.f32 %v5701, %v5702
        %v5704 = vrot.slane %v5703, 1
        %v5705 = vadd.f32 %v5703, %v5704
        %v5706 = vadd.f32 %v4462, %v4466
        %v5707 = vadd.f32 %v5706, %v4470
        %v5708 = vadd.f32 %v5707, %v4474
        %v5709 = vadd.f32 %v5708, %v4478
        %v5710 = vadd.f32 %v5709, %v4482
        %v5711 = vadd.f32 %v5710, %v4486
        %v5712 = vadd.f32 %v5711, %v4490
        %v5713 = vrot.slane %v5712, 4
        %v5714 = vadd.f32 %v5712, %v5713
        %v5715 = vrot.slane %v5714, 2
        %v5716 = vadd.f32 %v5714, %v5715
        %v5717 = vrot.slane %v5716, 1
        %v5718 = vadd.f32 %v5716, %v5717
        %v5719 = vadd.f32 %v4463, %v4467
        %v5720 = vadd.f32 %v5719, %v4471
        %v5721 = vadd.f32 %v5720, %v4475
        %v5722 = vadd.f32 %v5721, %v4479
        %v5723 = vadd.f32 %v5722, %v4483
        %v5724 = vadd.f32 %v5723, %v4487
        %v5725 = vadd.f32 %v5724, %v4491
        %v5726 = vrot.slane %v5725, 4
        %v5727 = vadd.f32 %v5725, %v5726
        %v5728 = vrot.slane %v5727, 2
        %v5729 = vadd.f32 %v5727, %v5728
        %v5730 = vrot.slane %v5729, 1
        %v5731 = vadd.f32 %v5729, %v5730
        %v5732 = vadd.f32 %v4464, %v4468
        %v5733 = vadd.f32 %v5732, %v4472
        %v5734 = vadd.f32 %v5733, %v4476
        %v5735 = vadd.f32 %v5734, %v4480
        %v5736 = vadd.f32 %v5735, %v4484
        %v5737 = vadd.f32 %v5736, %v4488
        %v5738 = vadd.f32 %v5737, %v4492
        %v5739 = vrot.slane %v5738, 4
        %v5740 = vadd.f32 %v5738, %v5739
        %v5741 = vrot.slane %v5740, 2
        %v5742 = vadd.f32 %v5740, %v5741
        %v5743 = vrot.slane %v5742, 1
        %v5744 = vadd.f32 %v5742, %v5743
        %v5745 = vadd.f32 %v4465, %v4469
        %v5746 = vadd.f32 %v5745, %v4473
        %v5747 = vadd.f32 %v5746, %v4477
        %v5748 = vadd.f32 %v5747, %v4481
        %v5749 = vadd.f32 %v5748, %v4485
        %v5750 = vadd.f32 %v5749, %v4489
        %v5751 = vadd.f32 %v5750, %v4493
        %v5752 = vrot.slane %v5751, 4
        %v5753 = vadd.f32 %v5751, %v5752
        %v5754 = vrot.slane %v5753, 2
        %v5755 = vadd.f32 %v5753, %v5754
        %v5756 = vrot.slane %v5755, 1
        %v5757 = vadd.f32 %v5755, %v5756
        %v5758 = vadd.f32 %v4494, %v4498
        %v5759 = vadd.f32 %v5758, %v4502
        %v5760 = vadd.f32 %v5759, %v4506
        %v5761 = vadd.f32 %v5760, %v4510
        %v5762 = vadd.f32 %v5761, %v4514
        %v5763 = vadd.f32 %v5762, %v4518
        %v5764 = vadd.f32 %v5763, %v4522
        %v5765 = vrot.slane %v5764, 4
        %v5766 = vadd.f32 %v5764, %v5765
        %v5767 = vrot.slane %v5766, 2
        %v5768 = vadd.f32 %v5766, %v5767
        %v5769 = vrot.slane %v5768, 1
        %v5770 = vadd.f32 %v5768, %v5769
        %v5771 = vadd.f32 %v4495, %v4499
        %v5772 = vadd.f32 %v5771, %v4503
        %v5773 = vadd.f32 %v5772, %v4507
        %v5774 = vadd.f32 %v5773, %v4511
        %v5775 = vadd.f32 %v5774, %v4515
        %v5776 = vadd.f32 %v5775, %v4519
        %v5777 = vadd.f32 %v5776, %v4523
        %v5778 = vrot.slane %v5777, 4
        %v5779 = vadd.f32 %v5777, %v5778
        %v5780 = vrot.slane %v5779, 2
        %v5781 = vadd.f32 %v5779, %v5780
        %v5782 = vrot.slane %v5781, 1
        %v5783 = vadd.f32 %v5781, %v5782
        %v5784 = vadd.f32 %v4496, %v4500
        %v5785 = vadd.f32 %v5784, %v4504
        %v5786 = vadd.f32 %v5785, %v4508
        %v5787 = vadd.f32 %v5786, %v4512
        %v5788 = vadd.f32 %v5787, %v4516
        %v5789 = vadd.f32 %v5788, %v4520
        %v5790 = vadd.f32 %v5789, %v4524
        %v5791 = vrot.slane %v5790, 4
        %v5792 = vadd.f32 %v5790, %v5791
        %v5793 = vrot.slane %v5792, 2
        %v5794 = vadd.f32 %v5792, %v5793
        %v5795 = vrot.slane %v5794, 1
        %v5796 = vadd.f32 %v5794, %v5795
        %v5797 = vadd.f32 %v4497, %v4501
        %v5798 = vadd.f32 %v5797, %v4505
        %v5799 = vadd.f32 %v5798, %v4509
        %v5800 = vadd.f32 %v5799, %v4513
        %v5801 = vadd.f32 %v5800, %v4517
        %v5802 = vadd.f32 %v5801, %v4521
        %v5803 = vadd.f32 %v5802, %v4525
        %v5804 = vrot.slane %v5803, 4
        %v5805 = vadd.f32 %v5803, %v5804
        %v5806 = vrot.slane %v5805, 2
        %v5807 = vadd.f32 %v5805, %v5806
        %v5808 = vrot.slane %v5807, 1
        %v5809 = vadd.f32 %v5807, %v5808
        %v5810 = vadd.f32 %v4526, %v4530
        %v5811 = vadd.f32 %v5810, %v4534
        %v5812 = vadd.f32 %v5811, %v4538
        %v5813 = vadd.f32 %v5812, %v4542
        %v5814 = vadd.f32 %v5813, %v4546
        %v5815 = vadd.f32 %v5814, %v4550
        %v5816 = vadd.f32 %v5815, %v4554
        %v5817 = vrot.slane %v5816, 4
        %v5818 = vadd.f32 %v5816, %v5817
        %v5819 = vrot.slane %v5818, 2
        %v5820 = vadd.f32 %v5818, %v5819
        %v5821 = vrot.slane %v5820, 1
        %v5822 = vadd.f32 %v5820, %v5821
        %v5823 = vadd.f32 %v4527, %v4531
        %v5824 = vadd.f32 %v5823, %v4535
        %v5825 = vadd.f32 %v5824, %v4539
        %v5826 = vadd.f32 %v5825, %v4543
        %v5827 = vadd.f32 %v5826, %v4547
        %v5828 = vadd.f32 %v5827, %v4551
        %v5829 = vadd.f32 %v5828, %v4555
        %v5830 = vrot.slane %v5829, 4
        %v5831 = vadd.f32 %v5829, %v5830
        %v5832 = vrot.slane %v5831, 2
        %v5833 = vadd.f32 %v5831, %v5832
        %v5834 = vrot.slane %v5833, 1
        %v5835 = vadd.f32 %v5833, %v5834
        %v5836 = vadd.f32 %v4528, %v4532
        %v5837 = vadd.f32 %v5836, %v4536
        %v5838 = vadd.f32 %v5837, %v4540
        %v5839 = vadd.f32 %v5838, %v4544
        %v5840 = vadd.f32 %v5839, %v4548
        %v5841 = vadd.f32 %v5840, %v4552
        %v5842 = vadd.f32 %v5841, %v4556
        %v5843 = vrot.slane %v5842, 4
        %v5844 = vadd.f32 %v5842, %v5843
        %v5845 = vrot.slane %v5844, 2
        %v5846 = vadd.f32 %v5844, %v5845
        %v5847 = vrot.slane %v5846, 1
        %v5848 = vadd.f32 %v5846, %v5847
        %v5849 = vadd.f32 %v4529, %v4533
        %v5850 = vadd.f32 %v5849, %v4537
        %v5851 = vadd.f32 %v5850, %v4541
        %v5852 = vadd.f32 %v5851, %v4545
        %v5853 = vadd.f32 %v5852, %v4549
        %v5854 = vadd.f32 %v5853, %v4553
        %v5855 = vadd.f32 %v5854, %v4557
        %v5856 = vrot.slane %v5855, 4
        %v5857 = vadd.f32 %v5855, %v5856
        %v5858 = vrot.slane %v5857, 2
        %v5859 = vadd.f32 %v5857, %v5858
        %v5860 = vrot.slane %v5859, 1
        %v5861 = vadd.f32 %v5859, %v5860
        %v5862 = vadd.f32 %v4558, %v4562
        %v5863 = vadd.f32 %v5862, %v4566
        %v5864 = vadd.f32 %v5863, %v4570
        %v5865 = vadd.f32 %v5864, %v4574
        %v5866 = vadd.f32 %v5865, %v4578
        %v5867 = vadd.f32 %v5866, %v4582
        %v5868 = vadd.f32 %v5867, %v4586
        %v5869 = vrot.slane %v5868, 4
        %v5870 = vadd.f32 %v5868, %v5869
        %v5871 = vrot.slane %v5870, 2
        %v5872 = vadd.f32 %v5870, %v5871
        %v5873 = vrot.slane %v5872, 1
        %v5874 = vadd.f32 %v5872, %v5873
        %v5875 = vadd.f32 %v4559, %v4563
        %v5876 = vadd.f32 %v5875, %v4567
        %v5877 = vadd.f32 %v5876, %v4571
        %v5878 = vadd.f32 %v5877, %v4575
        %v5879 = vadd.f32 %v5878, %v4579
        %v5880 = vadd.f32 %v5879, %v4583
        %v5881 = vadd.f32 %v5880, %v4587
        %v5882 = vrot.slane %v5881, 4
        %v5883 = vadd.f32 %v5881, %v5882
        %v5884 = vrot.slane %v5883, 2
        %v5885 = vadd.f32 %v5883, %v5884
        %v5886 = vrot.slane %v5885, 1
        %v5887 = vadd.f32 %v5885, %v5886
        %v5888 = vadd.f32 %v4560, %v4564
        %v5889 = vadd.f32 %v5888, %v4568
        %v5890 = vadd.f32 %v5889, %v4572
        %v5891 = vadd.f32 %v5890, %v4576
        %v5892 = vadd.f32 %v5891, %v4580
        %v5893 = vadd.f32 %v5892, %v4584
        %v5894 = vadd.f32 %v5893, %v4588
        %v5895 = vrot.slane %v5894, 4
        %v5896 = vadd.f32 %v5894, %v5895
        %v5897 = vrot.slane %v5896, 2
        %v5898 = vadd.f32 %v5896, %v5897
        %v5899 = vrot.slane %v5898, 1
        %v5900 = vadd.f32 %v5898, %v5899
        %v5901 = vadd.f32 %v4561, %v4565
        %v5902 = vadd.f32 %v5901, %v4569
        %v5903 = vadd.f32 %v5902, %v4573
        %v5904 = vadd.f32 %v5903, %v4577
        %v5905 = vadd.f32 %v5904, %v4581
        %v5906 = vadd.f32 %v5905, %v4585
        %v5907 = vadd.f32 %v5906, %v4589
        %v5908 = vrot.slane %v5907, 4
        %v5909 = vadd.f32 %v5907, %v5908
        %v5910 = vrot.slane %v5909, 2
        %v5911 = vadd.f32 %v5909, %v5910
        %v5912 = vrot.slane %v5911, 1
        %v5913 = vadd.f32 %v5911, %v5912
        %v5914 = vadd.f32 %v4590, %v4594
        %v5915 = vadd.f32 %v5914, %v4598
        %v5916 = vadd.f32 %v5915, %v4602
        %v5917 = vadd.f32 %v5916, %v4606
        %v5918 = vadd.f32 %v5917, %v4610
        %v5919 = vadd.f32 %v5918, %v4614
        %v5920 = vadd.f32 %v5919, %v4618
        %v5921 = vrot.slane %v5920, 4
        %v5922 = vadd.f32 %v5920, %v5921
        %v5923 = vrot.slane %v5922, 2
        %v5924 = vadd.f32 %v5922, %v5923
        %v5925 = vrot.slane %v5924, 1
        %v5926 = vadd.f32 %v5924, %v5925
        %v5927 = vadd.f32 %v4591, %v4595
        %v5928 = vadd.f32 %v5927, %v4599
        %v5929 = vadd.f32 %v5928, %v4603
        %v5930 = vadd.f32 %v5929, %v4607
        %v5931 = vadd.f32 %v5930, %v4611
        %v5932 = vadd.f32 %v5931, %v4615
        %v5933 = vadd.f32 %v5932, %v4619
        %v5934 = vrot.slane %v5933, 4
        %v5935 = vadd.f32 %v5933, %v5934
        %v5936 = vrot.slane %v5935, 2
        %v5937 = vadd.f32 %v5935, %v5936
        %v5938 = vrot.slane %v5937, 1
        %v5939 = vadd.f32 %v5937, %v5938
        %v5940 = vadd.f32 %v4592, %v4596
        %v5941 = vadd.f32 %v5940, %v4600
        %v5942 = vadd.f32 %v5941, %v4604
        %v5943 = vadd.f32 %v5942, %v4608
        %v5944 = vadd.f32 %v5943, %v4612
        %v5945 = vadd.f32 %v5944, %v4616
        %v5946 = vadd.f32 %v5945, %v4620
        %v5947 = vrot.slane %v5946, 4
        %v5948 = vadd.f32 %v5946, %v5947
        %v5949 = vrot.slane %v5948, 2
        %v5950 = vadd.f32 %v5948, %v5949
        %v5951 = vrot.slane %v5950, 1
        %v5952 = vadd.f32 %v5950, %v5951
        %v5953 = vadd.f32 %v4593, %v4597
        %v5954 = vadd.f32 %v5953, %v4601
        %v5955 = vadd.f32 %v5954, %v4605
        %v5956 = vadd.f32 %v5955, %v4609
        %v5957 = vadd.f32 %v5956, %v4613
        %v5958 = vadd.f32 %v5957, %v4617
        %v5959 = vadd.f32 %v5958, %v4621
        %v5960 = vrot.slane %v5959, 4
        %v5961 = vadd.f32 %v5959, %v5960
        %v5962 = vrot.slane %v5961, 2
        %v5963 = vadd.f32 %v5961, %v5962
        %v5964 = vrot.slane %v5963, 1
        %v5965 = vadd.f32 %v5963, %v5964
        %v5966 = vadd.f32 %v4622, %v4626
        %v5967 = vadd.f32 %v5966, %v4630
        %v5968 = vadd.f32 %v5967, %v4634
        %v5969 = vadd.f32 %v5968, %v4638
        %v5970 = vadd.f32 %v5969, %v4642
        %v5971 = vadd.f32 %v5970, %v4646
        %v5972 = vadd.f32 %v5971, %v4650
        %v5973 = vrot.slane %v5972, 4
        %v5974 = vadd.f32 %v5972, %v5973
        %v5975 = vrot.slane %v5974, 2
        %v5976 = vadd.f32 %v5974, %v5975
        %v5977 = vrot.slane %v5976, 1
        %v5978 = vadd.f32 %v5976, %v5977
        %v5979 = vadd.f32 %v4623, %v4627
        %v5980 = vadd.f32 %v5979, %v4631
        %v5981 = vadd.f32 %v5980, %v4635
        %v5982 = vadd.f32 %v5981, %v4639
        %v5983 = vadd.f32 %v5982, %v4643
        %v5984 = vadd.f32 %v5983, %v4647
        %v5985 = vadd.f32 %v5984, %v4651
        %v5986 = vrot.slane %v5985, 4
        %v5987 = vadd.f32 %v5985, %v5986
        %v5988 = vrot.slane %v5987, 2
        %v5989 = vadd.f32 %v5987, %v5988
        %v5990 = vrot.slane %v5989, 1
        %v5991 = vadd.f32 %v5989, %v5990
        %v5992 = vadd.f32 %v4624, %v4628
        %v5993 = vadd.f32 %v5992, %v4632
        %v5994 = vadd.f32 %v5993, %v4636
        %v5995 = vadd.f32 %v5994, %v4640
        %v5996 = vadd.f32 %v5995, %v4644
        %v5997 = vadd.f32 %v5996, %v4648
        %v5998 = vadd.f32 %v5997, %v4652
        %v5999 = vrot.slane %v5998, 4
        %v6000 = vadd.f32 %v5998, %v5999
        %v6001 = vrot.slane %v6000, 2
        %v6002 = vadd.f32 %v6000, %v6001
        %v6003 = vrot.slane %v6002, 1
        %v6004 = vadd.f32 %v6002, %v6003
        %v6005 = vadd.f32 %v4625, %v4629
        %v6006 = vadd.f32 %v6005, %v4633
        %v6007 = vadd.f32 %v6006, %v4637
        %v6008 = vadd.f32 %v6007, %v4641
        %v6009 = vadd.f32 %v6008, %v4645
        %v6010 = vadd.f32 %v6009, %v4649
        %v6011 = vadd.f32 %v6010, %v4653
        %v6012 = vrot.slane %v6011, 4
        %v6013 = vadd.f32 %v6011, %v6012
        %v6014 = vrot.slane %v6013, 2
        %v6015 = vadd.f32 %v6013, %v6014
        %v6016 = vrot.slane %v6015, 1
        %v6017 = vadd.f32 %v6015, %v6016
        %v6018 = vadd.f32 %v4654, %v4658
        %v6019 = vadd.f32 %v6018, %v4662
        %v6020 = vadd.f32 %v6019, %v4666
        %v6021 = vadd.f32 %v6020, %v4670
        %v6022 = vadd.f32 %v6021, %v4674
        %v6023 = vadd.f32 %v6022, %v4678
        %v6024 = vadd.f32 %v6023, %v4682
        %v6025 = vrot.slane %v6024, 4
        %v6026 = vadd.f32 %v6024, %v6025
        %v6027 = vrot.slane %v6026, 2
        %v6028 = vadd.f32 %v6026, %v6027
        %v6029 = vrot.slane %v6028, 1
        %v6030 = vadd.f32 %v6028, %v6029
        %v6031 = vadd.f32 %v4655, %v4659
        %v6032 = vadd.f32 %v6031, %v4663
        %v6033 = vadd.f32 %v6032, %v4667
        %v6034 = vadd.f32 %v6033, %v4671
        %v6035 = vadd.f32 %v6034, %v4675
        %v6036 = vadd.f32 %v6035, %v4679
        %v6037 = vadd.f32 %v6036, %v4683
        %v6038 = vrot.slane %v6037, 4
        %v6039 = vadd.f32 %v6037, %v6038
        %v6040 = vrot.slane %v6039, 2
        %v6041 = vadd.f32 %v6039, %v6040
        %v6042 = vrot.slane %v6041, 1
        %v6043 = vadd.f32 %v6041, %v6042
        %v6044 = vadd.f32 %v4656, %v4660
        %v6045 = vadd.f32 %v6044, %v4664
        %v6046 = vadd.f32 %v6045, %v4668
        %v6047 = vadd.f32 %v6046, %v4672
        %v6048 = vadd.f32 %v6047, %v4676
        %v6049 = vadd.f32 %v6048, %v4680
        %v6050 = vadd.f32 %v6049, %v4684
        %v6051 = vrot.slane %v6050, 4
        %v6052 = vadd.f32 %v6050, %v6051
        %v6053 = vrot.slane %v6052, 2
        %v6054 = vadd.f32 %v6052, %v6053
        %v6055 = vrot.slane %v6054, 1
        %v6056 = vadd.f32 %v6054, %v6055
        %v6057 = vadd.f32 %v4657, %v4661
        %v6058 = vadd.f32 %v6057, %v4665
        %v6059 = vadd.f32 %v6058, %v4669
        %v6060 = vadd.f32 %v6059, %v4673
        %v6061 = vadd.f32 %v6060, %v4677
        %v6062 = vadd.f32 %v6061, %v4681
        %v6063 = vadd.f32 %v6062, %v4685
        %v6064 = vrot.slane %v6063, 4
        %v6065 = vadd.f32 %v6063, %v6064
        %v6066 = vrot.slane %v6065, 2
        %v6067 = vadd.f32 %v6065, %v6066
        %v6068 = vrot.slane %v6067, 1
        %v6069 = vadd.f32 %v6067, %v6068
        %v6070 = vadd.f32 %v4686, %v4690
        %v6071 = vadd.f32 %v6070, %v4694
        %v6072 = vadd.f32 %v6071, %v4698
        %v6073 = vadd.f32 %v6072, %v4702
        %v6074 = vadd.f32 %v6073, %v4706
        %v6075 = vadd.f32 %v6074, %v4710
        %v6076 = vadd.f32 %v6075, %v4714
        %v6077 = vrot.slane %v6076, 4
        %v6078 = vadd.f32 %v6076, %v6077
        %v6079 = vrot.slane %v6078, 2
        %v6080 = vadd.f32 %v6078, %v6079
        %v6081 = vrot.slane %v6080, 1
        %v6082 = vadd.f32 %v6080, %v6081
        %v6083 = vadd.f32 %v4687, %v4691
        %v6084 = vadd.f32 %v6083, %v4695
        %v6085 = vadd.f32 %v6084, %v4699
        %v6086 = vadd.f32 %v6085, %v4703
        %v6087 = vadd.f32 %v6086, %v4707
        %v6088 = vadd.f32 %v6087, %v4711
        %v6089 = vadd.f32 %v6088, %v4715
        %v6090 = vrot.slane %v6089, 4
        %v6091 = vadd.f32 %v6089, %v6090
        %v6092 = vrot.slane %v6091, 2
        %v6093 = vadd.f32 %v6091, %v6092
        %v6094 = vrot.slane %v6093, 1
        %v6095 = vadd.f32 %v6093, %v6094
        %v6096 = vadd.f32 %v4688, %v4692
        %v6097 = vadd.f32 %v6096, %v4696
        %v6098 = vadd.f32 %v6097, %v4700
        %v6099 = vadd.f32 %v6098, %v4704
        %v6100 = vadd.f32 %v6099, %v4708
        %v6101 = vadd.f32 %v6100, %v4712
        %v6102 = vadd.f32 %v6101, %v4716
        %v6103 = vrot.slane %v6102, 4
        %v6104 = vadd.f32 %v6102, %v6103
        %v6105 = vrot.slane %v6104, 2
        %v6106 = vadd.f32 %v6104, %v6105
        %v6107 = vrot.slane %v6106, 1
        %v6108 = vadd.f32 %v6106, %v6107
        %v6109 = vadd.f32 %v4689, %v4693
        %v6110 = vadd.f32 %v6109, %v4697
        %v6111 = vadd.f32 %v6110, %v4701
        %v6112 = vadd.f32 %v6111, %v4705
        %v6113 = vadd.f32 %v6112, %v4709
        %v6114 = vadd.f32 %v6113, %v4713
        %v6115 = vadd.f32 %v6114, %v4717
        %v6116 = vrot.slane %v6115, 4
        %v6117 = vadd.f32 %v6115, %v6116
        %v6118 = vrot.slane %v6117, 2
        %v6119 = vadd.f32 %v6117, %v6118
        %v6120 = vrot.slane %v6119, 1
        %v6121 = vadd.f32 %v6119, %v6120
        %v6122 = vadd.f32 %v4718, %v4722
        %v6123 = vadd.f32 %v6122, %v4726
        %v6124 = vadd.f32 %v6123, %v4730
        %v6125 = vadd.f32 %v6124, %v4734
        %v6126 = vadd.f32 %v6125, %v4738
        %v6127 = vadd.f32 %v6126, %v4742
        %v6128 = vadd.f32 %v6127, %v4746
        %v6129 = vrot.slane %v6128, 4
        %v6130 = vadd.f32 %v6128, %v6129
        %v6131 = vrot.slane %v6130, 2
        %v6132 = vadd.f32 %v6130, %v6131
        %v6133 = vrot.slane %v6132, 1
        %v6134 = vadd.f32 %v6132, %v6133
        %v6135 = vadd.f32 %v4719, %v4723
        %v6136 = vadd.f32 %v6135, %v4727
        %v6137 = vadd.f32 %v6136, %v4731
        %v6138 = vadd.f32 %v6137, %v4735
        %v6139 = vadd.f32 %v6138, %v4739
        %v6140 = vadd.f32 %v6139, %v4743
        %v6141 = vadd.f32 %v6140, %v4747
        %v6142 = vrot.slane %v6141, 4
        %v6143 = vadd.f32 %v6141, %v6142
        %v6144 = vrot.slane %v6143, 2
        %v6145 = vadd.f32 %v6143, %v6144
        %v6146 = vrot.slane %v6145, 1
        %v6147 = vadd.f32 %v6145, %v6146
        %v6148 = vadd.f32 %v4720, %v4724
        %v6149 = vadd.f32 %v6148, %v4728
        %v6150 = vadd.f32 %v6149, %v4732
        %v6151 = vadd.f32 %v6150, %v4736
        %v6152 = vadd.f32 %v6151, %v4740
        %v6153 = vadd.f32 %v6152, %v4744
        %v6154 = vadd.f32 %v6153, %v4748
        %v6155 = vrot.slane %v6154, 4
        %v6156 = vadd.f32 %v6154, %v6155
        %v6157 = vrot.slane %v6156, 2
        %v6158 = vadd.f32 %v6156, %v6157
        %v6159 = vrot.slane %v6158, 1
        %v6160 = vadd.f32 %v6158, %v6159
        %v6161 = vadd.f32 %v4721, %v4725
        %v6162 = vadd.f32 %v6161, %v4729
        %v6163 = vadd.f32 %v6162, %v4733
        %v6164 = vadd.f32 %v6163, %v4737
        %v6165 = vadd.f32 %v6164, %v4741
        %v6166 = vadd.f32 %v6165, %v4745
        %v6167 = vadd.f32 %v6166, %v4749
        %v6168 = vrot.slane %v6167, 4
        %v6169 = vadd.f32 %v6167, %v6168
        %v6170 = vrot.slane %v6169, 2
        %v6171 = vadd.f32 %v6169, %v6170
        %v6172 = vrot.slane %v6171, 1
        %v6173 = vadd.f32 %v6171, %v6172
        %v6174 = vadd.f32 %v4750, %v4754
        %v6175 = vadd.f32 %v6174, %v4758
        %v6176 = vadd.f32 %v6175, %v4762
        %v6177 = vadd.f32 %v6176, %v4766
        %v6178 = vadd.f32 %v6177, %v4770
        %v6179 = vadd.f32 %v6178, %v4774
        %v6180 = vadd.f32 %v6179, %v4778
        %v6181 = vrot.slane %v6180, 4
        %v6182 = vadd.f32 %v6180, %v6181
        %v6183 = vrot.slane %v6182, 2
        %v6184 = vadd.f32 %v6182, %v6183
        %v6185 = vrot.slane %v6184, 1
        %v6186 = vadd.f32 %v6184, %v6185
        %v6187 = vadd.f32 %v4751, %v4755
        %v6188 = vadd.f32 %v6187, %v4759
        %v6189 = vadd.f32 %v6188, %v4763
        %v6190 = vadd.f32 %v6189, %v4767
        %v6191 = vadd.f32 %v6190, %v4771
        %v6192 = vadd.f32 %v6191, %v4775
        %v6193 = vadd.f32 %v6192, %v4779
        %v6194 = vrot.slane %v6193, 4
        %v6195 = vadd.f32 %v6193, %v6194
        %v6196 = vrot.slane %v6195, 2
        %v6197 = vadd.f32 %v6195, %v6196
        %v6198 = vrot.slane %v6197, 1
        %v6199 = vadd.f32 %v6197, %v6198
        %v6200 = vadd.f32 %v4752, %v4756
        %v6201 = vadd.f32 %v6200, %v4760
        %v6202 = vadd.f32 %v6201, %v4764
        %v6203 = vadd.f32 %v6202, %v4768
        %v6204 = vadd.f32 %v6203, %v4772
        %v6205 = vadd.f32 %v6204, %v4776
        %v6206 = vadd.f32 %v6205, %v4780
        %v6207 = vrot.slane %v6206, 4
        %v6208 = vadd.f32 %v6206, %v6207
        %v6209 = vrot.slane %v6208, 2
        %v6210 = vadd.f32 %v6208, %v6209
        %v6211 = vrot.slane %v6210, 1
        %v6212 = vadd.f32 %v6210, %v6211
        %v6213 = vadd.f32 %v4753, %v4757
        %v6214 = vadd.f32 %v6213, %v4761
        %v6215 = vadd.f32 %v6214, %v4765
        %v6216 = vadd.f32 %v6215, %v4769
        %v6217 = vadd.f32 %v6216, %v4773
        %v6218 = vadd.f32 %v6217, %v4777
        %v6219 = vadd.f32 %v6218, %v4781
        %v6220 = vrot.slane %v6219, 4
        %v6221 = vadd.f32 %v6219, %v6220
        %v6222 = vrot.slane %v6221, 2
        %v6223 = vadd.f32 %v6221, %v6222
        %v6224 = vrot.slane %v6223, 1
        %v6225 = vadd.f32 %v6223, %v6224
        %v6226 = vadd.f32 %v4782, %v4786
        %v6227 = vadd.f32 %v6226, %v4790
        %v6228 = vadd.f32 %v6227, %v4794
        %v6229 = vadd.f32 %v6228, %v4798
        %v6230 = vadd.f32 %v6229, %v4802
        %v6231 = vadd.f32 %v6230, %v4806
        %v6232 = vadd.f32 %v6231, %v4810
        %v6233 = vrot.slane %v6232, 4
        %v6234 = vadd.f32 %v6232, %v6233
        %v6235 = vrot.slane %v6234, 2
        %v6236 = vadd.f32 %v6234, %v6235
        %v6237 = vrot.slane %v6236, 1
        %v6238 = vadd.f32 %v6236, %v6237
        %v6239 = vadd.f32 %v4783, %v4787
        %v6240 = vadd.f32 %v6239, %v4791
        %v6241 = vadd.f32 %v6240, %v4795
        %v6242 = vadd.f32 %v6241, %v4799
        %v6243 = vadd.f32 %v6242, %v4803
        %v6244 = vadd.f32 %v6243, %v4807
        %v6245 = vadd.f32 %v6244, %v4811
        %v6246 = vrot.slane %v6245, 4
        %v6247 = vadd.f32 %v6245, %v6246
        %v6248 = vrot.slane %v6247, 2
        %v6249 = vadd.f32 %v6247, %v6248
        %v6250 = vrot.slane %v6249, 1
        %v6251 = vadd.f32 %v6249, %v6250
        %v6252 = vadd.f32 %v4784, %v4788
        %v6253 = vadd.f32 %v6252, %v4792
        %v6254 = vadd.f32 %v6253, %v4796
        %v6255 = vadd.f32 %v6254, %v4800
        %v6256 = vadd.f32 %v6255, %v4804
        %v6257 = vadd.f32 %v6256, %v4808
        %v6258 = vadd.f32 %v6257, %v4812
        %v6259 = vrot.slane %v6258, 4
        %v6260 = vadd.f32 %v6258, %v6259
        %v6261 = vrot.slane %v6260, 2
        %v6262 = vadd.f32 %v6260, %v6261
        %v6263 = vrot.slane %v6262, 1
        %v6264 = vadd.f32 %v6262, %v6263
        %v6265 = vadd.f32 %v4785, %v4789
        %v6266 = vadd.f32 %v6265, %v4793
        %v6267 = vadd.f32 %v6266, %v4797
        %v6268 = vadd.f32 %v6267, %v4801
        %v6269 = vadd.f32 %v6268, %v4805
        %v6270 = vadd.f32 %v6269, %v4809
        %v6271 = vadd.f32 %v6270, %v4813
        %v6272 = vrot.slane %v6271, 4
        %v6273 = vadd.f32 %v6271, %v6272
        %v6274 = vrot.slane %v6273, 2
        %v6275 = vadd.f32 %v6273, %v6274
        %v6276 = vrot.slane %v6275, 1
        %v6277 = vadd.f32 %v6275, %v6276
        %v6278 = vadd.f32 %v4814, %v4818
        %v6279 = vadd.f32 %v6278, %v4822
        %v6280 = vadd.f32 %v6279, %v4826
        %v6281 = vadd.f32 %v6280, %v4830
        %v6282 = vadd.f32 %v6281, %v4834
        %v6283 = vadd.f32 %v6282, %v4838
        %v6284 = vadd.f32 %v6283, %v4842
        %v6285 = vrot.slane %v6284, 4
        %v6286 = vadd.f32 %v6284, %v6285
        %v6287 = vrot.slane %v6286, 2
        %v6288 = vadd.f32 %v6286, %v6287
        %v6289 = vrot.slane %v6288, 1
        %v6290 = vadd.f32 %v6288, %v6289
        %v6291 = vadd.f32 %v4815, %v4819
        %v6292 = vadd.f32 %v6291, %v4823
        %v6293 = vadd.f32 %v6292, %v4827
        %v6294 = vadd.f32 %v6293, %v4831
        %v6295 = vadd.f32 %v6294, %v4835
        %v6296 = vadd.f32 %v6295, %v4839
        %v6297 = vadd.f32 %v6296, %v4843
        %v6298 = vrot.slane %v6297, 4
        %v6299 = vadd.f32 %v6297, %v6298
        %v6300 = vrot.slane %v6299, 2
        %v6301 = vadd.f32 %v6299, %v6300
        %v6302 = vrot.slane %v6301, 1
        %v6303 = vadd.f32 %v6301, %v6302
        %v6304 = vadd.f32 %v4816, %v4820
        %v6305 = vadd.f32 %v6304, %v4824
        %v6306 = vadd.f32 %v6305, %v4828
        %v6307 = vadd.f32 %v6306, %v4832
        %v6308 = vadd.f32 %v6307, %v4836
        %v6309 = vadd.f32 %v6308, %v4840
        %v6310 = vadd.f32 %v6309, %v4844
        %v6311 = vrot.slane %v6310, 4
        %v6312 = vadd.f32 %v6310, %v6311
        %v6313 = vrot.slane %v6312, 2
        %v6314 = vadd.f32 %v6312, %v6313
        %v6315 = vrot.slane %v6314, 1
        %v6316 = vadd.f32 %v6314, %v6315
        %v6317 = vadd.f32 %v4817, %v4821
        %v6318 = vadd.f32 %v6317, %v4825
        %v6319 = vadd.f32 %v6318, %v4829
        %v6320 = vadd.f32 %v6319, %v4833
        %v6321 = vadd.f32 %v6320, %v4837
        %v6322 = vadd.f32 %v6321, %v4841
        %v6323 = vadd.f32 %v6322, %v4845
        %v6324 = vrot.slane %v6323, 4
        %v6325 = vadd.f32 %v6323, %v6324
        %v6326 = vrot.slane %v6325, 2
        %v6327 = vadd.f32 %v6325, %v6326
        %v6328 = vrot.slane %v6327, 1
        %v6329 = vadd.f32 %v6327, %v6328
        %v6330 = vadd.f32 %v4846, %v4850
        %v6331 = vadd.f32 %v6330, %v4854
        %v6332 = vadd.f32 %v6331, %v4858
        %v6333 = vadd.f32 %v6332, %v4862
        %v6334 = vadd.f32 %v6333, %v4866
        %v6335 = vadd.f32 %v6334, %v4870
        %v6336 = vadd.f32 %v6335, %v4874
        %v6337 = vrot.slane %v6336, 4
        %v6338 = vadd.f32 %v6336, %v6337
        %v6339 = vrot.slane %v6338, 2
        %v6340 = vadd.f32 %v6338, %v6339
        %v6341 = vrot.slane %v6340, 1
        %v6342 = vadd.f32 %v6340, %v6341
        %v6343 = vadd.f32 %v4847, %v4851
        %v6344 = vadd.f32 %v6343, %v4855
        %v6345 = vadd.f32 %v6344, %v4859
        %v6346 = vadd.f32 %v6345, %v4863
        %v6347 = vadd.f32 %v6346, %v4867
        %v6348 = vadd.f32 %v6347, %v4871
        %v6349 = vadd.f32 %v6348, %v4875
        %v6350 = vrot.slane %v6349, 4
        %v6351 = vadd.f32 %v6349, %v6350
        %v6352 = vrot.slane %v6351, 2
        %v6353 = vadd.f32 %v6351, %v6352
        %v6354 = vrot.slane %v6353, 1
        %v6355 = vadd.f32 %v6353, %v6354
        %v6356 = vadd.f32 %v4848, %v4852
        %v6357 = vadd.f32 %v6356, %v4856
        %v6358 = vadd.f32 %v6357, %v4860
        %v6359 = vadd.f32 %v6358, %v4864
        %v6360 = vadd.f32 %v6359, %v4868
        %v6361 = vadd.f32 %v6360, %v4872
        %v6362 = vadd.f32 %v6361, %v4876
        %v6363 = vrot.slane %v6362, 4
        %v6364 = vadd.f32 %v6362, %v6363
        %v6365 = vrot.slane %v6364, 2
        %v6366 = vadd.f32 %v6364, %v6365
        %v6367 = vrot.slane %v6366, 1
        %v6368 = vadd.f32 %v6366, %v6367
        %v6369 = vadd.f32 %v4849, %v4853
        %v6370 = vadd.f32 %v6369, %v4857
        %v6371 = vadd.f32 %v6370, %v4861
        %v6372 = vadd.f32 %v6371, %v4865
        %v6373 = vadd.f32 %v6372, %v4869
        %v6374 = vadd.f32 %v6373, %v4873
        %v6375 = vadd.f32 %v6374, %v4877
        %v6376 = vrot.slane %v6375, 4
        %v6377 = vadd.f32 %v6375, %v6376
        %v6378 = vrot.slane %v6377, 2
        %v6379 = vadd.f32 %v6377, %v6378
        %v6380 = vrot.slane %v6379, 1
        %v6381 = vadd.f32 %v6379, %v6380
        %v6382 = vadd.f32 %v4878, %v4882
        %v6383 = vadd.f32 %v6382, %v4886
        %v6384 = vadd.f32 %v6383, %v4890
        %v6385 = vadd.f32 %v6384, %v4894
        %v6386 = vadd.f32 %v6385, %v4898
        %v6387 = vadd.f32 %v6386, %v4902
        %v6388 = vadd.f32 %v6387, %v4906
        %v6389 = vrot.slane %v6388, 4
        %v6390 = vadd.f32 %v6388, %v6389
        %v6391 = vrot.slane %v6390, 2
        %v6392 = vadd.f32 %v6390, %v6391
        %v6393 = vrot.slane %v6392, 1
        %v6394 = vadd.f32 %v6392, %v6393
        %v6395 = vadd.f32 %v4879, %v4883
        %v6396 = vadd.f32 %v6395, %v4887
        %v6397 = vadd.f32 %v6396, %v4891
        %v6398 = vadd.f32 %v6397, %v4895
        %v6399 = vadd.f32 %v6398, %v4899
        %v6400 = vadd.f32 %v6399, %v4903
        %v6401 = vadd.f32 %v6400, %v4907
        %v6402 = vrot.slane %v6401, 4
        %v6403 = vadd.f32 %v6401, %v6402
        %v6404 = vrot.slane %v6403, 2
        %v6405 = vadd.f32 %v6403, %v6404
        %v6406 = vrot.slane %v6405, 1
        %v6407 = vadd.f32 %v6405, %v6406
        %v6408 = vadd.f32 %v4880, %v4884
        %v6409 = vadd.f32 %v6408, %v4888
        %v6410 = vadd.f32 %v6409, %v4892
        %v6411 = vadd.f32 %v6410, %v4896
        %v6412 = vadd.f32 %v6411, %v4900
        %v6413 = vadd.f32 %v6412, %v4904
        %v6414 = vadd.f32 %v6413, %v4908
        %v6415 = vrot.slane %v6414, 4
        %v6416 = vadd.f32 %v6414, %v6415
        %v6417 = vrot.slane %v6416, 2
        %v6418 = vadd.f32 %v6416, %v6417
        %v6419 = vrot.slane %v6418, 1
        %v6420 = vadd.f32 %v6418, %v6419
        %v6421 = vadd.f32 %v4881, %v4885
        %v6422 = vadd.f32 %v6421, %v4889
        %v6423 = vadd.f32 %v6422, %v4893
        %v6424 = vadd.f32 %v6423, %v4897
        %v6425 = vadd.f32 %v6424, %v4901
        %v6426 = vadd.f32 %v6425, %v4905
        %v6427 = vadd.f32 %v6426, %v4909
        %v6428 = vrot.slane %v6427, 4
        %v6429 = vadd.f32 %v6427, %v6428
        %v6430 = vrot.slane %v6429, 2
        %v6431 = vadd.f32 %v6429, %v6430
        %v6432 = vrot.slane %v6431, 1
        %v6433 = vadd.f32 %v6431, %v6432
        %v6434 = vadd.f32 %v4910, %v4914
        %v6435 = vadd.f32 %v6434, %v4918
        %v6436 = vadd.f32 %v6435, %v4922
        %v6437 = vadd.f32 %v6436, %v4926
        %v6438 = vadd.f32 %v6437, %v4930
        %v6439 = vadd.f32 %v6438, %v4934
        %v6440 = vadd.f32 %v6439, %v4938
        %v6441 = vrot.slane %v6440, 4
        %v6442 = vadd.f32 %v6440, %v6441
        %v6443 = vrot.slane %v6442, 2
        %v6444 = vadd.f32 %v6442, %v6443
        %v6445 = vrot.slane %v6444, 1
        %v6446 = vadd.f32 %v6444, %v6445
        %v6447 = vadd.f32 %v4911, %v4915
        %v6448 = vadd.f32 %v6447, %v4919
        %v6449 = vadd.f32 %v6448, %v4923
        %v6450 = vadd.f32 %v6449, %v4927
        %v6451 = vadd.f32 %v6450, %v4931
        %v6452 = vadd.f32 %v6451, %v4935
        %v6453 = vadd.f32 %v6452, %v4939
        %v6454 = vrot.slane %v6453, 4
        %v6455 = vadd.f32 %v6453, %v6454
        %v6456 = vrot.slane %v6455, 2
        %v6457 = vadd.f32 %v6455, %v6456
        %v6458 = vrot.slane %v6457, 1
        %v6459 = vadd.f32 %v6457, %v6458
        %v6460 = vadd.f32 %v4912, %v4916
        %v6461 = vadd.f32 %v6460, %v4920
        %v6462 = vadd.f32 %v6461, %v4924
        %v6463 = vadd.f32 %v6462, %v4928
        %v6464 = vadd.f32 %v6463, %v4932
        %v6465 = vadd.f32 %v6464, %v4936
        %v6466 = vadd.f32 %v6465, %v4940
        %v6467 = vrot.slane %v6466, 4
        %v6468 = vadd.f32 %v6466, %v6467
        %v6469 = vrot.slane %v6468, 2
        %v6470 = vadd.f32 %v6468, %v6469
        %v6471 = vrot.slane %v6470, 1
        %v6472 = vadd.f32 %v6470, %v6471
        %v6473 = vadd.f32 %v4913, %v4917
        %v6474 = vadd.f32 %v6473, %v4921
        %v6475 = vadd.f32 %v6474, %v4925
        %v6476 = vadd.f32 %v6475, %v4929
        %v6477 = vadd.f32 %v6476, %v4933
        %v6478 = vadd.f32 %v6477, %v4937
        %v6479 = vadd.f32 %v6478, %v4941
        %v6480 = vrot.slane %v6479, 4
        %v6481 = vadd.f32 %v6479, %v6480
        %v6482 = vrot.slane %v6481, 2
        %v6483 = vadd.f32 %v6481, %v6482
        %v6484 = vrot.slane %v6483, 1
        %v6485 = vadd.f32 %v6483, %v6484
        %v6486 = vadd.f32 %v4942, %v4946
        %v6487 = vadd.f32 %v6486, %v4950
        %v6488 = vadd.f32 %v6487, %v4954
        %v6489 = vadd.f32 %v6488, %v4958
        %v6490 = vadd.f32 %v6489, %v4962
        %v6491 = vadd.f32 %v6490, %v4966
        %v6492 = vadd.f32 %v6491, %v4970
        %v6493 = vrot.slane %v6492, 4
        %v6494 = vadd.f32 %v6492, %v6493
        %v6495 = vrot.slane %v6494, 2
        %v6496 = vadd.f32 %v6494, %v6495
        %v6497 = vrot.slane %v6496, 1
        %v6498 = vadd.f32 %v6496, %v6497
        %v6499 = vadd.f32 %v4943, %v4947
        %v6500 = vadd.f32 %v6499, %v4951
        %v6501 = vadd.f32 %v6500, %v4955
        %v6502 = vadd.f32 %v6501, %v4959
        %v6503 = vadd.f32 %v6502, %v4963
        %v6504 = vadd.f32 %v6503, %v4967
        %v6505 = vadd.f32 %v6504, %v4971
        %v6506 = vrot.slane %v6505, 4
        %v6507 = vadd.f32 %v6505, %v6506
        %v6508 = vrot.slane %v6507, 2
        %v6509 = vadd.f32 %v6507, %v6508
        %v6510 = vrot.slane %v6509, 1
        %v6511 = vadd.f32 %v6509, %v6510
        %v6512 = vadd.f32 %v4944, %v4948
        %v6513 = vadd.f32 %v6512, %v4952
        %v6514 = vadd.f32 %v6513, %v4956
        %v6515 = vadd.f32 %v6514, %v4960
        %v6516 = vadd.f32 %v6515, %v4964
        %v6517 = vadd.f32 %v6516, %v4968
        %v6518 = vadd.f32 %v6517, %v4972
        %v6519 = vrot.slane %v6518, 4
        %v6520 = vadd.f32 %v6518, %v6519
        %v6521 = vrot.slane %v6520, 2
        %v6522 = vadd.f32 %v6520, %v6521
        %v6523 = vrot.slane %v6522, 1
        %v6524 = vadd.f32 %v6522, %v6523
        %v6525 = vadd.f32 %v4945, %v4949
        %v6526 = vadd.f32 %v6525, %v4953
        %v6527 = vadd.f32 %v6526, %v4957
        %v6528 = vadd.f32 %v6527, %v4961
        %v6529 = vadd.f32 %v6528, %v4965
        %v6530 = vadd.f32 %v6529, %v4969
        %v6531 = vadd.f32 %v6530, %v4973
        %v6532 = vrot.slane %v6531, 4
        %v6533 = vadd.f32 %v6531, %v6532
        %v6534 = vrot.slane %v6533, 2
        %v6535 = vadd.f32 %v6533, %v6534
        %v6536 = vrot.slane %v6535, 1
        %v6537 = vadd.f32 %v6535, %v6536
        %v6538 = vadd.f32 %v4974, %v4978
        %v6539 = vadd.f32 %v6538, %v4982
        %v6540 = vadd.f32 %v6539, %v4986
        %v6541 = vadd.f32 %v6540, %v4990
        %v6542 = vadd.f32 %v6541, %v4994
        %v6543 = vadd.f32 %v6542, %v4998
        %v6544 = vadd.f32 %v6543, %v5002
        %v6545 = vrot.slane %v6544, 4
        %v6546 = vadd.f32 %v6544, %v6545
        %v6547 = vrot.slane %v6546, 2
        %v6548 = vadd.f32 %v6546, %v6547
        %v6549 = vrot.slane %v6548, 1
        %v6550 = vadd.f32 %v6548, %v6549
        %v6551 = vadd.f32 %v4975, %v4979
        %v6552 = vadd.f32 %v6551, %v4983
        %v6553 = vadd.f32 %v6552, %v4987
        %v6554 = vadd.f32 %v6553, %v4991
        %v6555 = vadd.f32 %v6554, %v4995
        %v6556 = vadd.f32 %v6555, %v4999
        %v6557 = vadd.f32 %v6556, %v5003
        %v6558 = vrot.slane %v6557, 4
        %v6559 = vadd.f32 %v6557, %v6558
        %v6560 = vrot.slane %v6559, 2
        %v6561 = vadd.f32 %v6559, %v6560
        %v6562 = vrot.slane %v6561, 1
        %v6563 = vadd.f32 %v6561, %v6562
        %v6564 = vadd.f32 %v4976, %v4980
        %v6565 = vadd.f32 %v6564, %v4984
        %v6566 = vadd.f32 %v6565, %v4988
        %v6567 = vadd.f32 %v6566, %v4992
        %v6568 = vadd.f32 %v6567, %v4996
        %v6569 = vadd.f32 %v6568, %v5000
        %v6570 = vadd.f32 %v6569, %v5004
        %v6571 = vrot.slane %v6570, 4
        %v6572 = vadd.f32 %v6570, %v6571
        %v6573 = vrot.slane %v6572, 2
        %v6574 = vadd.f32 %v6572, %v6573
        %v6575 = vrot.slane %v6574, 1
        %v6576 = vadd.f32 %v6574, %v6575
        %v6577 = vadd.f32 %v4977, %v4981
        %v6578 = vadd.f32 %v6577, %v4985
        %v6579 = vadd.f32 %v6578, %v4989
        %v6580 = vadd.f32 %v6579, %v4993
        %v6581 = vadd.f32 %v6580, %v4997
        %v6582 = vadd.f32 %v6581, %v5001
        %v6583 = vadd.f32 %v6582, %v5005
        %v6584 = vrot.slane %v6583, 4
        %v6585 = vadd.f32 %v6583, %v6584
        %v6586 = vrot.slane %v6585, 2
        %v6587 = vadd.f32 %v6585, %v6586
        %v6588 = vrot.slane %v6587, 1
        %v6589 = vadd.f32 %v6587, %v6588
        %v6590 = vadd.f32 %v5006, %v5010
        %v6591 = vadd.f32 %v6590, %v5014
        %v6592 = vadd.f32 %v6591, %v5018
        %v6593 = vadd.f32 %v6592, %v5022
        %v6594 = vadd.f32 %v6593, %v5026
        %v6595 = vadd.f32 %v6594, %v5030
        %v6596 = vadd.f32 %v6595, %v5034
        %v6597 = vrot.slane %v6596, 4
        %v6598 = vadd.f32 %v6596, %v6597
        %v6599 = vrot.slane %v6598, 2
        %v6600 = vadd.f32 %v6598, %v6599
        %v6601 = vrot.slane %v6600, 1
        %v6602 = vadd.f32 %v6600, %v6601
        %v6603 = vadd.f32 %v5007, %v5011
        %v6604 = vadd.f32 %v6603, %v5015
        %v6605 = vadd.f32 %v6604, %v5019
        %v6606 = vadd.f32 %v6605, %v5023
        %v6607 = vadd.f32 %v6606, %v5027
        %v6608 = vadd.f32 %v6607, %v5031
        %v6609 = vadd.f32 %v6608, %v5035
        %v6610 = vrot.slane %v6609, 4
        %v6611 = vadd.f32 %v6609, %v6610
        %v6612 = vrot.slane %v6611, 2
        %v6613 = vadd.f32 %v6611, %v6612
        %v6614 = vrot.slane %v6613, 1
        %v6615 = vadd.f32 %v6613, %v6614
        %v6616 = vadd.f32 %v5008, %v5012
        %v6617 = vadd.f32 %v6616, %v5016
        %v6618 = vadd.f32 %v6617, %v5020
        %v6619 = vadd.f32 %v6618, %v5024
        %v6620 = vadd.f32 %v6619, %v5028
        %v6621 = vadd.f32 %v6620, %v5032
        %v6622 = vadd.f32 %v6621, %v5036
        %v6623 = vrot.slane %v6622, 4
        %v6624 = vadd.f32 %v6622, %v6623
        %v6625 = vrot.slane %v6624, 2
        %v6626 = vadd.f32 %v6624, %v6625
        %v6627 = vrot.slane %v6626, 1
        %v6628 = vadd.f32 %v6626, %v6627
        %v6629 = vadd.f32 %v5009, %v5013
        %v6630 = vadd.f32 %v6629, %v5017
        %v6631 = vadd.f32 %v6630, %v5021
        %v6632 = vadd.f32 %v6631, %v5025
        %v6633 = vadd.f32 %v6632, %v5029
        %v6634 = vadd.f32 %v6633, %v5033
        %v6635 = vadd.f32 %v6634, %v5037
        %v6636 = vrot.slane %v6635, 4
        %v6637 = vadd.f32 %v6635, %v6636
        %v6638 = vrot.slane %v6637, 2
        %v6639 = vadd.f32 %v6637, %v6638
        %v6640 = vrot.slane %v6639, 1
        %v6641 = vadd.f32 %v6639, %v6640
        %v6642 = vadd.f32 %v5038, %v5042
        %v6643 = vadd.f32 %v6642, %v5046
        %v6644 = vadd.f32 %v6643, %v5050
        %v6645 = vadd.f32 %v6644, %v5054
        %v6646 = vadd.f32 %v6645, %v5058
        %v6647 = vadd.f32 %v6646, %v5062
        %v6648 = vadd.f32 %v6647, %v5066
        %v6649 = vrot.slane %v6648, 4
        %v6650 = vadd.f32 %v6648, %v6649
        %v6651 = vrot.slane %v6650, 2
        %v6652 = vadd.f32 %v6650, %v6651
        %v6653 = vrot.slane %v6652, 1
        %v6654 = vadd.f32 %v6652, %v6653
        %v6655 = vadd.f32 %v5039, %v5043
        %v6656 = vadd.f32 %v6655, %v5047
        %v6657 = vadd.f32 %v6656, %v5051
        %v6658 = vadd.f32 %v6657, %v5055
        %v6659 = vadd.f32 %v6658, %v5059
        %v6660 = vadd.f32 %v6659, %v5063
        %v6661 = vadd.f32 %v6660, %v5067
        %v6662 = vrot.slane %v6661, 4
        %v6663 = vadd.f32 %v6661, %v6662
        %v6664 = vrot.slane %v6663, 2
        %v6665 = vadd.f32 %v6663, %v6664
        %v6666 = vrot.slane %v6665, 1
        %v6667 = vadd.f32 %v6665, %v6666
        %v6668 = vadd.f32 %v5040, %v5044
        %v6669 = vadd.f32 %v6668, %v5048
        %v6670 = vadd.f32 %v6669, %v5052
        %v6671 = vadd.f32 %v6670, %v5056
        %v6672 = vadd.f32 %v6671, %v5060
        %v6673 = vadd.f32 %v6672, %v5064
        %v6674 = vadd.f32 %v6673, %v5068
        %v6675 = vrot.slane %v6674, 4
        %v6676 = vadd.f32 %v6674, %v6675
        %v6677 = vrot.slane %v6676, 2
        %v6678 = vadd.f32 %v6676, %v6677
        %v6679 = vrot.slane %v6678, 1
        %v6680 = vadd.f32 %v6678, %v6679
        %v6681 = vadd.f32 %v5041, %v5045
        %v6682 = vadd.f32 %v6681, %v5049
        %v6683 = vadd.f32 %v6682, %v5053
        %v6684 = vadd.f32 %v6683, %v5057
        %v6685 = vadd.f32 %v6684, %v5061
        %v6686 = vadd.f32 %v6685, %v5065
        %v6687 = vadd.f32 %v6686, %v5069
        %v6688 = vrot.slane %v6687, 4
        %v6689 = vadd.f32 %v6687, %v6688
        %v6690 = vrot.slane %v6689, 2
        %v6691 = vadd.f32 %v6689, %v6690
        %v6692 = vrot.slane %v6691, 1
        %v6693 = vadd.f32 %v6691, %v6692
        %v6694 = vadd.f32 %v5070, %v5074
        %v6695 = vadd.f32 %v6694, %v5078
        %v6696 = vadd.f32 %v6695, %v5082
        %v6697 = vadd.f32 %v6696, %v5086
        %v6698 = vadd.f32 %v6697, %v5090
        %v6699 = vadd.f32 %v6698, %v5094
        %v6700 = vadd.f32 %v6699, %v5098
        %v6701 = vrot.slane %v6700, 4
        %v6702 = vadd.f32 %v6700, %v6701
        %v6703 = vrot.slane %v6702, 2
        %v6704 = vadd.f32 %v6702, %v6703
        %v6705 = vrot.slane %v6704, 1
        %v6706 = vadd.f32 %v6704, %v6705
        %v6707 = vadd.f32 %v5071, %v5075
        %v6708 = vadd.f32 %v6707, %v5079
        %v6709 = vadd.f32 %v6708, %v5083
        %v6710 = vadd.f32 %v6709, %v5087
        %v6711 = vadd.f32 %v6710, %v5091
        %v6712 = vadd.f32 %v6711, %v5095
        %v6713 = vadd.f32 %v6712, %v5099
        %v6714 = vrot.slane %v6713, 4
        %v6715 = vadd.f32 %v6713, %v6714
        %v6716 = vrot.slane %v6715, 2
        %v6717 = vadd.f32 %v6715, %v6716
        %v6718 = vrot.slane %v6717, 1
        %v6719 = vadd.f32 %v6717, %v6718
        %v6720 = vadd.f32 %v5072, %v5076
        %v6721 = vadd.f32 %v6720, %v5080
        %v6722 = vadd.f32 %v6721, %v5084
        %v6723 = vadd.f32 %v6722, %v5088
        %v6724 = vadd.f32 %v6723, %v5092
        %v6725 = vadd.f32 %v6724, %v5096
        %v6726 = vadd.f32 %v6725, %v5100
        %v6727 = vrot.slane %v6726, 4
        %v6728 = vadd.f32 %v6726, %v6727
        %v6729 = vrot.slane %v6728, 2
        %v6730 = vadd.f32 %v6728, %v6729
        %v6731 = vrot.slane %v6730, 1
        %v6732 = vadd.f32 %v6730, %v6731
        %v6733 = vadd.f32 %v5073, %v5077
        %v6734 = vadd.f32 %v6733, %v5081
        %v6735 = vadd.f32 %v6734, %v5085
        %v6736 = vadd.f32 %v6735, %v5089
        %v6737 = vadd.f32 %v6736, %v5093
        %v6738 = vadd.f32 %v6737, %v5097
        %v6739 = vadd.f32 %v6738, %v5101
        %v6740 = vrot.slane %v6739, 4
        %v6741 = vadd.f32 %v6739, %v6740
        %v6742 = vrot.slane %v6741, 2
        %v6743 = vadd.f32 %v6741, %v6742
        %v6744 = vrot.slane %v6743, 1
        %v6745 = vadd.f32 %v6743, %v6744
        %v6746 = vadd.f32 %v5102, %v5106
        %v6747 = vadd.f32 %v6746, %v5110
        %v6748 = vadd.f32 %v6747, %v5114
        %v6749 = vadd.f32 %v6748, %v5118
        %v6750 = vadd.f32 %v6749, %v5122
        %v6751 = vadd.f32 %v6750, %v5126
        %v6752 = vadd.f32 %v6751, %v5130
        %v6753 = vrot.slane %v6752, 4
        %v6754 = vadd.f32 %v6752, %v6753
        %v6755 = vrot.slane %v6754, 2
        %v6756 = vadd.f32 %v6754, %v6755
        %v6757 = vrot.slane %v6756, 1
        %v6758 = vadd.f32 %v6756, %v6757
        %v6759 = vadd.f32 %v5103, %v5107
        %v6760 = vadd.f32 %v6759, %v5111
        %v6761 = vadd.f32 %v6760, %v5115
        %v6762 = vadd.f32 %v6761, %v5119
        %v6763 = vadd.f32 %v6762, %v5123
        %v6764 = vadd.f32 %v6763, %v5127
        %v6765 = vadd.f32 %v6764, %v5131
        %v6766 = vrot.slane %v6765, 4
        %v6767 = vadd.f32 %v6765, %v6766
        %v6768 = vrot.slane %v6767, 2
        %v6769 = vadd.f32 %v6767, %v6768
        %v6770 = vrot.slane %v6769, 1
        %v6771 = vadd.f32 %v6769, %v6770
        %v6772 = vadd.f32 %v5104, %v5108
        %v6773 = vadd.f32 %v6772, %v5112
        %v6774 = vadd.f32 %v6773, %v5116
        %v6775 = vadd.f32 %v6774, %v5120
        %v6776 = vadd.f32 %v6775, %v5124
        %v6777 = vadd.f32 %v6776, %v5128
        %v6778 = vadd.f32 %v6777, %v5132
        %v6779 = vrot.slane %v6778, 4
        %v6780 = vadd.f32 %v6778, %v6779
        %v6781 = vrot.slane %v6780, 2
        %v6782 = vadd.f32 %v6780, %v6781
        %v6783 = vrot.slane %v6782, 1
        %v6784 = vadd.f32 %v6782, %v6783
        %v6785 = vadd.f32 %v5105, %v5109
        %v6786 = vadd.f32 %v6785, %v5113
        %v6787 = vadd.f32 %v6786, %v5117
        %v6788 = vadd.f32 %v6787, %v5121
        %v6789 = vadd.f32 %v6788, %v5125
        %v6790 = vadd.f32 %v6789, %v5129
        %v6791 = vadd.f32 %v6790, %v5133
        %v6792 = vrot.slane %v6791, 4
        %v6793 = vadd.f32 %v6791, %v6792
        %v6794 = vrot.slane %v6793, 2
        %v6795 = vadd.f32 %v6793, %v6794
        %v6796 = vrot.slane %v6795, 1
        %v6797 = vadd.f32 %v6795, %v6796
        %v6798 = vrcp.pop 64.0
        %v6799 = vmul.f32 64.0, %v6798
        %v6800 = vsub.f32 1.0, %v6799
        %v6801 = vmul.f32 %v6798, %v6800
        %v6802 = vadd.f32 %v6798, %v6801
        %vm6803 = vweird.f32 %v6798
        %v6804 = vsel %vm6803, %v6798, %v6802
        %v6805 = vmul.f32 %v5146, %v6804
        %v6806 = vmul.f32 %v5159, %v6804
        %v6807 = vmul.f32 %v5172, %v6804
        %v6808 = vmul.f32 %v5185, %v6804
        %v6809 = vmul.f32 %v5198, %v6804
        %v6810 = vmul.f32 %v5211, %v6804
        %v6811 = vmul.f32 %v5224, %v6804
        %v6812 = vmul.f32 %v5237, %v6804
        %v6813 = vmul.f32 %v5250, %v6804
        %v6814 = vmul.f32 %v5263, %v6804
        %v6815 = vmul.f32 %v5276, %v6804
        %v6816 = vmul.f32 %v5289, %v6804
        %v6817 = vmul.f32 %v5302, %v6804
        %v6818 = vmul.f32 %v5315, %v6804
        %v6819 = vmul.f32 %v5328, %v6804
        %v6820 = vmul.f32 %v5341, %v6804
        %v6821 = vmul.f32 %v5354, %v6804
        %v6822 = vmul.f32 %v5367, %v6804
        %v6823 = vmul.f32 %v5380, %v6804
        %v6824 = vmul.f32 %v5393, %v6804
        %v6825 = vmul.f32 %v5406, %v6804
        %v6826 = vmul.f32 %v5419, %v6804
        %v6827 = vmul.f32 %v5432, %v6804
        %v6828 = vmul.f32 %v5445, %v6804
        %v6829 = vmul.f32 %v5458, %v6804
        %v6830 = vmul.f32 %v5471, %v6804
        %v6831 = vmul.f32 %v5484, %v6804
        %v6832 = vmul.f32 %v5497, %v6804
        %v6833 = vmul.f32 %v5510, %v6804
        %v6834 = vmul.f32 %v5523, %v6804
        %v6835 = vmul.f32 %v5536, %v6804
        %v6836 = vmul.f32 %v5549, %v6804
        %v6837 = vmul.f32 %v5562, %v6804
        %v6838 = vmul.f32 %v5575, %v6804
        %v6839 = vmul.f32 %v5588, %v6804
        %v6840 = vmul.f32 %v5601, %v6804
        %v6841 = vmul.f32 %v5614, %v6804
        %v6842 = vmul.f32 %v5627, %v6804
        %v6843 = vmul.f32 %v5640, %v6804
        %v6844 = vmul.f32 %v5653, %v6804
        %v6845 = vmul.f32 %v5666, %v6804
        %v6846 = vmul.f32 %v5679, %v6804
        %v6847 = vmul.f32 %v5692, %v6804
        %v6848 = vmul.f32 %v5705, %v6804
        %v6849 = vmul.f32 %v5718, %v6804
        %v6850 = vmul.f32 %v5731, %v6804
        %v6851 = vmul.f32 %v5744, %v6804
        %v6852 = vmul.f32 %v5757, %v6804
        %v6853 = vmul.f32 %v5770, %v6804
        %v6854 = vmul.f32 %v5783, %v6804
        %v6855 = vmul.f32 %v5796, %v6804
        %v6856 = vmul.f32 %v5809, %v6804
        %v6857 = vmul.f32 %v5822, %v6804
        %v6858 = vmul.f32 %v5835, %v6804
        %v6859 = vmul.f32 %v5848, %v6804
        %v6860 = vmul.f32 %v5861, %v6804
        %v6861 = vmul.f32 %v5874, %v6804
        %v6862 = vmul.f32 %v5887, %v6804
        %v6863 = vmul.f32 %v5900, %v6804
        %v6864 = vmul.f32 %v5913, %v6804
        %v6865 = vmul.f32 %v5926, %v6804
        %v6866 = vmul.f32 %v5939, %v6804
        %v6867 = vmul.f32 %v5952, %v6804
        %v6868 = vmul.f32 %v5965, %v6804
        %v6869 = vmul.f32 %v5978, %v6804
        %v6870 = vmul.f32 %v5991, %v6804
        %v6871 = vmul.f32 %v6004, %v6804
        %v6872 = vmul.f32 %v6017, %v6804
        %v6873 = vmul.f32 %v6030, %v6804
        %v6874 = vmul.f32 %v6043, %v6804
        %v6875 = vmul.f32 %v6056, %v6804
        %v6876 = vmul.f32 %v6069, %v6804
        %v6877 = vmul.f32 %v6082, %v6804
        %v6878 = vmul.f32 %v6095, %v6804
        %v6879 = vmul.f32 %v6108, %v6804
        %v6880 = vmul.f32 %v6121, %v6804
        %v6881 = vmul.f32 %v6134, %v6804
        %v6882 = vmul.f32 %v6147, %v6804
        %v6883 = vmul.f32 %v6160, %v6804
        %v6884 = vmul.f32 %v6173, %v6804
        %v6885 = vmul.f32 %v6186, %v6804
        %v6886 = vmul.f32 %v6199, %v6804
        %v6887 = vmul.f32 %v6212, %v6804
        %v6888 = vmul.f32 %v6225, %v6804
        %v6889 = vmul.f32 %v6238, %v6804
        %v6890 = vmul.f32 %v6251, %v6804
        %v6891 = vmul.f32 %v6264, %v6804
        %v6892 = vmul.f32 %v6277, %v6804
        %v6893 = vmul.f32 %v6290, %v6804
        %v6894 = vmul.f32 %v6303, %v6804
        %v6895 = vmul.f32 %v6316, %v6804
        %v6896 = vmul.f32 %v6329, %v6804
        %v6897 = vmul.f32 %v6342, %v6804
        %v6898 = vmul.f32 %v6355, %v6804
        %v6899 = vmul.f32 %v6368, %v6804
        %v6900 = vmul.f32 %v6381, %v6804
        %v6901 = vmul.f32 %v6394, %v6804
        %v6902 = vmul.f32 %v6407, %v6804
        %v6903 = vmul.f32 %v6420, %v6804
        %v6904 = vmul.f32 %v6433, %v6804
        %v6905 = vmul.f32 %v6446, %v6804
        %v6906 = vmul.f32 %v6459, %v6804
        %v6907 = vmul.f32 %v6472, %v6804
        %v6908 = vmul.f32 %v6485, %v6804
        %v6909 = vmul.f32 %v6498, %v6804
        %v6910 = vmul.f32 %v6511, %v6804
        %v6911 = vmul.f32 %v6524, %v6804
        %v6912 = vmul.f32 %v6537, %v6804
        %v6913 = vmul.f32 %v6550, %v6804
        %v6914 = vmul.f32 %v6563, %v6804
        %v6915 = vmul.f32 %v6576, %v6804
        %v6916 = vmul.f32 %v6589, %v6804
        %v6917 = vmul.f32 %v6602, %v6804
        %v6918 = vmul.f32 %v6615, %v6804
        %v6919 = vmul.f32 %v6628, %v6804
        %v6920 = vmul.f32 %v6641, %v6804
        %v6921 = vmul.f32 %v6654, %v6804
        %v6922 = vmul.f32 %v6667, %v6804
        %v6923 = vmul.f32 %v6680, %v6804
        %v6924 = vmul.f32 %v6693, %v6804
        %v6925 = vmul.f32 %v6706, %v6804
        %v6926 = vmul.f32 %v6719, %v6804
        %v6927 = vmul.f32 %v6732, %v6804
        %v6928 = vmul.f32 %v6745, %v6804
        %v6929 = vmul.f32 %v6758, %v6804
        %v6930 = vmul.f32 %v6771, %v6804
        %v6931 = vmul.f32 %v6784, %v6804
        %v6932 = vmul.f32 %v6797, %v6804
        %vm7061 = vcmask 1041409
        %v7062 = vsel %vm7061, %v6809, %v6805
        %vm7063 = vcmask 1042434
        %v7064 = vsel %vm7063, %v6813, %v7062
        %vm7065 = vcmask 1043459
        %v7066 = vsel %vm7065, %v6817, %v7064
        %vm7067 = vcmask 1044484
        %v7068 = vsel %vm7067, %v6821, %v7066
        %vm7069 = vcmask 1045509
        %v7070 = vsel %vm7069, %v6825, %v7068
        %vm7071 = vcmask 1046534
        %v7072 = vsel %vm7071, %v6829, %v7070
        %vm7073 = vcmask 1047559
        %v7074 = vsel %vm7073, %v6833, %v7072
        %v7075 = vsel %vm7061, %v6810, %v6806
        %v7076 = vsel %vm7063, %v6814, %v7075
        %v7077 = vsel %vm7065, %v6818, %v7076
        %v7078 = vsel %vm7067, %v6822, %v7077
        %v7079 = vsel %vm7069, %v6826, %v7078
        %v7080 = vsel %vm7071, %v6830, %v7079
        %v7081 = vsel %vm7073, %v6834, %v7080
        %v7082 = vsel %vm7061, %v6811, %v6807
        %v7083 = vsel %vm7063, %v6815, %v7082
        %v7084 = vsel %vm7065, %v6819, %v7083
        %v7085 = vsel %vm7067, %v6823, %v7084
        %v7086 = vsel %vm7069, %v6827, %v7085
        %v7087 = vsel %vm7071, %v6831, %v7086
        %v7088 = vsel %vm7073, %v6835, %v7087
        %v7089 = vsel %vm7061, %v6812, %v6808
        %v7090 = vsel %vm7063, %v6816, %v7089
        %v7091 = vsel %vm7065, %v6820, %v7090
        %v7092 = vsel %vm7067, %v6824, %v7091
        %v7093 = vsel %vm7069, %v6828, %v7092
        %v7094 = vsel %vm7071, %v6832, %v7093
        %v7095 = vsel %vm7073, %v6836, %v7094
        %v7096 = vsel %vm7061, %v6841, %v6837
        %v7097 = vsel %vm7063, %v6845, %v7096
        %v7098 = vsel %vm7065, %v6849, %v7097
        %v7099 = vsel %vm7067, %v6853, %v7098
        %v7100 = vsel %vm7069, %v6857, %v7099
        %v7101 = vsel %vm7071, %v6861, %v7100
        %v7102 = vsel %vm7073, %v6865, %v7101
        %v7103 = vsel %vm7061, %v6842, %v6838
        %v7104 = vsel %vm7063, %v6846, %v7103
        %v7105 = vsel %vm7065, %v6850, %v7104
        %v7106 = vsel %vm7067, %v6854, %v7105
        %v7107 = vsel %vm7069, %v6858, %v7106
        %v7108 = vsel %vm7071, %v6862, %v7107
        %v7109 = vsel %vm7073, %v6866, %v7108
        %v7110 = vsel %vm7061, %v6843, %v6839
        %v7111 = vsel %vm7063, %v6847, %v7110
        %v7112 = vsel %vm7065, %v6851, %v7111
        %v7113 = vsel %vm7067, %v6855, %v7112
        %v7114 = vsel %vm7069, %v6859, %v7113
        %v7115 = vsel %vm7071, %v6863, %v7114
        %v7116 = vsel %vm7073, %v6867, %v7115
        %v7117 = vsel %vm7061, %v6844, %v6840
        %v7118 = vsel %vm7063, %v6848, %v7117
        %v7119 = vsel %vm7065, %v6852, %v7118
        %v7120 = vsel %vm7067, %v6856, %v7119
        %v7121 = vsel %vm7069, %v6860, %v7120
        %v7122 = vsel %vm7071, %v6864, %v7121
        %v7123 = vsel %vm7073, %v6868, %v7122
        %v7124 = vsel %vm7061, %v6873, %v6869
        %v7125 = vsel %vm7063, %v6877, %v7124
        %v7126 = vsel %vm7065, %v6881, %v7125
        %v7127 = vsel %vm7067, %v6885, %v7126
        %v7128 = vsel %vm7069, %v6889, %v7127
        %v7129 = vsel %vm7071, %v6893, %v7128
        %v7130 = vsel %vm7073, %v6897, %v7129
        %v7131 = vsel %vm7061, %v6874, %v6870
        %v7132 = vsel %vm7063, %v6878, %v7131
        %v7133 = vsel %vm7065, %v6882, %v7132
        %v7134 = vsel %vm7067, %v6886, %v7133
        %v7135 = vsel %vm7069, %v6890, %v7134
        %v7136 = vsel %vm7071, %v6894, %v7135
        %v7137 = vsel %vm7073, %v6898, %v7136
        %v7138 = vsel %vm7061, %v6875, %v6871
        %v7139 = vsel %vm7063, %v6879, %v7138
        %v7140 = vsel %vm7065, %v6883, %v7139
        %v7141 = vsel %vm7067, %v6887, %v7140
        %v7142 = vsel %vm7069, %v6891, %v7141
        %v7143 = vsel %vm7071, %v6895, %v7142
        %v7144 = vsel %vm7073, %v6899, %v7143
        %v7145 = vsel %vm7061, %v6876, %v6872
        %v7146 = vsel %vm7063, %v6880, %v7145
        %v7147 = vsel %vm7065, %v6884, %v7146
        %v7148 = vsel %vm7067, %v6888, %v7147
        %v7149 = vsel %vm7069, %v6892, %v7148
        %v7150 = vsel %vm7071, %v6896, %v7149
        %v7151 = vsel %vm7073, %v6900, %v7150
        %v7152 = vsel %vm7061, %v6905, %v6901
        %v7153 = vsel %vm7063, %v6909, %v7152
        %v7154 = vsel %vm7065, %v6913, %v7153
        %v7155 = vsel %vm7067, %v6917, %v7154
        %v7156 = vsel %vm7069, %v6921, %v7155
        %v7157 = vsel %vm7071, %v6925, %v7156
        %v7158 = vsel %vm7073, %v6929, %v7157
        %v7159 = vsel %vm7061, %v6906, %v6902
        %v7160 = vsel %vm7063, %v6910, %v7159
        %v7161 = vsel %vm7065, %v6914, %v7160
        %v7162 = vsel %vm7067, %v6918, %v7161
        %v7163 = vsel %vm7069, %v6922, %v7162
        %v7164 = vsel %vm7071, %v6926, %v7163
        %v7165 = vsel %vm7073, %v6930, %v7164
        %v7166 = vsel %vm7061, %v6907, %v6903
        %v7167 = vsel %vm7063, %v6911, %v7166
        %v7168 = vsel %vm7065, %v6915, %v7167
        %v7169 = vsel %vm7067, %v6919, %v7168
        %v7170 = vsel %vm7069, %v6923, %v7169
        %v7171 = vsel %vm7071, %v6927, %v7170
        %v7172 = vsel %vm7073, %v6931, %v7171
        %v7173 = vsel %vm7061, %v6908, %v6904
        %v7174 = vsel %vm7063, %v6912, %v7173
        %v7175 = vsel %vm7065, %v6916, %v7174
        %v7176 = vsel %vm7067, %v6920, %v7175
        %v7177 = vsel %vm7069, %v6924, %v7176
        %v7178 = vsel %vm7071, %v6928, %v7177
        %v7179 = vsel %vm7073, %v6932, %v7178
        %7196 = vst [vmem:[%s282] sm:$0xff] %v7074
        %7197 = vst [vmem:[%s282 + $0x8] sm:$0xff] %v7081
        %7198 = vst [vmem:[%s282 + $0x10] sm:$0xff] %v7088
        %7199 = vst [vmem:[%s282 + $0x18] sm:$0xff] %v7095
        %7200 = vst [vmem:[%s282 + $0x20] sm:$0xff] %v7102
        %7201 = vst [vmem:[%s282 + $0x28] sm:$0xff] %v7109
        %7202 = vst [vmem:[%s282 + $0x30] sm:$0xff] %v7116
        %7203 = vst [vmem:[%s282 + $0x38] sm:$0xff] %v7123
        %7204 = vst [vmem:[%s282 + $0x40] sm:$0xff] %v7130
        %7205 = vst [vmem:[%s282 + $0x48] sm:$0xff] %v7137
        %7206 = vst [vmem:[%s282 + $0x50] sm:$0xff] %v7144
        %7207 = vst [vmem:[%s282 + $0x58] sm:$0xff] %v7151
        %7208 = vst [vmem:[%s282 + $0x60] sm:$0xff] %v7158
        %7209 = vst [vmem:[%s282 + $0x68] sm:$0xff] %v7165
        %7210 = vst [vmem:[%s282 + $0x70] sm:$0xff] %v7172
        %7211 = vst [vmem:[%s282 + $0x78] sm:$0xff] %v7179
        %s7212 = sand.u32 %s123, 1
        %s7213 = scalar_lea.sflag [#allocation4], %s7212
        %s7214 = sand.u32 %s123, 1
        %s7215 = smul.addr %s7214, 128
        %s7216 = scalar_lea.vmem [#allocation8], %s7215
        // Predicated region
        $region45: #{tpu_custom_call.1} parent=31 // pred_check
          %p7217 = pneg %p133
        $region46: #{tpu_custom_call.1} parent=31 // pred_check_branch
          %7219 = sbr.rel (%p7217) target = $region48
        $region47: #{tpu_custom_call.1} parent=31 // pred_region
          %s7220 = smul.u32 4, %s27
          %s7221 = smul.u32 4, %s28
          %7223 = vsyncadd %s7213, 0
          %s7224 = smul.addr %s7220, 16
          %s7225 = sadd.s32 %s7221, %s7224
          %s7226 = smul.addr %s7225, 8
          %s7227 = scalar_lea.hbm %s3, %s7226
          %s7228 = sshll.u32 %s7216, 4
          %s7229 = int_to_ptr.vmem [resolvable:$true] %s7228
          %s7230 = sshll.u32 %s7227, 4
          %s7231 = int_to_ptr.hbm [resolvable:$true] %s7230
          %7236 = dma.vmem_to_hbm [thread:$0]  %s7229, 2048, %s7231, %s7213, 512, 2048, 32
        $region48: #{tpu_custom_call.1} parent=31 // pred_fallthru
          _
      $region32: #{tpu_custom_call.1} parent=5 // pred_fallthru
        _
      %p7237 = scmp.le.s32.totalorder 2, %s18
      // Predicated region
      $region49: #{tpu_custom_call.1} parent=5 // pred_check
        %p7238 = pneg %p7237
      $region50: #{tpu_custom_call.1} parent=5 // pred_check_branch
        %7240 = sbr.rel (%p7238) target = $region52
      $region51: #{tpu_custom_call.1} parent=5 // pred_region
        %s7241 = ssub.s32 %s18, 2
        // Predicated region
        $region53: #{tpu_custom_call.1} parent=51 // pred_check
          %p7242 = pneg %p139
        $region54: #{tpu_custom_call.1} parent=51 // pred_check_branch
          %7244 = sbr.rel (%p7242) target = $region56
        $region55: #{tpu_custom_call.1} parent=51 // pred_region
          %s7245 = sand.u32 %s124, 1
          %s7246 = scalar_lea.sflag [#allocation4], %s7245
          %s7247 = sand.u32 %s124, 1
          %s7248 = smul.addr %s7247, 128
          %s7249 = scalar_lea.vmem [#allocation8], %s7248
          %7251 = dma.done %s7246, 2048
        $region56: #{tpu_custom_call.1} parent=51 // pred_fallthru
          _
      $region52: #{tpu_custom_call.1} parent=5 // pred_fallthru
        _
    $region6: #{tpu_custom_call.1} parent=1 // loop_footer
      %s22 = sadd.s32 1, %s18
    $region7: #{tpu_custom_call.1} parent=1 // loop_footer_branch
      %17 = sbr.rel target = $region3
    $region8: #{tpu_custom_call.1} parent=1 // loop_exit
      _
    %7252 = vsyncpa [#allocation3], 1
    %s7253 = scalar_lea.sflag [#allocation3], 1
    %7254 = vsyncpa %s7253, 1
    %7255 = vsyncpa [#allocation6], 1
    %s7256 = scalar_lea.sflag [#allocation6], 1
    %7257 = vsyncpa %s7256, 1
    %7258 = vsyncpa [#allocation4], 1
    %s7259 = scalar_lea.sflag [#allocation4], 1
    %7260 = vsyncpa %s7259, 1

</llo_original>
